<compile_context>
chip_gen: v5e
topology: v5e:2x2
jax: 0.10.0
libtpu: 0.0.40
codegen_flags: <defaults>
</compile_context>

<pallas_src>
import functools

import jax
import jax.numpy as jnp
from jax.experimental import pallas as pl
from jax.experimental.pallas import tpu as pltpu

EMBED_DIM = 300   # fixed by the PyTorch module
EMBED_PAD = 384   # 3 * 128 lanes; padded columns are zero => exact result

_COMPILER_PARAMS = pltpu.CompilerParams(
    dimension_semantics=("arbitrary",),
    vmem_limit_bytes=64 * 1024 * 1024,
)


def _spec(shape):
    nd = len(shape)
    return pl.BlockSpec(shape, lambda i, _nd=nd: (0,) * _nd)


# ---------------------------------------------------------------------------
# LSTM cell on row-stacked [fwd; bwd] gates: g is (2*B2, 4H) = one (8,128) vreg
# ---------------------------------------------------------------------------
def _lstm_cell(g, c, hid):
    i_g = jax.nn.sigmoid(g[:, 0 * hid:1 * hid])
    f_g = jax.nn.sigmoid(g[:, 1 * hid:2 * hid])
    g_g = jnp.tanh(g[:, 2 * hid:3 * hid])
    o_g = jax.nn.sigmoid(g[:, 3 * hid:4 * hid])
    c_new = f_g * c + i_g * g_g
    return o_g * jnp.tanh(c_new), c_new


# ---------------------------------------------------------------------------
# bidirectional LSTM layer: gates precomputed, only h·Whh on the serial path
# ---------------------------------------------------------------------------
def _bidir_layer(xg, whhf, whhb, hseq_ref, t_len, bsz2, hid):
    """xg: (T*B2, 8H) precomputed x·Wih + b, cols [0:4H]=fwd, [4H:8H]=bwd,
    time-major rows (row = t*B2 + b).  whhf/whhb: (H, 4H).
    Fwd/bwd states are stacked along rows (rows [0:B2]=fwd, [B2:2B2]=bwd) so
    the gate nonlinearities run once per step on a single lane/sublane-dense
    tile.  Writes the per-time hidden sequence into hseq_ref (T*B2, 2H) if
    given; returns the final stacked hidden state (2*B2, H)."""
    xgf = xg[:, :4 * hid]
    xgb = xg[:, 4 * hid:]
    h = jnp.zeros((2 * bsz2, hid), jnp.float32)
    c = jnp.zeros((2 * bsz2, hid), jnp.float32)
    # Static Python loop: T is small & static -> full unroll, all indices static.
    for t in range(t_len):
        tb = t_len - 1 - t
        gf = xgf[t * bsz2:(t + 1) * bsz2] + jnp.dot(
            h[:bsz2], whhf, preferred_element_type=jnp.float32)
        gb = xgb[tb * bsz2:(tb + 1) * bsz2] + jnp.dot(
            h[bsz2:], whhb, preferred_element_type=jnp.float32)
        h, c = _lstm_cell(jnp.concatenate([gf, gb], axis=0), c, hid)
        if hseq_ref is not None:
            hseq_ref[t * bsz2:(t + 1) * bsz2, :hid] = h[:bsz2]
            hseq_ref[tb * bsz2:(tb + 1) * bsz2, hid:] = h[bsz2:]
    return h


# ---------------------------------------------------------------------------
# single fused kernel: projection -> LSTM L1 -> LSTM L2 -> MLP head -> logits
# ---------------------------------------------------------------------------
def bilstm_kernel(e_ref, pw_ref, pb_ref,
                  wih1_ref, whh1f_ref, whh1b_ref, bg1_ref,
                  wih2_ref, whh2f_ref, whh2b_ref, bg2_ref,
                  w1_ref, b1_ref, w2_ref, b2_ref, w3_ref, b3_ref,
                  out_ref, hseq_ref, *, t_len, bsz2):
    hid = whh1f_ref.shape[0]

    # projection + relu (all timesteps & both sentences in one matmul)
    x = jnp.maximum(
        jnp.dot(e_ref[...], pw_ref[...], preferred_element_type=jnp.float32)
        + pb_ref[...], 0.0)                                          # (T*B2, H)

    # layer 1: hoisted input-gate precompute, both directions in one matmul
    xg1 = jnp.dot(x, wih1_ref[...],
                  preferred_element_type=jnp.float32) + bg1_ref[...]  # (T*B2, 8H)
    _bidir_layer(xg1, whh1f_ref[...], whh1b_ref[...], hseq_ref,
                 t_len, bsz2, hid)

    # layer 2: sequence output never used, only the final hidden states
    xg2 = jnp.dot(hseq_ref[...], wih2_ref[...],
                  preferred_element_type=jnp.float32) + bg2_ref[...]  # (T*B2, 8H)
    hfin = _bidir_layer(xg2, whh2f_ref[...], whh2b_ref[...], None,
                        t_len, bsz2, hid)                             # (2*B2, H)

    enc = jnp.concatenate([hfin[:bsz2], hfin[bsz2:]], axis=-1)        # (B2, 2H)
    bsz = bsz2 // 2
    p, hyp = enc[:bsz], enc[bsz:]                                     # premise / hypothesis
    combined = jnp.concatenate(
        [p, hyp, jnp.abs(p - hyp), p * hyp], axis=-1)                 # (B, 8H)

    z = jnp.maximum(
        jnp.dot(combined, w1_ref[...], preferred_element_type=jnp.float32)
        + b1_ref[...], 0.0)
    z = jnp.maximum(
        jnp.dot(z, w2_ref[...], preferred_element_type=jnp.float32)
        + b2_ref[...], 0.0)
    out_ref[...] = (jnp.dot(z, w3_ref[...], preferred_element_type=jnp.float32)
                    + b3_ref[...])


# ---------------------------------------------------------------------------
# full forward pass (ONE pallas_call)
# ---------------------------------------------------------------------------
def bilstm_forward(params, premise_ids, hypothesis_ids):
    bsz, t_len = premise_ids.shape
    hid = params["proj_w"].shape[1]
    out_dim = params["w3"].shape[1]
    bsz2 = 2 * bsz

    # Stack premise & hypothesis along batch -> single encoder pass.
    ids = jnp.concatenate([premise_ids, hypothesis_ids], axis=0)      # (2B, T)
    flat_ids = ids.T.reshape(-1)                                      # time-major, row = t*2B + b
    e = params["embedding"][flat_ids]                                 # (T*2B, 384) gather (XLA glue)

    l1, l2 = params["lstm"]
    args = (e, params["proj_w"], params["proj_b"],
            l1["wih"], l1["whhf"], l1["whhb"], l1["b"],
            l2["wih"], l2["whhf"], l2["whhb"], l2["b"],
            params["w1"], params["b1"], params["w2"], params["b2"],
            params["w3"], params["b3"])

    return pl.pallas_call(
        functools.partial(bilstm_kernel, t_len=t_len, bsz2=bsz2),
        grid=(1,),
        out_shape=jax.ShapeDtypeStruct((bsz, out_dim), jnp.float32),
        in_specs=[_spec(a.shape) for a in args],
        out_specs=_spec((bsz, out_dim)),
        scratch_shapes=[pltpu.VMEM((t_len * bsz2, 2 * hid), jnp.float32)],
        compiler_params=_COMPILER_PARAMS,
    )(*args)


# ---------------------------------------------------------------------------
# deterministic parameter construction (synthetic; no checkpoint load)
# ---------------------------------------------------------------------------
def init_params(key, vocab_size, hidden, out_dim):
    keys = jax.random.split(key, 24)

    def xavier(k, shape):
        fan_in, fan_out = shape[-2], shape[-1]
        limit = (6.0 / (fan_in + fan_out)) ** 0.5
        return jax.random.uniform(k, shape, jnp.float32, -limit, limit)

    def unif(k, shape, scale):
        return jax.random.uniform(k, shape, jnp.float32, -scale, scale)

    params = {}
    emb = jax.random.normal(keys[0], (vocab_size, EMBED_DIM), jnp.float32)
    # zero-pad embedding columns and the matching projection rows -> exact,
    # but the 300-wide contraction becomes a lane-dense 384 = 3*128.
    params["embedding"] = jnp.pad(emb, ((0, 0), (0, EMBED_PAD - EMBED_DIM)))
    pw = unif(keys[1], (EMBED_DIM, hidden), 1.0 / EMBED_DIM ** 0.5)
    params["proj_w"] = jnp.pad(pw, ((0, EMBED_PAD - EMBED_DIM), (0, 0)))
    params["proj_b"] = jnp.zeros((1, hidden), jnp.float32)

    scale = 1.0 / hidden ** 0.5
    lstm = []
    ki = 2
    for layer in range(2):
        din = hidden if layer == 0 else 2 * hidden
        # fused gate layout per direction: columns are [i | f | g | o], each H
        # wide; the two directions' input-gate weights are concatenated along
        # columns -> one (din, 8H) matmul per layer for the hoisted precompute.
        wihf = unif(keys[ki], (din, 4 * hidden), scale); ki += 1
        whhf = unif(keys[ki], (hidden, 4 * hidden), scale); ki += 1
        bf = unif(keys[ki], (1, 4 * hidden), scale); ki += 1
        wihb = unif(keys[ki], (din, 4 * hidden), scale); ki += 1
        whhb = unif(keys[ki], (hidden, 4 * hidden), scale); ki += 1
        bb = unif(keys[ki], (1, 4 * hidden), scale); ki += 1
        lstm.append({
            "wih": jnp.concatenate([wihf, wihb], axis=1),   # (din, 8H)
            "whhf": whhf, "whhb": whhb,                     # (H, 4H) each
            "b": jnp.concatenate([bf, bb], axis=1),         # (1, 8H)
        })
    params["lstm"] = lstm

    params["w1"] = xavier(keys[ki], (8 * hidden, hidden)); ki += 1   # lin1 (8H->H)
    params["b1"] = jnp.zeros((1, hidden), jnp.float32)
    params["w2"] = xavier(keys[ki], (hidden, hidden)); ki += 1       # lin2 (H->H)
    params["b2"] = jnp.zeros((1, hidden), jnp.float32)
    params["w3"] = xavier(keys[ki], (hidden, out_dim)); ki += 1      # lin3 (H->out)
    params["b3"] = jnp.zeros((1, out_dim), jnp.float32)
    return params


if __name__ == "__main__":
    key = jax.random.PRNGKey(0)
    vocab, hidden, out_dim = 100, 32, 3
    batch, seq = 2, 8

    pkey, ik1, ik2 = jax.random.split(key, 3)
    params = init_params(pkey, vocab, hidden, out_dim)
    premise = jax.random.randint(ik1, (batch, seq), 0, vocab, dtype=jnp.int32)
    hypothesis = jax.random.randint(ik2, (batch, seq), 0, vocab, dtype=jnp.int32)

    logits = jax.jit(bilstm_forward)(params, premise, hypothesis)
    logits = jax.block_until_ready(logits)

    assert logits.shape == (batch, out_dim)
    assert bool(jnp.all(jnp.isfinite(logits)))
    print("KERNEL_OK")
</pallas_src>

<mosaic_0001>
module attributes {stable_mosaic.version = 11 : i64} {
  func.func @bilstm_kernel(%arg0: i32, %arg1: memref<32x384xf32, #tpu.memory_space<vmem>>, %arg2: memref<384x32xf32, #tpu.memory_space<vmem>>, %arg3: memref<1x32xf32, #tpu.memory_space<vmem>>, %arg4: memref<32x256xf32, #tpu.memory_space<vmem>>, %arg5: memref<32x128xf32, #tpu.memory_space<vmem>>, %arg6: memref<32x128xf32, #tpu.memory_space<vmem>>, %arg7: memref<1x256xf32, #tpu.memory_space<vmem>>, %arg8: memref<64x256xf32, #tpu.memory_space<vmem>>, %arg9: memref<32x128xf32, #tpu.memory_space<vmem>>, %arg10: memref<32x128xf32, #tpu.memory_space<vmem>>, %arg11: memref<1x256xf32, #tpu.memory_space<vmem>>, %arg12: memref<256x32xf32, #tpu.memory_space<vmem>>, %arg13: memref<1x32xf32, #tpu.memory_space<vmem>>, %arg14: memref<32x32xf32, #tpu.memory_space<vmem>>, %arg15: memref<1x32xf32, #tpu.memory_space<vmem>>, %arg16: memref<32x3xf32, #tpu.memory_space<vmem>>, %arg17: memref<1x3xf32, #tpu.memory_space<vmem>>, %arg18: memref<2x3xf32, #tpu.memory_space<vmem>>, %arg19: memref<32x64xf32, #tpu.memory_space<vmem>>) attributes {dimension_semantics = [#tpu.dimension_semantics<arbitrary>], iteration_bounds = array<i64: 1>, scalar_prefetch = 0 : i64, scratch_operands = 1 : i64, tpu.core_type = #tpu.core_type<tc>, window_params = [{pipeline_mode = #tpu.pipeline_mode<synchronous>, transform_indices = @transform_0, window_bounds = array<i64: 32, 384>}, {pipeline_mode = #tpu.pipeline_mode<synchronous>, transform_indices = @transform_1, window_bounds = array<i64: 384, 32>}, {pipeline_mode = #tpu.pipeline_mode<synchronous>, transform_indices = @transform_2, window_bounds = array<i64: 1, 32>}, {pipeline_mode = #tpu.pipeline_mode<synchronous>, transform_indices = @transform_3, window_bounds = array<i64: 32, 256>}, {pipeline_mode = #tpu.pipeline_mode<synchronous>, transform_indices = @transform_4, window_bounds = array<i64: 32, 128>}, {pipeline_mode = #tpu.pipeline_mode<synchronous>, transform_indices = @transform_5, window_bounds = array<i64: 32, 128>}, {pipeline_mode = #tpu.pipeline_mode<synchronous>, transform_indices = @transform_6, window_bounds = array<i64: 1, 256>}, {pipeline_mode = #tpu.pipeline_mode<synchronous>, transform_indices = @transform_7, window_bounds = array<i64: 64, 256>}, {pipeline_mode = #tpu.pipeline_mode<synchronous>, transform_indices = @transform_8, window_bounds = array<i64: 32, 128>}, {pipeline_mode = #tpu.pipeline_mode<synchronous>, transform_indices = @transform_9, window_bounds = array<i64: 32, 128>}, {pipeline_mode = #tpu.pipeline_mode<synchronous>, transform_indices = @transform_10, window_bounds = array<i64: 1, 256>}, {pipeline_mode = #tpu.pipeline_mode<synchronous>, transform_indices = @transform_11, window_bounds = array<i64: 256, 32>}, {pipeline_mode = #tpu.pipeline_mode<synchronous>, transform_indices = @transform_12, window_bounds = array<i64: 1, 32>}, {pipeline_mode = #tpu.pipeline_mode<synchronous>, transform_indices = @transform_13, window_bounds = array<i64: 32, 32>}, {pipeline_mode = #tpu.pipeline_mode<synchronous>, transform_indices = @transform_14, window_bounds = array<i64: 1, 32>}, {pipeline_mode = #tpu.pipeline_mode<synchronous>, transform_indices = @transform_15, window_bounds = array<i64: 32, 3>}, {pipeline_mode = #tpu.pipeline_mode<synchronous>, transform_indices = @transform_16, window_bounds = array<i64: 1, 3>}, {pipeline_mode = #tpu.pipeline_mode<synchronous>, transform_indices = @transform_17, window_bounds = array<i64: 2, 3>}]} {
    %c0 = arith.constant 0 : index
    %c0_0 = arith.constant 0 : index
    %0 = vector.load %arg1[%c0, %c0_0] : memref<32x384xf32, #tpu.memory_space<vmem>>, vector<32x384xf32>
    %c0_1 = arith.constant 0 : index
    %c0_2 = arith.constant 0 : index
    %1 = vector.load %arg2[%c0_1, %c0_2] : memref<384x32xf32, #tpu.memory_space<vmem>>, vector<384x32xf32>
    %cst = arith.constant dense<0.000000e+00> : vector<32x32xf32>
    %2 = tpu.matmul %0, %1, %cst {dimension_numbers = #tpu.dot_dimension_numbers<[1], [0], [0], [1], [0, 0, 1, 1], [], []>} : vector<32x384xf32>, vector<384x32xf32>, vector<32x32xf32> -> vector<32x32xf32>
    %c0_3 = arith.constant 0 : index
    %c0_4 = arith.constant 0 : index
    %3 = vector.load %arg3[%c0_3, %c0_4] : memref<1x32xf32, #tpu.memory_space<vmem>>, vector<1x32xf32>
    %4 = vector.broadcast %3 : vector<1x32xf32> to vector<32x32xf32>
    %5 = arith.addf %2, %4 : vector<32x32xf32>
    %cst_5 = arith.constant 0.000000e+00 : f32
    %6 = vector.broadcast %cst_5 : f32 to vector<32x32xf32>
    %7 = arith.maximumf %5, %6 : vector<32x32xf32>
    %c0_6 = arith.constant 0 : index
    %c0_7 = arith.constant 0 : index
    %8 = vector.load %arg4[%c0_6, %c0_7] : memref<32x256xf32, #tpu.memory_space<vmem>>, vector<32x256xf32>
    %cst_8 = arith.constant dense<0.000000e+00> : vector<32x256xf32>
    %9 = tpu.matmul %7, %8, %cst_8 {dimension_numbers = #tpu.dot_dimension_numbers<[1], [0], [0], [1], [0, 0, 1, 1], [], []>} : vector<32x32xf32>, vector<32x256xf32>, vector<32x256xf32> -> vector<32x256xf32>
    %c0_9 = arith.constant 0 : index
    %c0_10 = arith.constant 0 : index
    %10 = vector.load %arg7[%c0_9, %c0_10] : memref<1x256xf32, #tpu.memory_space<vmem>>, vector<1x256xf32>
    %11 = vector.broadcast %10 : vector<1x256xf32> to vector<32x256xf32>
    %12 = arith.addf %9, %11 : vector<32x256xf32>
    %c0_11 = arith.constant 0 : index
    %c0_12 = arith.constant 0 : index
    %13 = vector.load %arg5[%c0_11, %c0_12] : memref<32x128xf32, #tpu.memory_space<vmem>>, vector<32x128xf32>
    %c0_13 = arith.constant 0 : index
    %c0_14 = arith.constant 0 : index
    %14 = vector.load %arg6[%c0_13, %c0_14] : memref<32x128xf32, #tpu.memory_space<vmem>>, vector<32x128xf32>
    %15 = vector.extract_strided_slice %12 {offsets = [0, 0], sizes = [32, 128], strides = [1, 1]} : vector<32x256xf32> to vector<32x128xf32>
    %16 = vector.extract_strided_slice %12 {offsets = [0, 128], sizes = [32, 128], strides = [1, 1]} : vector<32x256xf32> to vector<32x128xf32>
    %cst_15 = arith.constant 0.000000e+00 : f32
    %17 = vector.broadcast %cst_15 : f32 to vector<8x32xf32>
    %cst_16 = arith.constant 0.000000e+00 : f32
    %18 = vector.broadcast %cst_16 : f32 to vector<8x32xf32>
    %19 = vector.extract_strided_slice %15 {offsets = [0, 0], sizes = [4, 128], strides = [1, 1]} : vector<32x128xf32> to vector<4x128xf32>
    %20 = vector.extract_strided_slice %17 {offsets = [0, 0], sizes = [4, 32], strides = [1, 1]} : vector<8x32xf32> to vector<4x32xf32>
    %cst_17 = arith.constant dense<0.000000e+00> : vector<4x128xf32>
    %21 = tpu.matmul %20, %13, %cst_17 {dimension_numbers = #tpu.dot_dimension_numbers<[1], [0], [0], [1], [0, 0, 1, 1], [], []>} : vector<4x32xf32>, vector<32x128xf32>, vector<4x128xf32> -> vector<4x128xf32>
    %22 = arith.addf %19, %21 : vector<4x128xf32>
    %23 = vector.extract_strided_slice %16 {offsets = [28, 0], sizes = [4, 128], strides = [1, 1]} : vector<32x128xf32> to vector<4x128xf32>
    %24 = vector.extract_strided_slice %17 {offsets = [4, 0], sizes = [4, 32], strides = [1, 1]} : vector<8x32xf32> to vector<4x32xf32>
    %cst_18 = arith.constant dense<0.000000e+00> : vector<4x128xf32>
    %25 = tpu.matmul %24, %14, %cst_18 {dimension_numbers = #tpu.dot_dimension_numbers<[1], [0], [0], [1], [0, 0, 1, 1], [], []>} : vector<4x32xf32>, vector<32x128xf32>, vector<4x128xf32> -> vector<4x128xf32>
    %26 = arith.addf %23, %25 : vector<4x128xf32>
    %27 = tpu.concatenate %22, %26 in 0 : vector<4x128xf32>, vector<4x128xf32> -> vector<8x128xf32>
    %28 = vector.extract_strided_slice %27 {offsets = [0, 0], sizes = [8, 32], strides = [1, 1]} : vector<8x128xf32> to vector<8x32xf32>
    %29 = arith.negf %28 : vector<8x32xf32>
    %30 = math.exp %29 : vector<8x32xf32>
    %cst_19 = arith.constant 1.000000e+00 : f32
    %31 = vector.broadcast %cst_19 : f32 to vector<8x32xf32>
    %32 = arith.addf %31, %30 : vector<8x32xf32>
    %33 = arith.divf %31, %32 : vector<8x32xf32>
    %34 = vector.extract_strided_slice %27 {offsets = [0, 32], sizes = [8, 32], strides = [1, 1]} : vector<8x128xf32> to vector<8x32xf32>
    %35 = arith.negf %34 : vector<8x32xf32>
    %36 = math.exp %35 : vector<8x32xf32>
    %cst_20 = arith.constant 1.000000e+00 : f32
    %37 = vector.broadcast %cst_20 : f32 to vector<8x32xf32>
    %38 = arith.addf %37, %36 : vector<8x32xf32>
    %39 = arith.divf %37, %38 : vector<8x32xf32>
    %40 = vector.extract_strided_slice %27 {offsets = [0, 64], sizes = [8, 32], strides = [1, 1]} : vector<8x128xf32> to vector<8x32xf32>
    %41 = math.tanh %40 : vector<8x32xf32>
    %42 = vector.extract_strided_slice %27 {offsets = [0, 96], sizes = [8, 32], strides = [1, 1]} : vector<8x128xf32> to vector<8x32xf32>
    %43 = arith.negf %42 : vector<8x32xf32>
    %44 = math.exp %43 : vector<8x32xf32>
    %cst_21 = arith.constant 1.000000e+00 : f32
    %45 = vector.broadcast %cst_21 : f32 to vector<8x32xf32>
    %46 = arith.addf %45, %44 : vector<8x32xf32>
    %47 = arith.divf %45, %46 : vector<8x32xf32>
    %48 = arith.mulf %39, %18 : vector<8x32xf32>
    %49 = arith.mulf %33, %41 : vector<8x32xf32>
    %50 = arith.addf %48, %49 : vector<8x32xf32>
    %51 = math.tanh %50 : vector<8x32xf32>
    %52 = arith.mulf %47, %51 : vector<8x32xf32>
    %53 = vector.extract_strided_slice %52 {offsets = [0, 0], sizes = [4, 32], strides = [1, 1]} : vector<8x32xf32> to vector<4x32xf32>
    %c0_22 = arith.constant 0 : index
    %c0_23 = arith.constant 0 : index
    %54 = vector.load %arg19[%c0_22, %c0_23] : memref<32x64xf32, #tpu.memory_space<vmem>>, vector<4x32xf32>
    tpu.vector_store %arg19[%c0_22, %c0_23], %53 {strides = array<i32>} : memref<32x64xf32, #tpu.memory_space<vmem>>, vector<4x32xf32>,
    %55 = vector.extract_strided_slice %52 {offsets = [4, 0], sizes = [4, 32], strides = [1, 1]} : vector<8x32xf32> to vector<4x32xf32>
    %c28 = arith.constant 28 : index
    %c32 = arith.constant 32 : index
    %56 = vector.load %arg19[%c28, %c32] : memref<32x64xf32, #tpu.memory_space<vmem>>, vector<4x32xf32>
    tpu.vector_store %arg19[%c28, %c32], %55 {strides = array<i32>} : memref<32x64xf32, #tpu.memory_space<vmem>>, vector<4x32xf32>,
    %57 = vector.extract_strided_slice %15 {offsets = [4, 0], sizes = [4, 128], strides = [1, 1]} : vector<32x128xf32> to vector<4x128xf32>
    %58 = vector.extract_strided_slice %52 {offsets = [0, 0], sizes = [4, 32], strides = [1, 1]} : vector<8x32xf32> to vector<4x32xf32>
    %cst_24 = arith.constant dense<0.000000e+00> : vector<4x128xf32>
    %59 = tpu.matmul %58, %13, %cst_24 {dimension_numbers = #tpu.dot_dimension_numbers<[1], [0], [0], [1], [0, 0, 1, 1], [], []>} : vector<4x32xf32>, vector<32x128xf32>, vector<4x128xf32> -> vector<4x128xf32>
    %60 = arith.addf %57, %59 : vector<4x128xf32>
    %61 = vector.extract_strided_slice %16 {offsets = [24, 0], sizes = [4, 128], strides = [1, 1]} : vector<32x128xf32> to vector<4x128xf32>
    %62 = vector.extract_strided_slice %52 {offsets = [4, 0], sizes = [4, 32], strides = [1, 1]} : vector<8x32xf32> to vector<4x32xf32>
    %cst_25 = arith.constant dense<0.000000e+00> : vector<4x128xf32>
    %63 = tpu.matmul %62, %14, %cst_25 {dimension_numbers = #tpu.dot_dimension_numbers<[1], [0], [0], [1], [0, 0, 1, 1], [], []>} : vector<4x32xf32>, vector<32x128xf32>, vector<4x128xf32> -> vector<4x128xf32>
    %64 = arith.addf %61, %63 : vector<4x128xf32>
    %65 = tpu.concatenate %60, %64 in 0 : vector<4x128xf32>, vector<4x128xf32> -> vector<8x128xf32>
    %66 = vector.extract_strided_slice %65 {offsets = [0, 0], sizes = [8, 32], strides = [1, 1]} : vector<8x128xf32> to vector<8x32xf32>
    %67 = arith.negf %66 : vector<8x32xf32>
    %68 = math.exp %67 : vector<8x32xf32>
    %cst_26 = arith.constant 1.000000e+00 : f32
    %69 = vector.broadcast %cst_26 : f32 to vector<8x32xf32>
    %70 = arith.addf %69, %68 : vector<8x32xf32>
    %71 = arith.divf %69, %70 : vector<8x32xf32>
    %72 = vector.extract_strided_slice %65 {offsets = [0, 32], sizes = [8, 32], strides = [1, 1]} : vector<8x128xf32> to vector<8x32xf32>
    %73 = arith.negf %72 : vector<8x32xf32>
    %74 = math.exp %73 : vector<8x32xf32>
    %cst_27 = arith.constant 1.000000e+00 : f32
    %75 = vector.broadcast %cst_27 : f32 to vector<8x32xf32>
    %76 = arith.addf %75, %74 : vector<8x32xf32>
    %77 = arith.divf %75, %76 : vector<8x32xf32>
    %78 = vector.extract_strided_slice %65 {offsets = [0, 64], sizes = [8, 32], strides = [1, 1]} : vector<8x128xf32> to vector<8x32xf32>
    %79 = math.tanh %78 : vector<8x32xf32>
    %80 = vector.extract_strided_slice %65 {offsets = [0, 96], sizes = [8, 32], strides = [1, 1]} : vector<8x128xf32> to vector<8x32xf32>
    %81 = arith.negf %80 : vector<8x32xf32>
    %82 = math.exp %81 : vector<8x32xf32>
    %cst_28 = arith.constant 1.000000e+00 : f32
    %83 = vector.broadcast %cst_28 : f32 to vector<8x32xf32>
    %84 = arith.addf %83, %82 : vector<8x32xf32>
    %85 = arith.divf %83, %84 : vector<8x32xf32>
    %86 = arith.mulf %77, %50 : vector<8x32xf32>
    %87 = arith.mulf %71, %79 : vector<8x32xf32>
    %88 = arith.addf %86, %87 : vector<8x32xf32>
    %89 = math.tanh %88 : vector<8x32xf32>
    %90 = arith.mulf %85, %89 : vector<8x32xf32>
    %91 = vector.extract_strided_slice %90 {offsets = [0, 0], sizes = [4, 32], strides = [1, 1]} : vector<8x32xf32> to vector<4x32xf32>
    %c4 = arith.constant 4 : index
    %c0_29 = arith.constant 0 : index
    %92 = vector.load %arg19[%c4, %c0_29] : memref<32x64xf32, #tpu.memory_space<vmem>>, vector<4x32xf32>
    tpu.vector_store %arg19[%c4, %c0_29], %91 {strides = array<i32>} : memref<32x64xf32, #tpu.memory_space<vmem>>, vector<4x32xf32>,
    %93 = vector.extract_strided_slice %90 {offsets = [4, 0], sizes = [4, 32], strides = [1, 1]} : vector<8x32xf32> to vector<4x32xf32>
    %c24 = arith.constant 24 : index
    %c32_30 = arith.constant 32 : index
    %94 = vector.load %arg19[%c24, %c32_30] : memref<32x64xf32, #tpu.memory_space<vmem>>, vector<4x32xf32>
    tpu.vector_store %arg19[%c24, %c32_30], %93 {strides = array<i32>} : memref<32x64xf32, #tpu.memory_space<vmem>>, vector<4x32xf32>,
    %95 = vector.extract_strided_slice %15 {offsets = [8, 0], sizes = [4, 128], strides = [1, 1]} : vector<32x128xf32> to vector<4x128xf32>
    %96 = vector.extract_strided_slice %90 {offsets = [0, 0], sizes = [4, 32], strides = [1, 1]} : vector<8x32xf32> to vector<4x32xf32>
    %cst_31 = arith.constant dense<0.000000e+00> : vector<4x128xf32>
    %97 = tpu.matmul %96, %13, %cst_31 {dimension_numbers = #tpu.dot_dimension_numbers<[1], [0], [0], [1], [0, 0, 1, 1], [], []>} : vector<4x32xf32>, vector<32x128xf32>, vector<4x128xf32> -> vector<4x128xf32>
    %98 = arith.addf %95, %97 : vector<4x128xf32>
    %99 = vector.extract_strided_slice %16 {offsets = [20, 0], sizes = [4, 128], strides = [1, 1]} : vector<32x128xf32> to vector<4x128xf32>
    %100 = vector.extract_strided_slice %90 {offsets = [4, 0], sizes = [4, 32], strides = [1, 1]} : vector<8x32xf32> to vector<4x32xf32>
    %cst_32 = arith.constant dense<0.000000e+00> : vector<4x128xf32>
    %101 = tpu.matmul %100, %14, %cst_32 {dimension_numbers = #tpu.dot_dimension_numbers<[1], [0], [0], [1], [0, 0, 1, 1], [], []>} : vector<4x32xf32>, vector<32x128xf32>, vector<4x128xf32> -> vector<4x128xf32>
    %102 = arith.addf %99, %101 : vector<4x128xf32>
    %103 = tpu.concatenate %98, %102 in 0 : vector<4x128xf32>, vector<4x128xf32> -> vector<8x128xf32>
    %104 = vector.extract_strided_slice %103 {offsets = [0, 0], sizes = [8, 32], strides = [1, 1]} : vector<8x128xf32> to vector<8x32xf32>
    %105 = arith.negf %104 : vector<8x32xf32>
    %106 = math.exp %105 : vector<8x32xf32>
    %cst_33 = arith.constant 1.000000e+00 : f32
    %107 = vector.broadcast %cst_33 : f32 to vector<8x32xf32>
    %108 = arith.addf %107, %106 : vector<8x32xf32>
    %109 = arith.divf %107, %108 : vector<8x32xf32>
    %110 = vector.extract_strided_slice %103 {offsets = [0, 32], sizes = [8, 32], strides = [1, 1]} : vector<8x128xf32> to vector<8x32xf32>
    %111 = arith.negf %110 : vector<8x32xf32>
    %112 = math.exp %111 : vector<8x32xf32>
    %cst_34 = arith.constant 1.000000e+00 : f32
    %113 = vector.broadcast %cst_34 : f32 to vector<8x32xf32>
    %114 = arith.addf %113, %112 : vector<8x32xf32>
    %115 = arith.divf %113, %114 : vector<8x32xf32>
    %116 = vector.extract_strided_slice %103 {offsets = [0, 64], sizes = [8, 32], strides = [1, 1]} : vector<8x128xf32> to vector<8x32xf32>
    %117 = math.tanh %116 : vector<8x32xf32>
    %118 = vector.extract_strided_slice %103 {offsets = [0, 96], sizes = [8, 32], strides = [1, 1]} : vector<8x128xf32> to vector<8x32xf32>
    %119 = arith.negf %118 : vector<8x32xf32>
    %120 = math.exp %119 : vector<8x32xf32>
    %cst_35 = arith.constant 1.000000e+00 : f32
    %121 = vector.broadcast %cst_35 : f32 to vector<8x32xf32>
    %122 = arith.addf %121, %120 : vector<8x32xf32>
    %123 = arith.divf %121, %122 : vector<8x32xf32>
    %124 = arith.mulf %115, %88 : vector<8x32xf32>
    %125 = arith.mulf %109, %117 : vector<8x32xf32>
    %126 = arith.addf %124, %125 : vector<8x32xf32>
    %127 = math.tanh %126 : vector<8x32xf32>
    %128 = arith.mulf %123, %127 : vector<8x32xf32>
    %129 = vector.extract_strided_slice %128 {offsets = [0, 0], sizes = [4, 32], strides = [1, 1]} : vector<8x32xf32> to vector<4x32xf32>
    %c8 = arith.constant 8 : index
    %c0_36 = arith.constant 0 : index
    %130 = vector.load %arg19[%c8, %c0_36] : memref<32x64xf32, #tpu.memory_space<vmem>>, vector<4x32xf32>
    tpu.vector_store %arg19[%c8, %c0_36], %129 {strides = array<i32>} : memref<32x64xf32, #tpu.memory_space<vmem>>, vector<4x32xf32>,
    %131 = vector.extract_strided_slice %128 {offsets = [4, 0], sizes = [4, 32], strides = [1, 1]} : vector<8x32xf32> to vector<4x32xf32>
    %c20 = arith.constant 20 : index
    %c32_37 = arith.constant 32 : index
    %132 = vector.load %arg19[%c20, %c32_37] : memref<32x64xf32, #tpu.memory_space<vmem>>, vector<4x32xf32>
    tpu.vector_store %arg19[%c20, %c32_37], %131 {strides = array<i32>} : memref<32x64xf32, #tpu.memory_space<vmem>>, vector<4x32xf32>,
    %133 = vector.extract_strided_slice %15 {offsets = [12, 0], sizes = [4, 128], strides = [1, 1]} : vector<32x128xf32> to vector<4x128xf32>
    %134 = vector.extract_strided_slice %128 {offsets = [0, 0], sizes = [4, 32], strides = [1, 1]} : vector<8x32xf32> to vector<4x32xf32>
    %cst_38 = arith.constant dense<0.000000e+00> : vector<4x128xf32>
    %135 = tpu.matmul %134, %13, %cst_38 {dimension_numbers = #tpu.dot_dimension_numbers<[1], [0], [0], [1], [0, 0, 1, 1], [], []>} : vector<4x32xf32>, vector<32x128xf32>, vector<4x128xf32> -> vector<4x128xf32>
    %136 = arith.addf %133, %135 : vector<4x128xf32>
    %137 = vector.extract_strided_slice %16 {offsets = [16, 0], sizes = [4, 128], strides = [1, 1]} : vector<32x128xf32> to vector<4x128xf32>
    %138 = vector.extract_strided_slice %128 {offsets = [4, 0], sizes = [4, 32], strides = [1, 1]} : vector<8x32xf32> to vector<4x32xf32>
    %cst_39 = arith.constant dense<0.000000e+00> : vector<4x128xf32>
    %139 = tpu.matmul %138, %14, %cst_39 {dimension_numbers = #tpu.dot_dimension_numbers<[1], [0], [0], [1], [0, 0, 1, 1], [], []>} : vector<4x32xf32>, vector<32x128xf32>, vector<4x128xf32> -> vector<4x128xf32>
    %140 = arith.addf %137, %139 : vector<4x128xf32>
    %141 = tpu.concatenate %136, %140 in 0 : vector<4x128xf32>, vector<4x128xf32> -> vector<8x128xf32>
    %142 = vector.extract_strided_slice %141 {offsets = [0, 0], sizes = [8, 32], strides = [1, 1]} : vector<8x128xf32> to vector<8x32xf32>
    %143 = arith.negf %142 : vector<8x32xf32>
    %144 = math.exp %143 : vector<8x32xf32>
    %cst_40 = arith.constant 1.000000e+00 : f32
    %145 = vector.broadcast %cst_40 : f32 to vector<8x32xf32>
    %146 = arith.addf %145, %144 : vector<8x32xf32>
    %147 = arith.divf %145, %146 : vector<8x32xf32>
    %148 = vector.extract_strided_slice %141 {offsets = [0, 32], sizes = [8, 32], strides = [1, 1]} : vector<8x128xf32> to vector<8x32xf32>
    %149 = arith.negf %148 : vector<8x32xf32>
    %150 = math.exp %149 : vector<8x32xf32>
    %cst_41 = arith.constant 1.000000e+00 : f32
    %151 = vector.broadcast %cst_41 : f32 to vector<8x32xf32>
    %152 = arith.addf %151, %150 : vector<8x32xf32>
    %153 = arith.divf %151, %152 : vector<8x32xf32>
    %154 = vector.extract_strided_slice %141 {offsets = [0, 64], sizes = [8, 32], strides = [1, 1]} : vector<8x128xf32> to vector<8x32xf32>
    %155 = math.tanh %154 : vector<8x32xf32>
    %156 = vector.extract_strided_slice %141 {offsets = [0, 96], sizes = [8, 32], strides = [1, 1]} : vector<8x128xf32> to vector<8x32xf32>
    %157 = arith.negf %156 : vector<8x32xf32>
    %158 = math.exp %157 : vector<8x32xf32>
    %cst_42 = arith.constant 1.000000e+00 : f32
    %159 = vector.broadcast %cst_42 : f32 to vector<8x32xf32>
    %160 = arith.addf %159, %158 : vector<8x32xf32>
    %161 = arith.divf %159, %160 : vector<8x32xf32>
    %162 = arith.mulf %153, %126 : vector<8x32xf32>
    %163 = arith.mulf %147, %155 : vector<8x32xf32>
    %164 = arith.addf %162, %163 : vector<8x32xf32>
    %165 = math.tanh %164 : vector<8x32xf32>
    %166 = arith.mulf %161, %165 : vector<8x32xf32>
    %167 = vector.extract_strided_slice %166 {offsets = [0, 0], sizes = [4, 32], strides = [1, 1]} : vector<8x32xf32> to vector<4x32xf32>
    %c12 = arith.constant 12 : index
    %c0_43 = arith.constant 0 : index
    %168 = vector.load %arg19[%c12, %c0_43] : memref<32x64xf32, #tpu.memory_space<vmem>>, vector<4x32xf32>
    tpu.vector_store %arg19[%c12, %c0_43], %167 {strides = array<i32>} : memref<32x64xf32, #tpu.memory_space<vmem>>, vector<4x32xf32>,
    %169 = vector.extract_strided_slice %166 {offsets = [4, 0], sizes = [4, 32], strides = [1, 1]} : vector<8x32xf32> to vector<4x32xf32>
    %c16 = arith.constant 16 : index
    %c32_44 = arith.constant 32 : index
    %170 = vector.load %arg19[%c16, %c32_44] : memref<32x64xf32, #tpu.memory_space<vmem>>, vector<4x32xf32>
    tpu.vector_store %arg19[%c16, %c32_44], %169 {strides = array<i32>} : memref<32x64xf32, #tpu.memory_space<vmem>>, vector<4x32xf32>,
    %171 = vector.extract_strided_slice %15 {offsets = [16, 0], sizes = [4, 128], strides = [1, 1]} : vector<32x128xf32> to vector<4x128xf32>
    %172 = vector.extract_strided_slice %166 {offsets = [0, 0], sizes = [4, 32], strides = [1, 1]} : vector<8x32xf32> to vector<4x32xf32>
    %cst_45 = arith.constant dense<0.000000e+00> : vector<4x128xf32>
    %173 = tpu.matmul %172, %13, %cst_45 {dimension_numbers = #tpu.dot_dimension_numbers<[1], [0], [0], [1], [0, 0, 1, 1], [], []>} : vector<4x32xf32>, vector<32x128xf32>, vector<4x128xf32> -> vector<4x128xf32>
    %174 = arith.addf %171, %173 : vector<4x128xf32>
    %175 = vector.extract_strided_slice %16 {offsets = [12, 0], sizes = [4, 128], strides = [1, 1]} : vector<32x128xf32> to vector<4x128xf32>
    %176 = vector.extract_strided_slice %166 {offsets = [4, 0], sizes = [4, 32], strides = [1, 1]} : vector<8x32xf32> to vector<4x32xf32>
    %cst_46 = arith.constant dense<0.000000e+00> : vector<4x128xf32>
    %177 = tpu.matmul %176, %14, %cst_46 {dimension_numbers = #tpu.dot_dimension_numbers<[1], [0], [0], [1], [0, 0, 1, 1], [], []>} : vector<4x32xf32>, vector<32x128xf32>, vector<4x128xf32> -> vector<4x128xf32>
    %178 = arith.addf %175, %177 : vector<4x128xf32>
    %179 = tpu.concatenate %174, %178 in 0 : vector<4x128xf32>, vector<4x128xf32> -> vector<8x128xf32>
    %180 = vector.extract_strided_slice %179 {offsets = [0, 0], sizes = [8, 32], strides = [1, 1]} : vector<8x128xf32> to vector<8x32xf32>
    %181 = arith.negf %180 : vector<8x32xf32>
    %182 = math.exp %181 : vector<8x32xf32>
    %cst_47 = arith.constant 1.000000e+00 : f32
    %183 = vector.broadcast %cst_47 : f32 to vector<8x32xf32>
    %184 = arith.addf %183, %182 : vector<8x32xf32>
    %185 = arith.divf %183, %184 : vector<8x32xf32>
    %186 = vector.extract_strided_slice %179 {offsets = [0, 32], sizes = [8, 32], strides = [1, 1]} : vector<8x128xf32> to vector<8x32xf32>
    %187 = arith.negf %186 : vector<8x32xf32>
    %188 = math.exp %187 : vector<8x32xf32>
    %cst_48 = arith.constant 1.000000e+00 : f32
    %189 = vector.broadcast %cst_48 : f32 to vector<8x32xf32>
    %190 = arith.addf %189, %188 : vector<8x32xf32>
    %191 = arith.divf %189, %190 : vector<8x32xf32>
    %192 = vector.extract_strided_slice %179 {offsets = [0, 64], sizes = [8, 32], strides = [1, 1]} : vector<8x128xf32> to vector<8x32xf32>
    %193 = math.tanh %192 : vector<8x32xf32>
    %194 = vector.extract_strided_slice %179 {offsets = [0, 96], sizes = [8, 32], strides = [1, 1]} : vector<8x128xf32> to vector<8x32xf32>
    %195 = arith.negf %194 : vector<8x32xf32>
    %196 = math.exp %195 : vector<8x32xf32>
    %cst_49 = arith.constant 1.000000e+00 : f32
    %197 = vector.broadcast %cst_49 : f32 to vector<8x32xf32>
    %198 = arith.addf %197, %196 : vector<8x32xf32>
    %199 = arith.divf %197, %198 : vector<8x32xf32>
    %200 = arith.mulf %191, %164 : vector<8x32xf32>
    %201 = arith.mulf %185, %193 : vector<8x32xf32>
    %202 = arith.addf %200, %201 : vector<8x32xf32>
    %203 = math.tanh %202 : vector<8x32xf32>
    %204 = arith.mulf %199, %203 : vector<8x32xf32>
    %205 = vector.extract_strided_slice %204 {offsets = [0, 0], sizes = [4, 32], strides = [1, 1]} : vector<8x32xf32> to vector<4x32xf32>
    %c16_50 = arith.constant 16 : index
    %c0_51 = arith.constant 0 : index
    %206 = vector.load %arg19[%c16_50, %c0_51] : memref<32x64xf32, #tpu.memory_space<vmem>>, vector<4x32xf32>
    tpu.vector_store %arg19[%c16_50, %c0_51], %205 {strides = array<i32>} : memref<32x64xf32, #tpu.memory_space<vmem>>, vector<4x32xf32>,
    %207 = vector.extract_strided_slice %204 {offsets = [4, 0], sizes = [4, 32], strides = [1, 1]} : vector<8x32xf32> to vector<4x32xf32>
    %c12_52 = arith.constant 12 : index
    %c32_53 = arith.constant 32 : index
    %208 = vector.load %arg19[%c12_52, %c32_53] : memref<32x64xf32, #tpu.memory_space<vmem>>, vector<4x32xf32>
    tpu.vector_store %arg19[%c12_52, %c32_53], %207 {strides = array<i32>} : memref<32x64xf32, #tpu.memory_space<vmem>>, vector<4x32xf32>,
    %209 = vector.extract_strided_slice %15 {offsets = [20, 0], sizes = [4, 128], strides = [1, 1]} : vector<32x128xf32> to vector<4x128xf32>
    %210 = vector.extract_strided_slice %204 {offsets = [0, 0], sizes = [4, 32], strides = [1, 1]} : vector<8x32xf32> to vector<4x32xf32>
    %cst_54 = arith.constant dense<0.000000e+00> : vector<4x128xf32>
    %211 = tpu.matmul %210, %13, %cst_54 {dimension_numbers = #tpu.dot_dimension_numbers<[1], [0], [0], [1], [0, 0, 1, 1], [], []>} : vector<4x32xf32>, vector<32x128xf32>, vector<4x128xf32> -> vector<4x128xf32>
    %212 = arith.addf %209, %211 : vector<4x128xf32>
    %213 = vector.extract_strided_slice %16 {offsets = [8, 0], sizes = [4, 128], strides = [1, 1]} : vector<32x128xf32> to vector<4x128xf32>
    %214 = vector.extract_strided_slice %204 {offsets = [4, 0], sizes = [4, 32], strides = [1, 1]} : vector<8x32xf32> to vector<4x32xf32>
    %cst_55 = arith.constant dense<0.000000e+00> : vector<4x128xf32>
    %215 = tpu.matmul %214, %14, %cst_55 {dimension_numbers = #tpu.dot_dimension_numbers<[1], [0], [0], [1], [0, 0, 1, 1], [], []>} : vector<4x32xf32>, vector<32x128xf32>, vector<4x128xf32> -> vector<4x128xf32>
    %216 = arith.addf %213, %215 : vector<4x128xf32>
    %217 = tpu.concatenate %212, %216 in 0 : vector<4x128xf32>, vector<4x128xf32> -> vector<8x128xf32>
    %218 = vector.extract_strided_slice %217 {offsets = [0, 0], sizes = [8, 32], strides = [1, 1]} : vector<8x128xf32> to vector<8x32xf32>
    %219 = arith.negf %218 : vector<8x32xf32>
    %220 = math.exp %219 : vector<8x32xf32>
    %cst_56 = arith.constant 1.000000e+00 : f32
    %221 = vector.broadcast %cst_56 : f32 to vector<8x32xf32>
    %222 = arith.addf %221, %220 : vector<8x32xf32>
    %223 = arith.divf %221, %222 : vector<8x32xf32>
    %224 = vector.extract_strided_slice %217 {offsets = [0, 32], sizes = [8, 32], strides = [1, 1]} : vector<8x128xf32> to vector<8x32xf32>
    %225 = arith.negf %224 : vector<8x32xf32>
    %226 = math.exp %225 : vector<8x32xf32>
    %cst_57 = arith.constant 1.000000e+00 : f32
    %227 = vector.broadcast %cst_57 : f32 to vector<8x32xf32>
    %228 = arith.addf %227, %226 : vector<8x32xf32>
    %229 = arith.divf %227, %228 : vector<8x32xf32>
    %230 = vector.extract_strided_slice %217 {offsets = [0, 64], sizes = [8, 32], strides = [1, 1]} : vector<8x128xf32> to vector<8x32xf32>
    %231 = math.tanh %230 : vector<8x32xf32>
    %232 = vector.extract_strided_slice %217 {offsets = [0, 96], sizes = [8, 32], strides = [1, 1]} : vector<8x128xf32> to vector<8x32xf32>
    %233 = arith.negf %232 : vector<8x32xf32>
    %234 = math.exp %233 : vector<8x32xf32>
    %cst_58 = arith.constant 1.000000e+00 : f32
    %235 = vector.broadcast %cst_58 : f32 to vector<8x32xf32>
    %236 = arith.addf %235, %234 : vector<8x32xf32>
    %237 = arith.divf %235, %236 : vector<8x32xf32>
    %238 = arith.mulf %229, %202 : vector<8x32xf32>
    %239 = arith.mulf %223, %231 : vector<8x32xf32>
    %240 = arith.addf %238, %239 : vector<8x32xf32>
    %241 = math.tanh %240 : vector<8x32xf32>
    %242 = arith.mulf %237, %241 : vector<8x32xf32>
    %243 = vector.extract_strided_slice %242 {offsets = [0, 0], sizes = [4, 32], strides = [1, 1]} : vector<8x32xf32> to vector<4x32xf32>
    %c20_59 = arith.constant 20 : index
    %c0_60 = arith.constant 0 : index
    %244 = vector.load %arg19[%c20_59, %c0_60] : memref<32x64xf32, #tpu.memory_space<vmem>>, vector<4x32xf32>
    tpu.vector_store %arg19[%c20_59, %c0_60], %243 {strides = array<i32>} : memref<32x64xf32, #tpu.memory_space<vmem>>, vector<4x32xf32>,
    %245 = vector.extract_strided_slice %242 {offsets = [4, 0], sizes = [4, 32], strides = [1, 1]} : vector<8x32xf32> to vector<4x32xf32>
    %c8_61 = arith.constant 8 : index
    %c32_62 = arith.constant 32 : index
    %246 = vector.load %arg19[%c8_61, %c32_62] : memref<32x64xf32, #tpu.memory_space<vmem>>, vector<4x32xf32>
    tpu.vector_store %arg19[%c8_61, %c32_62], %245 {strides = array<i32>} : memref<32x64xf32, #tpu.memory_space<vmem>>, vector<4x32xf32>,
    %247 = vector.extract_strided_slice %15 {offsets = [24, 0], sizes = [4, 128], strides = [1, 1]} : vector<32x128xf32> to vector<4x128xf32>
    %248 = vector.extract_strided_slice %242 {offsets = [0, 0], sizes = [4, 32], strides = [1, 1]} : vector<8x32xf32> to vector<4x32xf32>
    %cst_63 = arith.constant dense<0.000000e+00> : vector<4x128xf32>
    %249 = tpu.matmul %248, %13, %cst_63 {dimension_numbers = #tpu.dot_dimension_numbers<[1], [0], [0], [1], [0, 0, 1, 1], [], []>} : vector<4x32xf32>, vector<32x128xf32>, vector<4x128xf32> -> vector<4x128xf32>
    %250 = arith.addf %247, %249 : vector<4x128xf32>
    %251 = vector.extract_strided_slice %16 {offsets = [4, 0], sizes = [4, 128], strides = [1, 1]} : vector<32x128xf32> to vector<4x128xf32>
    %252 = vector.extract_strided_slice %242 {offsets = [4, 0], sizes = [4, 32], strides = [1, 1]} : vector<8x32xf32> to vector<4x32xf32>
    %cst_64 = arith.constant dense<0.000000e+00> : vector<4x128xf32>
    %253 = tpu.matmul %252, %14, %cst_64 {dimension_numbers = #tpu.dot_dimension_numbers<[1], [0], [0], [1], [0, 0, 1, 1], [], []>} : vector<4x32xf32>, vector<32x128xf32>, vector<4x128xf32> -> vector<4x128xf32>
    %254 = arith.addf %251, %253 : vector<4x128xf32>
    %255 = tpu.concatenate %250, %254 in 0 : vector<4x128xf32>, vector<4x128xf32> -> vector<8x128xf32>
    %256 = vector.extract_strided_slice %255 {offsets = [0, 0], sizes = [8, 32], strides = [1, 1]} : vector<8x128xf32> to vector<8x32xf32>
    %257 = arith.negf %256 : vector<8x32xf32>
    %258 = math.exp %257 : vector<8x32xf32>
    %cst_65 = arith.constant 1.000000e+00 : f32
    %259 = vector.broadcast %cst_65 : f32 to vector<8x32xf32>
    %260 = arith.addf %259, %258 : vector<8x32xf32>
    %261 = arith.divf %259, %260 : vector<8x32xf32>
    %262 = vector.extract_strided_slice %255 {offsets = [0, 32], sizes = [8, 32], strides = [1, 1]} : vector<8x128xf32> to vector<8x32xf32>
    %263 = arith.negf %262 : vector<8x32xf32>
    %264 = math.exp %263 : vector<8x32xf32>
    %cst_66 = arith.constant 1.000000e+00 : f32
    %265 = vector.broadcast %cst_66 : f32 to vector<8x32xf32>
    %266 = arith.addf %265, %264 : vector<8x32xf32>
    %267 = arith.divf %265, %266 : vector<8x32xf32>
    %268 = vector.extract_strided_slice %255 {offsets = [0, 64], sizes = [8, 32], strides = [1, 1]} : vector<8x128xf32> to vector<8x32xf32>
    %269 = math.tanh %268 : vector<8x32xf32>
    %270 = vector.extract_strided_slice %255 {offsets = [0, 96], sizes = [8, 32], strides = [1, 1]} : vector<8x128xf32> to vector<8x32xf32>
    %271 = arith.negf %270 : vector<8x32xf32>
    %272 = math.exp %271 : vector<8x32xf32>
    %cst_67 = arith.constant 1.000000e+00 : f32
    %273 = vector.broadcast %cst_67 : f32 to vector<8x32xf32>
    %274 = arith.addf %273, %272 : vector<8x32xf32>
    %275 = arith.divf %273, %274 : vector<8x32xf32>
    %276 = arith.mulf %267, %240 : vector<8x32xf32>
    %277 = arith.mulf %261, %269 : vector<8x32xf32>
    %278 = arith.addf %276, %277 : vector<8x32xf32>
    %279 = math.tanh %278 : vector<8x32xf32>
    %280 = arith.mulf %275, %279 : vector<8x32xf32>
    %281 = vector.extract_strided_slice %280 {offsets = [0, 0], sizes = [4, 32], strides = [1, 1]} : vector<8x32xf32> to vector<4x32xf32>
    %c24_68 = arith.constant 24 : index
    %c0_69 = arith.constant 0 : index
    %282 = vector.load %arg19[%c24_68, %c0_69] : memref<32x64xf32, #tpu.memory_space<vmem>>, vector<4x32xf32>
    tpu.vector_store %arg19[%c24_68, %c0_69], %281 {strides = array<i32>} : memref<32x64xf32, #tpu.memory_space<vmem>>, vector<4x32xf32>,
    %283 = vector.extract_strided_slice %280 {offsets = [4, 0], sizes = [4, 32], strides = [1, 1]} : vector<8x32xf32> to vector<4x32xf32>
    %c4_70 = arith.constant 4 : index
    %c32_71 = arith.constant 32 : index
    %284 = vector.load %arg19[%c4_70, %c32_71] : memref<32x64xf32, #tpu.memory_space<vmem>>, vector<4x32xf32>
    tpu.vector_store %arg19[%c4_70, %c32_71], %283 {strides = array<i32>} : memref<32x64xf32, #tpu.memory_space<vmem>>, vector<4x32xf32>,
    %285 = vector.extract_strided_slice %15 {offsets = [28, 0], sizes = [4, 128], strides = [1, 1]} : vector<32x128xf32> to vector<4x128xf32>
    %286 = vector.extract_strided_slice %280 {offsets = [0, 0], sizes = [4, 32], strides = [1, 1]} : vector<8x32xf32> to vector<4x32xf32>
    %cst_72 = arith.constant dense<0.000000e+00> : vector<4x128xf32>
    %287 = tpu.matmul %286, %13, %cst_72 {dimension_numbers = #tpu.dot_dimension_numbers<[1], [0], [0], [1], [0, 0, 1, 1], [], []>} : vector<4x32xf32>, vector<32x128xf32>, vector<4x128xf32> -> vector<4x128xf32>
    %288 = arith.addf %285, %287 : vector<4x128xf32>
    %289 = vector.extract_strided_slice %16 {offsets = [0, 0], sizes = [4, 128], strides = [1, 1]} : vector<32x128xf32> to vector<4x128xf32>
    %290 = vector.extract_strided_slice %280 {offsets = [4, 0], sizes = [4, 32], strides = [1, 1]} : vector<8x32xf32> to vector<4x32xf32>
    %cst_73 = arith.constant dense<0.000000e+00> : vector<4x128xf32>
    %291 = tpu.matmul %290, %14, %cst_73 {dimension_numbers = #tpu.dot_dimension_numbers<[1], [0], [0], [1], [0, 0, 1, 1], [], []>} : vector<4x32xf32>, vector<32x128xf32>, vector<4x128xf32> -> vector<4x128xf32>
    %292 = arith.addf %289, %291 : vector<4x128xf32>
    %293 = tpu.concatenate %288, %292 in 0 : vector<4x128xf32>, vector<4x128xf32> -> vector<8x128xf32>
    %294 = vector.extract_strided_slice %293 {offsets = [0, 0], sizes = [8, 32], strides = [1, 1]} : vector<8x128xf32> to vector<8x32xf32>
    %295 = arith.negf %294 : vector<8x32xf32>
    %296 = math.exp %295 : vector<8x32xf32>
    %cst_74 = arith.constant 1.000000e+00 : f32
    %297 = vector.broadcast %cst_74 : f32 to vector<8x32xf32>
    %298 = arith.addf %297, %296 : vector<8x32xf32>
    %299 = arith.divf %297, %298 : vector<8x32xf32>
    %300 = vector.extract_strided_slice %293 {offsets = [0, 32], sizes = [8, 32], strides = [1, 1]} : vector<8x128xf32> to vector<8x32xf32>
    %301 = arith.negf %300 : vector<8x32xf32>
    %302 = math.exp %301 : vector<8x32xf32>
    %cst_75 = arith.constant 1.000000e+00 : f32
    %303 = vector.broadcast %cst_75 : f32 to vector<8x32xf32>
    %304 = arith.addf %303, %302 : vector<8x32xf32>
    %305 = arith.divf %303, %304 : vector<8x32xf32>
    %306 = vector.extract_strided_slice %293 {offsets = [0, 64], sizes = [8, 32], strides = [1, 1]} : vector<8x128xf32> to vector<8x32xf32>
    %307 = math.tanh %306 : vector<8x32xf32>
    %308 = vector.extract_strided_slice %293 {offsets = [0, 96], sizes = [8, 32], strides = [1, 1]} : vector<8x128xf32> to vector<8x32xf32>
    %309 = arith.negf %308 : vector<8x32xf32>
    %310 = math.exp %309 : vector<8x32xf32>
    %cst_76 = arith.constant 1.000000e+00 : f32
    %311 = vector.broadcast %cst_76 : f32 to vector<8x32xf32>
    %312 = arith.addf %311, %310 : vector<8x32xf32>
    %313 = arith.divf %311, %312 : vector<8x32xf32>
    %314 = arith.mulf %305, %278 : vector<8x32xf32>
    %315 = arith.mulf %299, %307 : vector<8x32xf32>
    %316 = arith.addf %314, %315 : vector<8x32xf32>
    %317 = math.tanh %316 : vector<8x32xf32>
    %318 = arith.mulf %313, %317 : vector<8x32xf32>
    %319 = vector.extract_strided_slice %318 {offsets = [0, 0], sizes = [4, 32], strides = [1, 1]} : vector<8x32xf32> to vector<4x32xf32>
    %c28_77 = arith.constant 28 : index
    %c0_78 = arith.constant 0 : index
    %320 = vector.load %arg19[%c28_77, %c0_78] : memref<32x64xf32, #tpu.memory_space<vmem>>, vector<4x32xf32>
    tpu.vector_store %arg19[%c28_77, %c0_78], %319 {strides = array<i32>} : memref<32x64xf32, #tpu.memory_space<vmem>>, vector<4x32xf32>,
    %321 = vector.extract_strided_slice %318 {offsets = [4, 0], sizes = [4, 32], strides = [1, 1]} : vector<8x32xf32> to vector<4x32xf32>
    %c0_79 = arith.constant 0 : index
    %c32_80 = arith.constant 32 : index
    %322 = vector.load %arg19[%c0_79, %c32_80] : memref<32x64xf32, #tpu.memory_space<vmem>>, vector<4x32xf32>
    tpu.vector_store %arg19[%c0_79, %c32_80], %321 {strides = array<i32>} : memref<32x64xf32, #tpu.memory_space<vmem>>, vector<4x32xf32>,
    %c0_81 = arith.constant 0 : index
    %c0_82 = arith.constant 0 : index
    %323 = vector.load %arg19[%c0_81, %c0_82] : memref<32x64xf32, #tpu.memory_space<vmem>>, vector<32x64xf32>
    %c0_83 = arith.constant 0 : index
    %c0_84 = arith.constant 0 : index
    %324 = vector.load %arg8[%c0_83, %c0_84] : memref<64x256xf32, #tpu.memory_space<vmem>>, vector<64x256xf32>
    %cst_85 = arith.constant dense<0.000000e+00> : vector<32x256xf32>
    %325 = tpu.matmul %323, %324, %cst_85 {dimension_numbers = #tpu.dot_dimension_numbers<[1], [0], [0], [1], [0, 0, 1, 1], [], []>} : vector<32x64xf32>, vector<64x256xf32>, vector<32x256xf32> -> vector<32x256xf32>
    %c0_86 = arith.constant 0 : index
    %c0_87 = arith.constant 0 : index
    %326 = vector.load %arg11[%c0_86, %c0_87] : memref<1x256xf32, #tpu.memory_space<vmem>>, vector<1x256xf32>
    %327 = vector.broadcast %326 : vector<1x256xf32> to vector<32x256xf32>
    %328 = arith.addf %325, %327 : vector<32x256xf32>
    %c0_88 = arith.constant 0 : index
    %c0_89 = arith.constant 0 : index
    %329 = vector.load %arg9[%c0_88, %c0_89] : memref<32x128xf32, #tpu.memory_space<vmem>>, vector<32x128xf32>
    %c0_90 = arith.constant 0 : index
    %c0_91 = arith.constant 0 : index
    %330 = vector.load %arg10[%c0_90, %c0_91] : memref<32x128xf32, #tpu.memory_space<vmem>>, vector<32x128xf32>
    %331 = vector.extract_strided_slice %328 {offsets = [0, 0], sizes = [32, 128], strides = [1, 1]} : vector<32x256xf32> to vector<32x128xf32>
    %332 = vector.extract_strided_slice %328 {offsets = [0, 128], sizes = [32, 128], strides = [1, 1]} : vector<32x256xf32> to vector<32x128xf32>
    %cst_92 = arith.constant 0.000000e+00 : f32
    %333 = vector.broadcast %cst_92 : f32 to vector<8x32xf32>
    %cst_93 = arith.constant 0.000000e+00 : f32
    %334 = vector.broadcast %cst_93 : f32 to vector<8x32xf32>
    %335 = vector.extract_strided_slice %331 {offsets = [0, 0], sizes = [4, 128], strides = [1, 1]} : vector<32x128xf32> to vector<4x128xf32>
    %336 = vector.extract_strided_slice %333 {offsets = [0, 0], sizes = [4, 32], strides = [1, 1]} : vector<8x32xf32> to vector<4x32xf32>
    %cst_94 = arith.constant dense<0.000000e+00> : vector<4x128xf32>
    %337 = tpu.matmul %336, %329, %cst_94 {dimension_numbers = #tpu.dot_dimension_numbers<[1], [0], [0], [1], [0, 0, 1, 1], [], []>} : vector<4x32xf32>, vector<32x128xf32>, vector<4x128xf32> -> vector<4x128xf32>
    %338 = arith.addf %335, %337 : vector<4x128xf32>
    %339 = vector.extract_strided_slice %332 {offsets = [28, 0], sizes = [4, 128], strides = [1, 1]} : vector<32x128xf32> to vector<4x128xf32>
    %340 = vector.extract_strided_slice %333 {offsets = [4, 0], sizes = [4, 32], strides = [1, 1]} : vector<8x32xf32> to vector<4x32xf32>
    %cst_95 = arith.constant dense<0.000000e+00> : vector<4x128xf32>
    %341 = tpu.matmul %340, %330, %cst_95 {dimension_numbers = #tpu.dot_dimension_numbers<[1], [0], [0], [1], [0, 0, 1, 1], [], []>} : vector<4x32xf32>, vector<32x128xf32>, vector<4x128xf32> -> vector<4x128xf32>
    %342 = arith.addf %339, %341 : vector<4x128xf32>
    %343 = tpu.concatenate %338, %342 in 0 : vector<4x128xf32>, vector<4x128xf32> -> vector<8x128xf32>
    %344 = vector.extract_strided_slice %343 {offsets = [0, 0], sizes = [8, 32], strides = [1, 1]} : vector<8x128xf32> to vector<8x32xf32>
    %345 = arith.negf %344 : vector<8x32xf32>
    %346 = math.exp %345 : vector<8x32xf32>
    %cst_96 = arith.constant 1.000000e+00 : f32
    %347 = vector.broadcast %cst_96 : f32 to vector<8x32xf32>
    %348 = arith.addf %347, %346 : vector<8x32xf32>
    %349 = arith.divf %347, %348 : vector<8x32xf32>
    %350 = vector.extract_strided_slice %343 {offsets = [0, 32], sizes = [8, 32], strides = [1, 1]} : vector<8x128xf32> to vector<8x32xf32>
    %351 = arith.negf %350 : vector<8x32xf32>
    %352 = math.exp %351 : vector<8x32xf32>
    %cst_97 = arith.constant 1.000000e+00 : f32
    %353 = vector.broadcast %cst_97 : f32 to vector<8x32xf32>
    %354 = arith.addf %353, %352 : vector<8x32xf32>
    %355 = arith.divf %353, %354 : vector<8x32xf32>
    %356 = vector.extract_strided_slice %343 {offsets = [0, 64], sizes = [8, 32], strides = [1, 1]} : vector<8x128xf32> to vector<8x32xf32>
    %357 = math.tanh %356 : vector<8x32xf32>
    %358 = vector.extract_strided_slice %343 {offsets = [0, 96], sizes = [8, 32], strides = [1, 1]} : vector<8x128xf32> to vector<8x32xf32>
    %359 = arith.negf %358 : vector<8x32xf32>
    %360 = math.exp %359 : vector<8x32xf32>
    %cst_98 = arith.constant 1.000000e+00 : f32
    %361 = vector.broadcast %cst_98 : f32 to vector<8x32xf32>
    %362 = arith.addf %361, %360 : vector<8x32xf32>
    %363 = arith.divf %361, %362 : vector<8x32xf32>
    %364 = arith.mulf %355, %334 : vector<8x32xf32>
    %365 = arith.mulf %349, %357 : vector<8x32xf32>
    %366 = arith.addf %364, %365 : vector<8x32xf32>
    %367 = math.tanh %366 : vector<8x32xf32>
    %368 = arith.mulf %363, %367 : vector<8x32xf32>
    %369 = vector.extract_strided_slice %331 {offsets = [4, 0], sizes = [4, 128], strides = [1, 1]} : vector<32x128xf32> to vector<4x128xf32>
    %370 = vector.extract_strided_slice %368 {offsets = [0, 0], sizes = [4, 32], strides = [1, 1]} : vector<8x32xf32> to vector<4x32xf32>
    %cst_99 = arith.constant dense<0.000000e+00> : vector<4x128xf32>
    %371 = tpu.matmul %370, %329, %cst_99 {dimension_numbers = #tpu.dot_dimension_numbers<[1], [0], [0], [1], [0, 0, 1, 1], [], []>} : vector<4x32xf32>, vector<32x128xf32>, vector<4x128xf32> -> vector<4x128xf32>
    %372 = arith.addf %369, %371 : vector<4x128xf32>
    %373 = vector.extract_strided_slice %332 {offsets = [24, 0], sizes = [4, 128], strides = [1, 1]} : vector<32x128xf32> to vector<4x128xf32>
    %374 = vector.extract_strided_slice %368 {offsets = [4, 0], sizes = [4, 32], strides = [1, 1]} : vector<8x32xf32> to vector<4x32xf32>
    %cst_100 = arith.constant dense<0.000000e+00> : vector<4x128xf32>
    %375 = tpu.matmul %374, %330, %cst_100 {dimension_numbers = #tpu.dot_dimension_numbers<[1], [0], [0], [1], [0, 0, 1, 1], [], []>} : vector<4x32xf32>, vector<32x128xf32>, vector<4x128xf32> -> vector<4x128xf32>
    %376 = arith.addf %373, %375 : vector<4x128xf32>
    %377 = tpu.concatenate %372, %376 in 0 : vector<4x128xf32>, vector<4x128xf32> -> vector<8x128xf32>
    %378 = vector.extract_strided_slice %377 {offsets = [0, 0], sizes = [8, 32], strides = [1, 1]} : vector<8x128xf32> to vector<8x32xf32>
    %379 = arith.negf %378 : vector<8x32xf32>
    %380 = math.exp %379 : vector<8x32xf32>
    %cst_101 = arith.constant 1.000000e+00 : f32
    %381 = vector.broadcast %cst_101 : f32 to vector<8x32xf32>
    %382 = arith.addf %381, %380 : vector<8x32xf32>
    %383 = arith.divf %381, %382 : vector<8x32xf32>
    %384 = vector.extract_strided_slice %377 {offsets = [0, 32], sizes = [8, 32], strides = [1, 1]} : vector<8x128xf32> to vector<8x32xf32>
    %385 = arith.negf %384 : vector<8x32xf32>
    %386 = math.exp %385 : vector<8x32xf32>
    %cst_102 = arith.constant 1.000000e+00 : f32
    %387 = vector.broadcast %cst_102 : f32 to vector<8x32xf32>
    %388 = arith.addf %387, %386 : vector<8x32xf32>
    %389 = arith.divf %387, %388 : vector<8x32xf32>
    %390 = vector.extract_strided_slice %377 {offsets = [0, 64], sizes = [8, 32], strides = [1, 1]} : vector<8x128xf32> to vector<8x32xf32>
    %391 = math.tanh %390 : vector<8x32xf32>
    %392 = vector.extract_strided_slice %377 {offsets = [0, 96], sizes = [8, 32], strides = [1, 1]} : vector<8x128xf32> to vector<8x32xf32>
    %393 = arith.negf %392 : vector<8x32xf32>
    %394 = math.exp %393 : vector<8x32xf32>
    %cst_103 = arith.constant 1.000000e+00 : f32
    %395 = vector.broadcast %cst_103 : f32 to vector<8x32xf32>
    %396 = arith.addf %395, %394 : vector<8x32xf32>
    %397 = arith.divf %395, %396 : vector<8x32xf32>
    %398 = arith.mulf %389, %366 : vector<8x32xf32>
    %399 = arith.mulf %383, %391 : vector<8x32xf32>
    %400 = arith.addf %398, %399 : vector<8x32xf32>
    %401 = math.tanh %400 : vector<8x32xf32>
    %402 = arith.mulf %397, %401 : vector<8x32xf32>
    %403 = vector.extract_strided_slice %331 {offsets = [8, 0], sizes = [4, 128], strides = [1, 1]} : vector<32x128xf32> to vector<4x128xf32>
    %404 = vector.extract_strided_slice %402 {offsets = [0, 0], sizes = [4, 32], strides = [1, 1]} : vector<8x32xf32> to vector<4x32xf32>
    %cst_104 = arith.constant dense<0.000000e+00> : vector<4x128xf32>
    %405 = tpu.matmul %404, %329, %cst_104 {dimension_numbers = #tpu.dot_dimension_numbers<[1], [0], [0], [1], [0, 0, 1, 1], [], []>} : vector<4x32xf32>, vector<32x128xf32>, vector<4x128xf32> -> vector<4x128xf32>
    %406 = arith.addf %403, %405 : vector<4x128xf32>
    %407 = vector.extract_strided_slice %332 {offsets = [20, 0], sizes = [4, 128], strides = [1, 1]} : vector<32x128xf32> to vector<4x128xf32>
    %408 = vector.extract_strided_slice %402 {offsets = [4, 0], sizes = [4, 32], strides = [1, 1]} : vector<8x32xf32> to vector<4x32xf32>
    %cst_105 = arith.constant dense<0.000000e+00> : vector<4x128xf32>
    %409 = tpu.matmul %408, %330, %cst_105 {dimension_numbers = #tpu.dot_dimension_numbers<[1], [0], [0], [1], [0, 0, 1, 1], [], []>} : vector<4x32xf32>, vector<32x128xf32>, vector<4x128xf32> -> vector<4x128xf32>
    %410 = arith.addf %407, %409 : vector<4x128xf32>
    %411 = tpu.concatenate %406, %410 in 0 : vector<4x128xf32>, vector<4x128xf32> -> vector<8x128xf32>
    %412 = vector.extract_strided_slice %411 {offsets = [0, 0], sizes = [8, 32], strides = [1, 1]} : vector<8x128xf32> to vector<8x32xf32>
    %413 = arith.negf %412 : vector<8x32xf32>
    %414 = math.exp %413 : vector<8x32xf32>
    %cst_106 = arith.constant 1.000000e+00 : f32
    %415 = vector.broadcast %cst_106 : f32 to vector<8x32xf32>
    %416 = arith.addf %415, %414 : vector<8x32xf32>
    %417 = arith.divf %415, %416 : vector<8x32xf32>
    %418 = vector.extract_strided_slice %411 {offsets = [0, 32], sizes = [8, 32], strides = [1, 1]} : vector<8x128xf32> to vector<8x32xf32>
    %419 = arith.negf %418 : vector<8x32xf32>
    %420 = math.exp %419 : vector<8x32xf32>
    %cst_107 = arith.constant 1.000000e+00 : f32
    %421 = vector.broadcast %cst_107 : f32 to vector<8x32xf32>
    %422 = arith.addf %421, %420 : vector<8x32xf32>
    %423 = arith.divf %421, %422 : vector<8x32xf32>
    %424 = vector.extract_strided_slice %411 {offsets = [0, 64], sizes = [8, 32], strides = [1, 1]} : vector<8x128xf32> to vector<8x32xf32>
    %425 = math.tanh %424 : vector<8x32xf32>
    %426 = vector.extract_strided_slice %411 {offsets = [0, 96], sizes = [8, 32], strides = [1, 1]} : vector<8x128xf32> to vector<8x32xf32>
    %427 = arith.negf %426 : vector<8x32xf32>
    %428 = math.exp %427 : vector<8x32xf32>
    %cst_108 = arith.constant 1.000000e+00 : f32
    %429 = vector.broadcast %cst_108 : f32 to vector<8x32xf32>
    %430 = arith.addf %429, %428 : vector<8x32xf32>
    %431 = arith.divf %429, %430 : vector<8x32xf32>
    %432 = arith.mulf %423, %400 : vector<8x32xf32>
    %433 = arith.mulf %417, %425 : vector<8x32xf32>
    %434 = arith.addf %432, %433 : vector<8x32xf32>
    %435 = math.tanh %434 : vector<8x32xf32>
    %436 = arith.mulf %431, %435 : vector<8x32xf32>
    %437 = vector.extract_strided_slice %331 {offsets = [12, 0], sizes = [4, 128], strides = [1, 1]} : vector<32x128xf32> to vector<4x128xf32>
    %438 = vector.extract_strided_slice %436 {offsets = [0, 0], sizes = [4, 32], strides = [1, 1]} : vector<8x32xf32> to vector<4x32xf32>
    %cst_109 = arith.constant dense<0.000000e+00> : vector<4x128xf32>
    %439 = tpu.matmul %438, %329, %cst_109 {dimension_numbers = #tpu.dot_dimension_numbers<[1], [0], [0], [1], [0, 0, 1, 1], [], []>} : vector<4x32xf32>, vector<32x128xf32>, vector<4x128xf32> -> vector<4x128xf32>
    %440 = arith.addf %437, %439 : vector<4x128xf32>
    %441 = vector.extract_strided_slice %332 {offsets = [16, 0], sizes = [4, 128], strides = [1, 1]} : vector<32x128xf32> to vector<4x128xf32>
    %442 = vector.extract_strided_slice %436 {offsets = [4, 0], sizes = [4, 32], strides = [1, 1]} : vector<8x32xf32> to vector<4x32xf32>
    %cst_110 = arith.constant dense<0.000000e+00> : vector<4x128xf32>
    %443 = tpu.matmul %442, %330, %cst_110 {dimension_numbers = #tpu.dot_dimension_numbers<[1], [0], [0], [1], [0, 0, 1, 1], [], []>} : vector<4x32xf32>, vector<32x128xf32>, vector<4x128xf32> -> vector<4x128xf32>
    %444 = arith.addf %441, %443 : vector<4x128xf32>
    %445 = tpu.concatenate %440, %444 in 0 : vector<4x128xf32>, vector<4x128xf32> -> vector<8x128xf32>
    %446 = vector.extract_strided_slice %445 {offsets = [0, 0], sizes = [8, 32], strides = [1, 1]} : vector<8x128xf32> to vector<8x32xf32>
    %447 = arith.negf %446 : vector<8x32xf32>
    %448 = math.exp %447 : vector<8x32xf32>
    %cst_111 = arith.constant 1.000000e+00 : f32
    %449 = vector.broadcast %cst_111 : f32 to vector<8x32xf32>
    %450 = arith.addf %449, %448 : vector<8x32xf32>
    %451 = arith.divf %449, %450 : vector<8x32xf32>
    %452 = vector.extract_strided_slice %445 {offsets = [0, 32], sizes = [8, 32], strides = [1, 1]} : vector<8x128xf32> to vector<8x32xf32>
    %453 = arith.negf %452 : vector<8x32xf32>
    %454 = math.exp %453 : vector<8x32xf32>
    %cst_112 = arith.constant 1.000000e+00 : f32
    %455 = vector.broadcast %cst_112 : f32 to vector<8x32xf32>
    %456 = arith.addf %455, %454 : vector<8x32xf32>
    %457 = arith.divf %455, %456 : vector<8x32xf32>
    %458 = vector.extract_strided_slice %445 {offsets = [0, 64], sizes = [8, 32], strides = [1, 1]} : vector<8x128xf32> to vector<8x32xf32>
    %459 = math.tanh %458 : vector<8x32xf32>
    %460 = vector.extract_strided_slice %445 {offsets = [0, 96], sizes = [8, 32], strides = [1, 1]} : vector<8x128xf32> to vector<8x32xf32>
    %461 = arith.negf %460 : vector<8x32xf32>
    %462 = math.exp %461 : vector<8x32xf32>
    %cst_113 = arith.constant 1.000000e+00 : f32
    %463 = vector.broadcast %cst_113 : f32 to vector<8x32xf32>
    %464 = arith.addf %463, %462 : vector<8x32xf32>
    %465 = arith.divf %463, %464 : vector<8x32xf32>
    %466 = arith.mulf %457, %434 : vector<8x32xf32>
    %467 = arith.mulf %451, %459 : vector<8x32xf32>
    %468 = arith.addf %466, %467 : vector<8x32xf32>
    %469 = math.tanh %468 : vector<8x32xf32>
    %470 = arith.mulf %465, %469 : vector<8x32xf32>
    %471 = vector.extract_strided_slice %331 {offsets = [16, 0], sizes = [4, 128], strides = [1, 1]} : vector<32x128xf32> to vector<4x128xf32>
    %472 = vector.extract_strided_slice %470 {offsets = [0, 0], sizes = [4, 32], strides = [1, 1]} : vector<8x32xf32> to vector<4x32xf32>
    %cst_114 = arith.constant dense<0.000000e+00> : vector<4x128xf32>
    %473 = tpu.matmul %472, %329, %cst_114 {dimension_numbers = #tpu.dot_dimension_numbers<[1], [0], [0], [1], [0, 0, 1, 1], [], []>} : vector<4x32xf32>, vector<32x128xf32>, vector<4x128xf32> -> vector<4x128xf32>
    %474 = arith.addf %471, %473 : vector<4x128xf32>
    %475 = vector.extract_strided_slice %332 {offsets = [12, 0], sizes = [4, 128], strides = [1, 1]} : vector<32x128xf32> to vector<4x128xf32>
    %476 = vector.extract_strided_slice %470 {offsets = [4, 0], sizes = [4, 32], strides = [1, 1]} : vector<8x32xf32> to vector<4x32xf32>
    %cst_115 = arith.constant dense<0.000000e+00> : vector<4x128xf32>
    %477 = tpu.matmul %476, %330, %cst_115 {dimension_numbers = #tpu.dot_dimension_numbers<[1], [0], [0], [1], [0, 0, 1, 1], [], []>} : vector<4x32xf32>, vector<32x128xf32>, vector<4x128xf32> -> vector<4x128xf32>
    %478 = arith.addf %475, %477 : vector<4x128xf32>
    %479 = tpu.concatenate %474, %478 in 0 : vector<4x128xf32>, vector<4x128xf32> -> vector<8x128xf32>
    %480 = vector.extract_strided_slice %479 {offsets = [0, 0], sizes = [8, 32], strides = [1, 1]} : vector<8x128xf32> to vector<8x32xf32>
    %481 = arith.negf %480 : vector<8x32xf32>
    %482 = math.exp %481 : vector<8x32xf32>
    %cst_116 = arith.constant 1.000000e+00 : f32
    %483 = vector.broadcast %cst_116 : f32 to vector<8x32xf32>
    %484 = arith.addf %483, %482 : vector<8x32xf32>
    %485 = arith.divf %483, %484 : vector<8x32xf32>
    %486 = vector.extract_strided_slice %479 {offsets = [0, 32], sizes = [8, 32], strides = [1, 1]} : vector<8x128xf32> to vector<8x32xf32>
    %487 = arith.negf %486 : vector<8x32xf32>
    %488 = math.exp %487 : vector<8x32xf32>
    %cst_117 = arith.constant 1.000000e+00 : f32
    %489 = vector.broadcast %cst_117 : f32 to vector<8x32xf32>
    %490 = arith.addf %489, %488 : vector<8x32xf32>
    %491 = arith.divf %489, %490 : vector<8x32xf32>
    %492 = vector.extract_strided_slice %479 {offsets = [0, 64], sizes = [8, 32], strides = [1, 1]} : vector<8x128xf32> to vector<8x32xf32>
    %493 = math.tanh %492 : vector<8x32xf32>
    %494 = vector.extract_strided_slice %479 {offsets = [0, 96], sizes = [8, 32], strides = [1, 1]} : vector<8x128xf32> to vector<8x32xf32>
    %495 = arith.negf %494 : vector<8x32xf32>
    %496 = math.exp %495 : vector<8x32xf32>
    %cst_118 = arith.constant 1.000000e+00 : f32
    %497 = vector.broadcast %cst_118 : f32 to vector<8x32xf32>
    %498 = arith.addf %497, %496 : vector<8x32xf32>
    %499 = arith.divf %497, %498 : vector<8x32xf32>
    %500 = arith.mulf %491, %468 : vector<8x32xf32>
    %501 = arith.mulf %485, %493 : vector<8x32xf32>
    %502 = arith.addf %500, %501 : vector<8x32xf32>
    %503 = math.tanh %502 : vector<8x32xf32>
    %504 = arith.mulf %499, %503 : vector<8x32xf32>
    %505 = vector.extract_strided_slice %331 {offsets = [20, 0], sizes = [4, 128], strides = [1, 1]} : vector<32x128xf32> to vector<4x128xf32>
    %506 = vector.extract_strided_slice %504 {offsets = [0, 0], sizes = [4, 32], strides = [1, 1]} : vector<8x32xf32> to vector<4x32xf32>
    %cst_119 = arith.constant dense<0.000000e+00> : vector<4x128xf32>
    %507 = tpu.matmul %506, %329, %cst_119 {dimension_numbers = #tpu.dot_dimension_numbers<[1], [0], [0], [1], [0, 0, 1, 1], [], []>} : vector<4x32xf32>, vector<32x128xf32>, vector<4x128xf32> -> vector<4x128xf32>
    %508 = arith.addf %505, %507 : vector<4x128xf32>
    %509 = vector.extract_strided_slice %332 {offsets = [8, 0], sizes = [4, 128], strides = [1, 1]} : vector<32x128xf32> to vector<4x128xf32>
    %510 = vector.extract_strided_slice %504 {offsets = [4, 0], sizes = [4, 32], strides = [1, 1]} : vector<8x32xf32> to vector<4x32xf32>
    %cst_120 = arith.constant dense<0.000000e+00> : vector<4x128xf32>
    %511 = tpu.matmul %510, %330, %cst_120 {dimension_numbers = #tpu.dot_dimension_numbers<[1], [0], [0], [1], [0, 0, 1, 1], [], []>} : vector<4x32xf32>, vector<32x128xf32>, vector<4x128xf32> -> vector<4x128xf32>
    %512 = arith.addf %509, %511 : vector<4x128xf32>
    %513 = tpu.concatenate %508, %512 in 0 : vector<4x128xf32>, vector<4x128xf32> -> vector<8x128xf32>
    %514 = vector.extract_strided_slice %513 {offsets = [0, 0], sizes = [8, 32], strides = [1, 1]} : vector<8x128xf32> to vector<8x32xf32>
    %515 = arith.negf %514 : vector<8x32xf32>
    %516 = math.exp %515 : vector<8x32xf32>
    %cst_121 = arith.constant 1.000000e+00 : f32
    %517 = vector.broadcast %cst_121 : f32 to vector<8x32xf32>
    %518 = arith.addf %517, %516 : vector<8x32xf32>
    %519 = arith.divf %517, %518 : vector<8x32xf32>
    %520 = vector.extract_strided_slice %513 {offsets = [0, 32], sizes = [8, 32], strides = [1, 1]} : vector<8x128xf32> to vector<8x32xf32>
    %521 = arith.negf %520 : vector<8x32xf32>
    %522 = math.exp %521 : vector<8x32xf32>
    %cst_122 = arith.constant 1.000000e+00 : f32
    %523 = vector.broadcast %cst_122 : f32 to vector<8x32xf32>
    %524 = arith.addf %523, %522 : vector<8x32xf32>
    %525 = arith.divf %523, %524 : vector<8x32xf32>
    %526 = vector.extract_strided_slice %513 {offsets = [0, 64], sizes = [8, 32], strides = [1, 1]} : vector<8x128xf32> to vector<8x32xf32>
    %527 = math.tanh %526 : vector<8x32xf32>
    %528 = vector.extract_strided_slice %513 {offsets = [0, 96], sizes = [8, 32], strides = [1, 1]} : vector<8x128xf32> to vector<8x32xf32>
    %529 = arith.negf %528 : vector<8x32xf32>
    %530 = math.exp %529 : vector<8x32xf32>
    %cst_123 = arith.constant 1.000000e+00 : f32
    %531 = vector.broadcast %cst_123 : f32 to vector<8x32xf32>
    %532 = arith.addf %531, %530 : vector<8x32xf32>
    %533 = arith.divf %531, %532 : vector<8x32xf32>
    %534 = arith.mulf %525, %502 : vector<8x32xf32>
    %535 = arith.mulf %519, %527 : vector<8x32xf32>
    %536 = arith.addf %534, %535 : vector<8x32xf32>
    %537 = math.tanh %536 : vector<8x32xf32>
    %538 = arith.mulf %533, %537 : vector<8x32xf32>
    %539 = vector.extract_strided_slice %331 {offsets = [24, 0], sizes = [4, 128], strides = [1, 1]} : vector<32x128xf32> to vector<4x128xf32>
    %540 = vector.extract_strided_slice %538 {offsets = [0, 0], sizes = [4, 32], strides = [1, 1]} : vector<8x32xf32> to vector<4x32xf32>
    %cst_124 = arith.constant dense<0.000000e+00> : vector<4x128xf32>
    %541 = tpu.matmul %540, %329, %cst_124 {dimension_numbers = #tpu.dot_dimension_numbers<[1], [0], [0], [1], [0, 0, 1, 1], [], []>} : vector<4x32xf32>, vector<32x128xf32>, vector<4x128xf32> -> vector<4x128xf32>
    %542 = arith.addf %539, %541 : vector<4x128xf32>
    %543 = vector.extract_strided_slice %332 {offsets = [4, 0], sizes = [4, 128], strides = [1, 1]} : vector<32x128xf32> to vector<4x128xf32>
    %544 = vector.extract_strided_slice %538 {offsets = [4, 0], sizes = [4, 32], strides = [1, 1]} : vector<8x32xf32> to vector<4x32xf32>
    %cst_125 = arith.constant dense<0.000000e+00> : vector<4x128xf32>
    %545 = tpu.matmul %544, %330, %cst_125 {dimension_numbers = #tpu.dot_dimension_numbers<[1], [0], [0], [1], [0, 0, 1, 1], [], []>} : vector<4x32xf32>, vector<32x128xf32>, vector<4x128xf32> -> vector<4x128xf32>
    %546 = arith.addf %543, %545 : vector<4x128xf32>
    %547 = tpu.concatenate %542, %546 in 0 : vector<4x128xf32>, vector<4x128xf32> -> vector<8x128xf32>
    %548 = vector.extract_strided_slice %547 {offsets = [0, 0], sizes = [8, 32], strides = [1, 1]} : vector<8x128xf32> to vector<8x32xf32>
    %549 = arith.negf %548 : vector<8x32xf32>
    %550 = math.exp %549 : vector<8x32xf32>
    %cst_126 = arith.constant 1.000000e+00 : f32
    %551 = vector.broadcast %cst_126 : f32 to vector<8x32xf32>
    %552 = arith.addf %551, %550 : vector<8x32xf32>
    %553 = arith.divf %551, %552 : vector<8x32xf32>
    %554 = vector.extract_strided_slice %547 {offsets = [0, 32], sizes = [8, 32], strides = [1, 1]} : vector<8x128xf32> to vector<8x32xf32>
    %555 = arith.negf %554 : vector<8x32xf32>
    %556 = math.exp %555 : vector<8x32xf32>
    %cst_127 = arith.constant 1.000000e+00 : f32
    %557 = vector.broadcast %cst_127 : f32 to vector<8x32xf32>
    %558 = arith.addf %557, %556 : vector<8x32xf32>
    %559 = arith.divf %557, %558 : vector<8x32xf32>
    %560 = vector.extract_strided_slice %547 {offsets = [0, 64], sizes = [8, 32], strides = [1, 1]} : vector<8x128xf32> to vector<8x32xf32>
    %561 = math.tanh %560 : vector<8x32xf32>
    %562 = vector.extract_strided_slice %547 {offsets = [0, 96], sizes = [8, 32], strides = [1, 1]} : vector<8x128xf32> to vector<8x32xf32>
    %563 = arith.negf %562 : vector<8x32xf32>
    %564 = math.exp %563 : vector<8x32xf32>
    %cst_128 = arith.constant 1.000000e+00 : f32
    %565 = vector.broadcast %cst_128 : f32 to vector<8x32xf32>
    %566 = arith.addf %565, %564 : vector<8x32xf32>
    %567 = arith.divf %565, %566 : vector<8x32xf32>
    %568 = arith.mulf %559, %536 : vector<8x32xf32>
    %569 = arith.mulf %553, %561 : vector<8x32xf32>
    %570 = arith.addf %568, %569 : vector<8x32xf32>
    %571 = math.tanh %570 : vector<8x32xf32>
    %572 = arith.mulf %567, %571 : vector<8x32xf32>
    %573 = vector.extract_strided_slice %331 {offsets = [28, 0], sizes = [4, 128], strides = [1, 1]} : vector<32x128xf32> to vector<4x128xf32>
    %574 = vector.extract_strided_slice %572 {offsets = [0, 0], sizes = [4, 32], strides = [1, 1]} : vector<8x32xf32> to vector<4x32xf32>
    %cst_129 = arith.constant dense<0.000000e+00> : vector<4x128xf32>
    %575 = tpu.matmul %574, %329, %cst_129 {dimension_numbers = #tpu.dot_dimension_numbers<[1], [0], [0], [1], [0, 0, 1, 1], [], []>} : vector<4x32xf32>, vector<32x128xf32>, vector<4x128xf32> -> vector<4x128xf32>
    %576 = arith.addf %573, %575 : vector<4x128xf32>
    %577 = vector.extract_strided_slice %332 {offsets = [0, 0], sizes = [4, 128], strides = [1, 1]} : vector<32x128xf32> to vector<4x128xf32>
    %578 = vector.extract_strided_slice %572 {offsets = [4, 0], sizes = [4, 32], strides = [1, 1]} : vector<8x32xf32> to vector<4x32xf32>
    %cst_130 = arith.constant dense<0.000000e+00> : vector<4x128xf32>
    %579 = tpu.matmul %578, %330, %cst_130 {dimension_numbers = #tpu.dot_dimension_numbers<[1], [0], [0], [1], [0, 0, 1, 1], [], []>} : vector<4x32xf32>, vector<32x128xf32>, vector<4x128xf32> -> vector<4x128xf32>
    %580 = arith.addf %577, %579 : vector<4x128xf32>
    %581 = tpu.concatenate %576, %580 in 0 : vector<4x128xf32>, vector<4x128xf32> -> vector<8x128xf32>
    %582 = vector.extract_strided_slice %581 {offsets = [0, 0], sizes = [8, 32], strides = [1, 1]} : vector<8x128xf32> to vector<8x32xf32>
    %583 = arith.negf %582 : vector<8x32xf32>
    %584 = math.exp %583 : vector<8x32xf32>
    %cst_131 = arith.constant 1.000000e+00 : f32
    %585 = vector.broadcast %cst_131 : f32 to vector<8x32xf32>
    %586 = arith.addf %585, %584 : vector<8x32xf32>
    %587 = arith.divf %585, %586 : vector<8x32xf32>
    %588 = vector.extract_strided_slice %581 {offsets = [0, 32], sizes = [8, 32], strides = [1, 1]} : vector<8x128xf32> to vector<8x32xf32>
    %589 = arith.negf %588 : vector<8x32xf32>
    %590 = math.exp %589 : vector<8x32xf32>
    %cst_132 = arith.constant 1.000000e+00 : f32
    %591 = vector.broadcast %cst_132 : f32 to vector<8x32xf32>
    %592 = arith.addf %591, %590 : vector<8x32xf32>
    %593 = arith.divf %591, %592 : vector<8x32xf32>
    %594 = vector.extract_strided_slice %581 {offsets = [0, 64], sizes = [8, 32], strides = [1, 1]} : vector<8x128xf32> to vector<8x32xf32>
    %595 = math.tanh %594 : vector<8x32xf32>
    %596 = vector.extract_strided_slice %581 {offsets = [0, 96], sizes = [8, 32], strides = [1, 1]} : vector<8x128xf32> to vector<8x32xf32>
    %597 = arith.negf %596 : vector<8x32xf32>
    %598 = math.exp %597 : vector<8x32xf32>
    %cst_133 = arith.constant 1.000000e+00 : f32
    %599 = vector.broadcast %cst_133 : f32 to vector<8x32xf32>
    %600 = arith.addf %599, %598 : vector<8x32xf32>
    %601 = arith.divf %599, %600 : vector<8x32xf32>
    %602 = arith.mulf %593, %570 : vector<8x32xf32>
    %603 = arith.mulf %587, %595 : vector<8x32xf32>
    %604 = arith.addf %602, %603 : vector<8x32xf32>
    %605 = math.tanh %604 : vector<8x32xf32>
    %606 = arith.mulf %601, %605 : vector<8x32xf32>
    %607 = vector.extract_strided_slice %606 {offsets = [0, 0], sizes = [4, 32], strides = [1, 1]} : vector<8x32xf32> to vector<4x32xf32>
    %608 = vector.extract_strided_slice %606 {offsets = [4, 0], sizes = [4, 32], strides = [1, 1]} : vector<8x32xf32> to vector<4x32xf32>
    %609 = tpu.concatenate %607, %608 in 1 : vector<4x32xf32>, vector<4x32xf32> -> vector<4x64xf32>
    %610 = vector.extract_strided_slice %609 {offsets = [0, 0], sizes = [2, 64], strides = [1, 1]} : vector<4x64xf32> to vector<2x64xf32>
    %611 = vector.extract_strided_slice %609 {offsets = [2, 0], sizes = [2, 64], strides = [1, 1]} : vector<4x64xf32> to vector<2x64xf32>
    %612 = arith.subf %610, %611 : vector<2x64xf32>
    %613 = math.absf %612 : vector<2x64xf32>
    %614 = arith.mulf %610, %611 : vector<2x64xf32>
    %615 = tpu.concatenate %610, %611, %613, %614 in 1 : vector<2x64xf32>, vector<2x64xf32>, vector<2x64xf32>, vector<2x64xf32> -> vector<2x256xf32>
    %c0_134 = arith.constant 0 : index
    %c0_135 = arith.constant 0 : index
    %616 = vector.load %arg12[%c0_134, %c0_135] : memref<256x32xf32, #tpu.memory_space<vmem>>, vector<256x32xf32>
    %cst_136 = arith.constant dense<0.000000e+00> : vector<2x32xf32>
    %617 = tpu.matmul %615, %616, %cst_136 {dimension_numbers = #tpu.dot_dimension_numbers<[1], [0], [0], [1], [0, 0, 1, 1], [], []>} : vector<2x256xf32>, vector<256x32xf32>, vector<2x32xf32> -> vector<2x32xf32>
    %c0_137 = arith.constant 0 : index
    %c0_138 = arith.constant 0 : index
    %618 = vector.load %arg13[%c0_137, %c0_138] : memref<1x32xf32, #tpu.memory_space<vmem>>, vector<1x32xf32>
    %619 = vector.broadcast %618 : vector<1x32xf32> to vector<2x32xf32>
    %620 = arith.addf %617, %619 : vector<2x32xf32>
    %cst_139 = arith.constant 0.000000e+00 : f32
    %621 = vector.broadcast %cst_139 : f32 to vector<2x32xf32>
    %622 = arith.maximumf %620, %621 : vector<2x32xf32>
    %c0_140 = arith.constant 0 : index
    %c0_141 = arith.constant 0 : index
    %623 = vector.load %arg14[%c0_140, %c0_141] : memref<32x32xf32, #tpu.memory_space<vmem>>, vector<32x32xf32>
    %cst_142 = arith.constant dense<0.000000e+00> : vector<2x32xf32>
    %624 = tpu.matmul %622, %623, %cst_142 {dimension_numbers = #tpu.dot_dimension_numbers<[1], [0], [0], [1], [0, 0, 1, 1], [], []>} : vector<2x32xf32>, vector<32x32xf32>, vector<2x32xf32> -> vector<2x32xf32>
    %c0_143 = arith.constant 0 : index
    %c0_144 = arith.constant 0 : index
    %625 = vector.load %arg15[%c0_143, %c0_144] : memref<1x32xf32, #tpu.memory_space<vmem>>, vector<1x32xf32>
    %626 = vector.broadcast %625 : vector<1x32xf32> to vector<2x32xf32>
    %627 = arith.addf %624, %626 : vector<2x32xf32>
    %cst_145 = arith.constant 0.000000e+00 : f32
    %628 = vector.broadcast %cst_145 : f32 to vector<2x32xf32>
    %629 = arith.maximumf %627, %628 : vector<2x32xf32>
    %c0_146 = arith.constant 0 : index
    %c0_147 = arith.constant 0 : index
    %630 = vector.load %arg16[%c0_146, %c0_147] : memref<32x3xf32, #tpu.memory_space<vmem>>, vector<32x3xf32>
    %cst_148 = arith.constant dense<0.000000e+00> : vector<2x3xf32>
    %631 = tpu.matmul %629, %630, %cst_148 {dimension_numbers = #tpu.dot_dimension_numbers<[1], [0], [0], [1], [0, 0, 1, 1], [], []>} : vector<2x32xf32>, vector<32x3xf32>, vector<2x3xf32> -> vector<2x3xf32>
    %c0_149 = arith.constant 0 : index
    %c0_150 = arith.constant 0 : index
    %632 = vector.load %arg17[%c0_149, %c0_150] : memref<1x3xf32, #tpu.memory_space<vmem>>, vector<1x3xf32>
    %633 = vector.broadcast %632 : vector<1x3xf32> to vector<2x3xf32>
    %634 = arith.addf %631, %633 : vector<2x3xf32>
    %c0_151 = arith.constant 0 : index
    %c0_152 = arith.constant 0 : index
    %635 = vector.load %arg18[%c0_151, %c0_152] : memref<2x3xf32, #tpu.memory_space<vmem>>, vector<2x3xf32>
    tpu.vector_store %arg18[%c0_151, %c0_152], %634 {strides = array<i32>} : memref<2x3xf32, #tpu.memory_space<vmem>>, vector<2x3xf32>,
    return
  }
  func.func @transform_0(%arg0: i32) -> (i32, i32) {
    %c0_i32 = arith.constant 0 : i32
    %c0_i32_0 = arith.constant 0 : i32
    %c0_i32_1 = arith.constant 0 : i32
    return %c0_i32, %c0_i32_0 : i32, i32
  }
  func.func @transform_1(%arg0: i32) -> (i32, i32) {
    %c0_i32 = arith.constant 0 : i32
    %c0_i32_0 = arith.constant 0 : i32
    %c0_i32_1 = arith.constant 0 : i32
    return %c0_i32, %c0_i32_0 : i32, i32
  }
  func.func @transform_2(%arg0: i32) -> (i32, i32) {
    %c0_i32 = arith.constant 0 : i32
    %c0_i32_0 = arith.constant 0 : i32
    %c0_i32_1 = arith.constant 0 : i32
    return %c0_i32, %c0_i32_0 : i32, i32
  }
  func.func @transform_3(%arg0: i32) -> (i32, i32) {
    %c0_i32 = arith.constant 0 : i32
    %c0_i32_0 = arith.constant 0 : i32
    %c0_i32_1 = arith.constant 0 : i32
    return %c0_i32, %c0_i32_0 : i32, i32
  }
  func.func @transform_4(%arg0: i32) -> (i32, i32) {
    %c0_i32 = arith.constant 0 : i32
    %c0_i32_0 = arith.constant 0 : i32
    %c0_i32_1 = arith.constant 0 : i32
    return %c0_i32, %c0_i32_0 : i32, i32
  }
  func.func @transform_5(%arg0: i32) -> (i32, i32) {
    %c0_i32 = arith.constant 0 : i32
    %c0_i32_0 = arith.constant 0 : i32
    %c0_i32_1 = arith.constant 0 : i32
    return %c0_i32, %c0_i32_0 : i32, i32
  }
  func.func @transform_6(%arg0: i32) -> (i32, i32) {
    %c0_i32 = arith.constant 0 : i32
    %c0_i32_0 = arith.constant 0 : i32
    %c0_i32_1 = arith.constant 0 : i32
    return %c0_i32, %c0_i32_0 : i32, i32
  }
  func.func @transform_7(%arg0: i32) -> (i32, i32) {
    %c0_i32 = arith.constant 0 : i32
    %c0_i32_0 = arith.constant 0 : i32
    %c0_i32_1 = arith.constant 0 : i32
    return %c0_i32, %c0_i32_0 : i32, i32
  }
  func.func @transform_8(%arg0: i32) -> (i32, i32) {
    %c0_i32 = arith.constant 0 : i32
    %c0_i32_0 = arith.constant 0 : i32
    %c0_i32_1 = arith.constant 0 : i32
    return %c0_i32, %c0_i32_0 : i32, i32
  }
  func.func @transform_9(%arg0: i32) -> (i32, i32) {
    %c0_i32 = arith.constant 0 : i32
    %c0_i32_0 = arith.constant 0 : i32
    %c0_i32_1 = arith.constant 0 : i32
    return %c0_i32, %c0_i32_0 : i32, i32
  }
  func.func @transform_10(%arg0: i32) -> (i32, i32) {
    %c0_i32 = arith.constant 0 : i32
    %c0_i32_0 = arith.constant 0 : i32
    %c0_i32_1 = arith.constant 0 : i32
    return %c0_i32, %c0_i32_0 : i32, i32
  }
  func.func @transform_11(%arg0: i32) -> (i32, i32) {
    %c0_i32 = arith.constant 0 : i32
    %c0_i32_0 = arith.constant 0 : i32
    %c0_i32_1 = arith.constant 0 : i32
    return %c0_i32, %c0_i32_0 : i32, i32
  }
  func.func @transform_12(%arg0: i32) -> (i32, i32) {
    %c0_i32 = arith.constant 0 : i32
    %c0_i32_0 = arith.constant 0 : i32
    %c0_i32_1 = arith.constant 0 : i32
    return %c0_i32, %c0_i32_0 : i32, i32
  }
  func.func @transform_13(%arg0: i32) -> (i32, i32) {
    %c0_i32 = arith.constant 0 : i32
    %c0_i32_0 = arith.constant 0 : i32
    %c0_i32_1 = arith.constant 0 : i32
    return %c0_i32, %c0_i32_0 : i32, i32
  }
  func.func @transform_14(%arg0: i32) -> (i32, i32) {
    %c0_i32 = arith.constant 0 : i32
    %c0_i32_0 = arith.constant 0 : i32
    %c0_i32_1 = arith.constant 0 : i32
    return %c0_i32, %c0_i32_0 : i32, i32
  }
  func.func @transform_15(%arg0: i32) -> (i32, i32) {
    %c0_i32 = arith.constant 0 : i32
    %c0_i32_0 = arith.constant 0 : i32
    %c0_i32_1 = arith.constant 0 : i32
    return %c0_i32, %c0_i32_0 : i32, i32
  }
  func.func @transform_16(%arg0: i32) -> (i32, i32) {
    %c0_i32 = arith.constant 0 : i32
    %c0_i32_0 = arith.constant 0 : i32
    %c0_i32_1 = arith.constant 0 : i32
    return %c0_i32, %c0_i32_0 : i32, i32
  }
  func.func @transform_17(%arg0: i32) -> (i32, i32) {
    %c0_i32 = arith.constant 0 : i32
    %c0_i32_0 = arith.constant 0 : i32
    %c0_i32_1 = arith.constant 0 : i32
    return %c0_i32, %c0_i32_0 : i32, i32
  }
}

</mosaic_0001>

<llo_original>
// kernel: bilstm_forward.1
$region0: #{bilstm_forward.1}
  #allocation0 [shape = 'u32[]', space=smem, size = 0x4, offset = 0x4, fixed_abs, tag = 'smem constant byte address 0x4 - core index']
  #allocation1 [shape = 'u32[72,128]{1,0:T(1,128)}', space=vmem, size = 0x9000, scoped, tag = 'internal scratch']
  #allocation2 [shape = 'f32[32,64]{1,0:T(8,128)}', space=vmem, size = 0x4000, scoped, tag = 'scratch operand']
  %s0 = inlined_call_operand.vmem [shape: f32[32,384], index: 0, kind: input, shape index: {}]
  %s1 = inlined_call_operand.vmem [shape: f32[384,32], index: 1, kind: input, shape index: {}]
  %s2 = inlined_call_operand.vmem [shape: f32[1,32], index: 2, kind: input, shape index: {}]
  %s3 = inlined_call_operand.vmem [shape: f32[32,256], index: 3, kind: input, shape index: {}]
  %s4 = inlined_call_operand.vmem [shape: f32[32,128], index: 4, kind: input, shape index: {}]
  %s5 = inlined_call_operand.vmem [shape: f32[32,128], index: 5, kind: input, shape index: {}]
  %s6 = inlined_call_operand.vmem [shape: f32[1,256], index: 6, kind: input, shape index: {}]
  %s7 = inlined_call_operand.vmem [shape: f32[64,256], index: 7, kind: input, shape index: {}]
  %s8 = inlined_call_operand.vmem [shape: f32[32,128], index: 8, kind: input, shape index: {}]
  %s9 = inlined_call_operand.vmem [shape: f32[32,128], index: 9, kind: input, shape index: {}]
  %s10 = inlined_call_operand.vmem [shape: f32[1,256], index: 10, kind: input, shape index: {}]
  %s11 = inlined_call_operand.vmem [shape: f32[256,32], index: 11, kind: input, shape index: {}]
  %s12 = inlined_call_operand.vmem [shape: f32[1,32], index: 12, kind: input, shape index: {}]
  %s13 = inlined_call_operand.vmem [shape: f32[32,32], index: 13, kind: input, shape index: {}]
  %s14 = inlined_call_operand.vmem [shape: f32[1,32], index: 14, kind: input, shape index: {}]
  %s15 = inlined_call_operand.vmem [shape: f32[32,3], index: 15, kind: input, shape index: {}]
  %s16 = inlined_call_operand.vmem [shape: f32[1,3], index: 16, kind: input, shape index: {}]
  %s17 = inlined_call_operand.hbm [shape: f32[2,3], index: 17, kind: output, shape index: {}]
  %s18 = sld [smem:[#allocation0]]
  $region78: #{bilstm_forward.1} parent=0
    _
  %s20 = ssub.s32 1, %s18
  %s21 = scalar_select 0, %s20, %s18
  $region1: #{bilstm_forward.1} parent=0
    #allocation3 [shape = 'u8[1024]{0}', space=vmem, size = 0x400, scoped, tag = 'output window, operand 0, single buffered']
    #allocation4 [shape = 's32[1]{0}', space=sflag, size = 0x4, scoped, tag = 'scoped memory for bilstm_forward.1']
    %22 = vsyncpa [#allocation4], 0
    // Predicated region
    $region2: #{bilstm_forward.1} parent=1 // pred_check
      _
    $region3: #{bilstm_forward.1} parent=1 // pred_check_branch
      %24 = sbr.rel (0) target = $region5
    $region4: #{bilstm_forward.1} parent=1 // pred_region
      _
    $region5: #{bilstm_forward.1} parent=1 // pred_fallthru
      _
    // Predicated region
    $region6: #{bilstm_forward.1} parent=1 // pred_check
      _
    $region7: #{bilstm_forward.1} parent=1 // pred_check_branch
      %26 = sbr.rel (0) target = $region9
    $region8: #{bilstm_forward.1} parent=1 // pred_region
      _
    $region9: #{bilstm_forward.1} parent=1 // pred_fallthru
      _
    // Predicated region
    $region10: #{bilstm_forward.1} parent=1 // pred_check
      _
    $region11: #{bilstm_forward.1} parent=1 // pred_check_branch
      %28 = sbr.rel (0) target = $region13
    $region12: #{bilstm_forward.1} parent=1 // pred_region
      _
    $region13: #{bilstm_forward.1} parent=1 // pred_fallthru
      _
    // Predicated region
    $region14: #{bilstm_forward.1} parent=1 // pred_check
      _
    $region15: #{bilstm_forward.1} parent=1 // pred_check_branch
      %30 = sbr.rel (0) target = $region17
    $region16: #{bilstm_forward.1} parent=1 // pred_region
      _
    $region17: #{bilstm_forward.1} parent=1 // pred_fallthru
      _
    // Predicated region
    $region18: #{bilstm_forward.1} parent=1 // pred_check
      _
    $region19: #{bilstm_forward.1} parent=1 // pred_check_branch
      %32 = sbr.rel (0) target = $region21
    $region20: #{bilstm_forward.1} parent=1 // pred_region
      _
    $region21: #{bilstm_forward.1} parent=1 // pred_fallthru
      _
    // Predicated region
    $region22: #{bilstm_forward.1} parent=1 // pred_check
      _
    $region23: #{bilstm_forward.1} parent=1 // pred_check_branch
      %34 = sbr.rel (0) target = $region25
    $region24: #{bilstm_forward.1} parent=1 // pred_region
      _
    $region25: #{bilstm_forward.1} parent=1 // pred_fallthru
      _
    // Predicated region
    $region26: #{bilstm_forward.1} parent=1 // pred_check
      _
    $region27: #{bilstm_forward.1} parent=1 // pred_check_branch
      %36 = sbr.rel (0) target = $region29
    $region28: #{bilstm_forward.1} parent=1 // pred_region
      _
    $region29: #{bilstm_forward.1} parent=1 // pred_fallthru
      _
    // Predicated region
    $region30: #{bilstm_forward.1} parent=1 // pred_check
      _
    $region31: #{bilstm_forward.1} parent=1 // pred_check_branch
      %38 = sbr.rel (0) target = $region33
    $region32: #{bilstm_forward.1} parent=1 // pred_region
      _
    $region33: #{bilstm_forward.1} parent=1 // pred_fallthru
      _
    // Predicated region
    $region34: #{bilstm_forward.1} parent=1 // pred_check
      _
    $region35: #{bilstm_forward.1} parent=1 // pred_check_branch
      %40 = sbr.rel (0) target = $region37
    $region36: #{bilstm_forward.1} parent=1 // pred_region
      _
    $region37: #{bilstm_forward.1} parent=1 // pred_fallthru
      _
    // Predicated region
    $region38: #{bilstm_forward.1} parent=1 // pred_check
      _
    $region39: #{bilstm_forward.1} parent=1 // pred_check_branch
      %42 = sbr.rel (0) target = $region41
    $region40: #{bilstm_forward.1} parent=1 // pred_region
      _
    $region41: #{bilstm_forward.1} parent=1 // pred_fallthru
      _
    // Predicated region
    $region42: #{bilstm_forward.1} parent=1 // pred_check
      _
    $region43: #{bilstm_forward.1} parent=1 // pred_check_branch
      %44 = sbr.rel (0) target = $region45
    $region44: #{bilstm_forward.1} parent=1 // pred_region
      _
    $region45: #{bilstm_forward.1} parent=1 // pred_fallthru
      _
    // Predicated region
    $region46: #{bilstm_forward.1} parent=1 // pred_check
      _
    $region47: #{bilstm_forward.1} parent=1 // pred_check_branch
      %46 = sbr.rel (0) target = $region49
    $region48: #{bilstm_forward.1} parent=1 // pred_region
      _
    $region49: #{bilstm_forward.1} parent=1 // pred_fallthru
      _
    // Predicated region
    $region50: #{bilstm_forward.1} parent=1 // pred_check
      _
    $region51: #{bilstm_forward.1} parent=1 // pred_check_branch
      %48 = sbr.rel (0) target = $region53
    $region52: #{bilstm_forward.1} parent=1 // pred_region
      _
    $region53: #{bilstm_forward.1} parent=1 // pred_fallthru
      _
    // Predicated region
    $region54: #{bilstm_forward.1} parent=1 // pred_check
      _
    $region55: #{bilstm_forward.1} parent=1 // pred_check_branch
      %50 = sbr.rel (0) target = $region57
    $region56: #{bilstm_forward.1} parent=1 // pred_region
      _
    $region57: #{bilstm_forward.1} parent=1 // pred_fallthru
      _
    // Predicated region
    $region58: #{bilstm_forward.1} parent=1 // pred_check
      _
    $region59: #{bilstm_forward.1} parent=1 // pred_check_branch
      %52 = sbr.rel (0) target = $region61
    $region60: #{bilstm_forward.1} parent=1 // pred_region
      _
    $region61: #{bilstm_forward.1} parent=1 // pred_fallthru
      _
    // Predicated region
    $region62: #{bilstm_forward.1} parent=1 // pred_check
      _
    $region63: #{bilstm_forward.1} parent=1 // pred_check_branch
      %54 = sbr.rel (0) target = $region65
    $region64: #{bilstm_forward.1} parent=1 // pred_region
      _
    $region65: #{bilstm_forward.1} parent=1 // pred_fallthru
      _
    // Predicated region
    $region66: #{bilstm_forward.1} parent=1 // pred_check
      _
    $region67: #{bilstm_forward.1} parent=1 // pred_check_branch
      %56 = sbr.rel (0) target = $region69
    $region68: #{bilstm_forward.1} parent=1 // pred_region
      _
    $region69: #{bilstm_forward.1} parent=1 // pred_fallthru
      _
    %v57 = vld [vmem:[%s0] sm:$0xff]
    %v58 = vld [vmem:[%s0 + $0x8] sm:$0xff]
    %v59 = vld [vmem:[%s0 + $0x10] sm:$0xff]
    %v60 = vld [vmem:[%s0 + $0x18] sm:$0xff]
    %v61 = vld [vmem:[%s0 + $0x20] sm:$0xff]
    %v62 = vld [vmem:[%s0 + $0x28] sm:$0xff]
    %v63 = vld [vmem:[%s0 + $0x30] sm:$0xff]
    %v64 = vld [vmem:[%s0 + $0x38] sm:$0xff]
    %v65 = vld [vmem:[%s0 + $0x40] sm:$0xff]
    %v66 = vld [vmem:[%s0 + $0x48] sm:$0xff]
    %v67 = vld [vmem:[%s0 + $0x50] sm:$0xff]
    %v68 = vld [vmem:[%s0 + $0x58] sm:$0xff]
    %v69 = vld [vmem:[%s1] sm:$0xff]
    %v70 = vld [vmem:[%s1 + $0x8] sm:$0xff]
    %v71 = vld [vmem:[%s1 + $0x10] sm:$0xff]
    %v72 = vld [vmem:[%s1 + $0x18] sm:$0xff]
    %v73 = vld [vmem:[%s1 + $0x20] sm:$0xff]
    %v74 = vld [vmem:[%s1 + $0x28] sm:$0xff]
    %v75 = vld [vmem:[%s1 + $0x30] sm:$0xff]
    %v76 = vld [vmem:[%s1 + $0x38] sm:$0xff]
    %v77 = vld [vmem:[%s1 + $0x40] sm:$0xff]
    %v78 = vld [vmem:[%s1 + $0x48] sm:$0xff]
    %v79 = vld [vmem:[%s1 + $0x50] sm:$0xff]
    %v80 = vld [vmem:[%s1 + $0x58] sm:$0xff]
    %v81 = vld [vmem:[%s1 + $0x60] sm:$0xff]
    %v82 = vld [vmem:[%s1 + $0x68] sm:$0xff]
    %v83 = vld [vmem:[%s1 + $0x70] sm:$0xff]
    %v84 = vld [vmem:[%s1 + $0x78] sm:$0xff]
    %v85 = vld [vmem:[%s1 + $0x80] sm:$0xff]
    %v86 = vld [vmem:[%s1 + $0x88] sm:$0xff]
    %v87 = vld [vmem:[%s1 + $0x90] sm:$0xff]
    %v88 = vld [vmem:[%s1 + $0x98] sm:$0xff]
    %v89 = vld [vmem:[%s1 + $0xa0] sm:$0xff]
    %v90 = vld [vmem:[%s1 + $0xa8] sm:$0xff]
    %v91 = vld [vmem:[%s1 + $0xb0] sm:$0xff]
    %v92 = vld [vmem:[%s1 + $0xb8] sm:$0xff]
    %v93 = vld [vmem:[%s1 + $0xc0] sm:$0xff]
    %v94 = vld [vmem:[%s1 + $0xc8] sm:$0xff]
    %v95 = vld [vmem:[%s1 + $0xd0] sm:$0xff]
    %v96 = vld [vmem:[%s1 + $0xd8] sm:$0xff]
    %v97 = vld [vmem:[%s1 + $0xe0] sm:$0xff]
    %v98 = vld [vmem:[%s1 + $0xe8] sm:$0xff]
    %v99 = vld [vmem:[%s1 + $0xf0] sm:$0xff]
    %v100 = vld [vmem:[%s1 + $0xf8] sm:$0xff]
    %v101 = vld [vmem:[%s1 + $0x100] sm:$0xff]
    %v102 = vld [vmem:[%s1 + $0x108] sm:$0xff]
    %v103 = vld [vmem:[%s1 + $0x110] sm:$0xff]
    %v104 = vld [vmem:[%s1 + $0x118] sm:$0xff]
    %v105 = vld [vmem:[%s1 + $0x120] sm:$0xff]
    %v106 = vld [vmem:[%s1 + $0x128] sm:$0xff]
    %v107 = vld [vmem:[%s1 + $0x130] sm:$0xff]
    %v108 = vld [vmem:[%s1 + $0x138] sm:$0xff]
    %v109 = vld [vmem:[%s1 + $0x140] sm:$0xff]
    %v110 = vld [vmem:[%s1 + $0x148] sm:$0xff]
    %v111 = vld [vmem:[%s1 + $0x150] sm:$0xff]
    %v112 = vld [vmem:[%s1 + $0x158] sm:$0xff]
    %v113 = vld [vmem:[%s1 + $0x160] sm:$0xff]
    %v114 = vld [vmem:[%s1 + $0x168] sm:$0xff]
    %v115 = vld [vmem:[%s1 + $0x170] sm:$0xff]
    %v116 = vld [vmem:[%s1 + $0x178] sm:$0xff]
    %v117 = vld [vmem:[%s2] sm:$0x1]
    %v119 = vperm.slane %v117, 0
    %121 = vmatpush.msra.mxu0 %v84
    %122 = vmatpush.msra.mxu0 %v83
    %123 = vmatpush.msra.mxu0 %v82
    %124 = vmatpush.msra.mxu0 %v81
    %125 = vmatpush.msra.mxu0 %v80
    %126 = vmatpush.msra.mxu0 %v79
    %127 = vmatpush.msra.mxu0 %v78
    %128 = vmatpush.msra.mxu0 %v77
    %129 = vmatpush.msra.mxu0 %v76
    %130 = vmatpush.msra.mxu0 %v75
    %131 = vmatpush.msra.mxu0 %v74
    %132 = vmatpush.msra.mxu0 %v73
    %133 = vmatpush.msra.mxu0 %v72
    %134 = vmatpush.msra.mxu0 %v71
    %135 = vmatpush.msra.mxu0 %v70
    %136 = vmatpush.msra.mxu0 %v69
    %137 = vmatmul.f32.gmra.mxu0 %v57
    %v138 = vpop.f32.mrf.mxu0
    %v139 = vadd.f32 %v119, %v138
    %140 = vmatmul.f32.gmra.mxu0 %v60
    %v141 = vpop.f32.mrf.mxu0
    %v142 = vadd.f32 %v119, %v141
    %143 = vmatmul.f32.gmra.mxu0 %v63
    %v144 = vpop.f32.mrf.mxu0
    %v145 = vadd.f32 %v119, %v144
    %146 = vmatmul.f32.gmra.mxu0 %v66
    %v147 = vpop.f32.mrf.mxu0
    %v148 = vadd.f32 %v119, %v147
    %149 = vdwg.mxu0
    %150 = vmatpush.msra.mxu0 %v100
    %151 = vmatpush.msra.mxu0 %v99
    %152 = vmatpush.msra.mxu0 %v98
    %153 = vmatpush.msra.mxu0 %v97
    %154 = vmatpush.msra.mxu0 %v96
    %155 = vmatpush.msra.mxu0 %v95
    %156 = vmatpush.msra.mxu0 %v94
    %157 = vmatpush.msra.mxu0 %v93
    %158 = vmatpush.msra.mxu0 %v92
    %159 = vmatpush.msra.mxu0 %v91
    %160 = vmatpush.msra.mxu0 %v90
    %161 = vmatpush.msra.mxu0 %v89
    %162 = vmatpush.msra.mxu0 %v88
    %163 = vmatpush.msra.mxu0 %v87
    %164 = vmatpush.msra.mxu0 %v86
    %165 = vmatpush.msra.mxu0 %v85
    %166 = vmatmul.f32.gmra.mxu0 %v58
    %v167 = vpop.f32.mrf.mxu0
    %v168 = vadd.f32 %v139, %v167
    %169 = vmatmul.f32.gmra.mxu0 %v61
    %v170 = vpop.f32.mrf.mxu0
    %v171 = vadd.f32 %v142, %v170
    %172 = vmatmul.f32.gmra.mxu0 %v64
    %v173 = vpop.f32.mrf.mxu0
    %v174 = vadd.f32 %v145, %v173
    %175 = vmatmul.f32.gmra.mxu0 %v67
    %v176 = vpop.f32.mrf.mxu0
    %v177 = vadd.f32 %v148, %v176
    %178 = vdwg.mxu0
    %179 = vmatpush.msra.mxu0 %v116
    %180 = vmatpush.msra.mxu0 %v115
    %181 = vmatpush.msra.mxu0 %v114
    %182 = vmatpush.msra.mxu0 %v113
    %183 = vmatpush.msra.mxu0 %v112
    %184 = vmatpush.msra.mxu0 %v111
    %185 = vmatpush.msra.mxu0 %v110
    %186 = vmatpush.msra.mxu0 %v109
    %187 = vmatpush.msra.mxu0 %v108
    %188 = vmatpush.msra.mxu0 %v107
    %189 = vmatpush.msra.mxu0 %v106
    %190 = vmatpush.msra.mxu0 %v105
    %191 = vmatpush.msra.mxu0 %v104
    %192 = vmatpush.msra.mxu0 %v103
    %193 = vmatpush.msra.mxu0 %v102
    %194 = vmatpush.msra.mxu0 %v101
    %195 = vmatmul.f32.gmra.mxu0 %v59
    %v196 = vpop.f32.mrf.mxu0
    %v197 = vadd.f32 %v168, %v196
    %198 = vmatmul.f32.gmra.mxu0 %v62
    %v199 = vpop.f32.mrf.mxu0
    %v200 = vadd.f32 %v171, %v199
    %201 = vmatmul.f32.gmra.mxu0 %v65
    %v202 = vpop.f32.mrf.mxu0
    %v203 = vadd.f32 %v174, %v202
    %204 = vmatmul.f32.gmra.mxu0 %v68
    %v205 = vpop.f32.mrf.mxu0
    %v206 = vadd.f32 %v177, %v205
    %207 = vdwg.mxu0
    %v208 = vmax.f32 %v197, 0.0
    %v209 = vmax.f32 %v200, 0.0
    %v210 = vmax.f32 %v203, 0.0
    %v211 = vmax.f32 %v206, 0.0
    %v212 = vld [vmem:[%s3] sm:$0xff]
    %v213 = vld [vmem:[%s3 + $0x8] sm:$0xff]
    %v214 = vld [vmem:[%s3 + $0x10] sm:$0xff]
    %v215 = vld [vmem:[%s3 + $0x18] sm:$0xff]
    %v216 = vld [vmem:[%s3 + $0x20] sm:$0xff]
    %v217 = vld [vmem:[%s3 + $0x28] sm:$0xff]
    %v218 = vld [vmem:[%s3 + $0x30] sm:$0xff]
    %v219 = vld [vmem:[%s3 + $0x38] sm:$0xff]
    %v220 = vld [vmem:[%s6] sm:$0x3]
    %v222 = vperm.slane %v220, 0
    %v223 = vperm.slane %v220, 1
    %vm226 = vcmask 261120
    %v228 = vsel %vm226, %v208, 0
    %v231 = vsel %vm226, %v209, 0
    %v234 = vsel %vm226, %v210, 0
    %v237 = vsel %vm226, %v211, 0
    %239 = vmatpush.msra.mxu0 0.0
    %240 = vmatpush.msra.mxu0 0.0
    %241 = vmatpush.msra.mxu0 0.0
    %242 = vmatpush.msra.mxu0 0.0
    %243 = vmatpush.msra.mxu0 0.0
    %244 = vmatpush.msra.mxu0 0.0
    %245 = vmatpush.msra.mxu0 0.0
    %246 = vmatpush.msra.mxu0 0.0
    %247 = vmatpush.msra.mxu0 0.0
    %248 = vmatpush.msra.mxu0 0.0
    %249 = vmatpush.msra.mxu0 0.0
    %250 = vmatpush.msra.mxu0 0.0
    %251 = vmatpush.msra.mxu0 %v218
    %252 = vmatpush.msra.mxu0 %v216
    %253 = vmatpush.msra.mxu0 %v214
    %254 = vmatpush.msra.mxu0 %v212
    %255 = vmatmul.f32.gmra.mxu0 %v228
    %v256 = vpop.f32.mrf.mxu0
    %v257 = vadd.f32 %v222, %v256
    %258 = vmatmul.f32.gmra.mxu0 %v231
    %v259 = vpop.f32.mrf.mxu0
    %v260 = vadd.f32 %v222, %v259
    %261 = vmatmul.f32.gmra.mxu0 %v234
    %v262 = vpop.f32.mrf.mxu0
    %v263 = vadd.f32 %v222, %v262
    %264 = vmatmul.f32.gmra.mxu0 %v237
    %v265 = vpop.f32.mrf.mxu0
    %v266 = vadd.f32 %v222, %v265
    %267 = vdwg.mxu0
    %268 = vmatpush.msra.mxu0 0.0
    %269 = vmatpush.msra.mxu0 0.0
    %270 = vmatpush.msra.mxu0 0.0
    %271 = vmatpush.msra.mxu0 0.0
    %272 = vmatpush.msra.mxu0 0.0
    %273 = vmatpush.msra.mxu0 0.0
    %274 = vmatpush.msra.mxu0 0.0
    %275 = vmatpush.msra.mxu0 0.0
    %276 = vmatpush.msra.mxu0 0.0
    %277 = vmatpush.msra.mxu0 0.0
    %278 = vmatpush.msra.mxu0 0.0
    %279 = vmatpush.msra.mxu0 0.0
    %280 = vmatpush.msra.mxu0 %v219
    %281 = vmatpush.msra.mxu0 %v217
    %282 = vmatpush.msra.mxu0 %v215
    %283 = vmatpush.msra.mxu0 %v213
    %284 = vmatmul.f32.gmra.mxu0 %v228
    %v285 = vpop.f32.mrf.mxu0
    %v286 = vadd.f32 %v223, %v285
    %287 = vmatmul.f32.gmra.mxu0 %v231
    %v288 = vpop.f32.mrf.mxu0
    %v289 = vadd.f32 %v223, %v288
    %290 = vmatmul.f32.gmra.mxu0 %v234
    %v291 = vpop.f32.mrf.mxu0
    %v292 = vadd.f32 %v223, %v291
    %293 = vmatmul.f32.gmra.mxu0 %v237
    %v294 = vpop.f32.mrf.mxu0
    %v295 = vadd.f32 %v223, %v294
    %296 = vdwg.mxu0
    %v297 = vld [vmem:[%s4] sm:$0xff]
    %v298 = vld [vmem:[%s4 + $0x8] sm:$0xff]
    %v299 = vld [vmem:[%s4 + $0x10] sm:$0xff]
    %v300 = vld [vmem:[%s4 + $0x18] sm:$0xff]
    %v301 = vld [vmem:[%s5] sm:$0xff]
    %v302 = vld [vmem:[%s5 + $0x8] sm:$0xff]
    %v303 = vld [vmem:[%s5 + $0x10] sm:$0xff]
    %v304 = vld [vmem:[%s5 + $0x18] sm:$0xff]
    %v306 = vsel %vm226, 0.0, 0
    %308 = vmatpush.msra.mxu0 0.0
    %309 = vmatpush.msra.mxu0 0.0
    %310 = vmatpush.msra.mxu0 0.0
    %311 = vmatpush.msra.mxu0 0.0
    %312 = vmatpush.msra.mxu0 0.0
    %313 = vmatpush.msra.mxu0 0.0
    %314 = vmatpush.msra.mxu0 0.0
    %315 = vmatpush.msra.mxu0 0.0
    %316 = vmatpush.msra.mxu0 0.0
    %317 = vmatpush.msra.mxu0 0.0
    %318 = vmatpush.msra.mxu0 0.0
    %319 = vmatpush.msra.mxu0 0.0
    %320 = vmatpush.msra.mxu0 %v300
    %321 = vmatpush.msra.mxu0 %v299
    %322 = vmatpush.msra.mxu0 %v298
    %323 = vmatpush.msra.mxu0 %v297
    %324 = vmatmul.f32.gmra.mxu0 %v306
    %v325 = vpop.f32.mrf.mxu0
    %v326 = vadd.f32 0.0, %v325
    %327 = vdwg.mxu0
    %v328 = vadd.f32 %v257, %v326
    %329 = vmatpush.msra.mxu0 0.0
    %330 = vmatpush.msra.mxu0 0.0
    %331 = vmatpush.msra.mxu0 0.0
    %332 = vmatpush.msra.mxu0 0.0
    %333 = vmatpush.msra.mxu0 0.0
    %334 = vmatpush.msra.mxu0 0.0
    %335 = vmatpush.msra.mxu0 0.0
    %336 = vmatpush.msra.mxu0 0.0
    %337 = vmatpush.msra.mxu0 0.0
    %338 = vmatpush.msra.mxu0 0.0
    %339 = vmatpush.msra.mxu0 0.0
    %340 = vmatpush.msra.mxu0 0.0
    %341 = vmatpush.msra.mxu0 %v304
    %342 = vmatpush.msra.mxu0 %v303
    %343 = vmatpush.msra.mxu0 %v302
    %344 = vmatpush.msra.mxu0 %v301
    %345 = vmatmul.f32.gmra.mxu0 %v306
    %v346 = vpop.f32.mrf.mxu0
    %v347 = vadd.f32 0.0, %v346
    %348 = vdwg.mxu0
    %v350 = vrot.slane %v347, 4
    %v352 = vadd.f32 %v295, %v350
    %vm353 = vcmask 1043456
    %v354 = vsel %vm353, %v328, %v352
    %v355 = vxor.u32 %v354, 2147483648
    %v356 = vmul.f32 %v355, 1.442695
    %v357 = vpow.pop %v356
    %v358 = vadd.f32 %v357, 1.0
    %v359 = vrcp.pop %v358
    %v360 = vmul.f32 %v358, %v359
    %v361 = vsub.f32 1.0, %v360
    %v362 = vmul.f32 %v359, %v361
    %v363 = vadd.f32 %v359, %v362
    %vm364 = vweird.f32 %v358
    %vm365 = vweird.f32 %v359
    %vm366 = vmor %vm364, %vm365
    %v367 = vsel %vm366, %v359, %v363
    %v368 = vand.u32 2147483647, %v358
    %vm369 = vcmp.eq.f32.partialorder %v368, 8.507059e+37
    %v370 = vand.u32 %v358, 2147483648
    %v371 = vor.u32 1.1754944e-38, %v370
    %v372 = vsel %vm369, %v371, %v367
    %v373 = vmul.f32 1.0, %v372
    %v374 = vtanh.pop %v354
    %v375 = vmul.f32 %v373, 0.0
    %377 = vrot.lane.b32.xlu0 %v374, 64
    %v378 = vpop.permute.xlu0 %377
    %v380 = vmul.f32 %v373, %v378
    %382 = vrot.lane.b32.xlu0 %v380, 32
    %v383 = vpop.permute.xlu0 %382
    %v385 = vadd.f32 %v375, %v383
    %v386 = vtanh.pop %v385
    %388 = vrot.lane.b32.xlu0 %v386, 64
    %v389 = vpop.permute.xlu0 %388
    %v391 = vmul.f32 %v373, %v389
    %393 = vrot.lane.b32.xlu0 %v391, 32
    %v394 = vpop.permute.xlu0 %393
    %vm396 = vcmask 257024
    %397 = vst.msk [vmem:[#allocation2] sm:$0xf] %vm396, %v394
    %398 = vrot.lane.b32.xlu0 %v391, 64
    %v399 = vpop.permute.xlu0 %398
    %vm401 = vcmask 523524
    %402 = vst.msk [vmem:[#allocation2 + $0x18] sm:$0xf0] %vm401, %v399
    %v403 = vsel %vm226, %v394, 0
    %405 = vmatpush.msra.mxu0 0.0
    %406 = vmatpush.msra.mxu0 0.0
    %407 = vmatpush.msra.mxu0 0.0
    %408 = vmatpush.msra.mxu0 0.0
    %409 = vmatpush.msra.mxu0 0.0
    %410 = vmatpush.msra.mxu0 0.0
    %411 = vmatpush.msra.mxu0 0.0
    %412 = vmatpush.msra.mxu0 0.0
    %413 = vmatpush.msra.mxu0 0.0
    %414 = vmatpush.msra.mxu0 0.0
    %415 = vmatpush.msra.mxu0 0.0
    %416 = vmatpush.msra.mxu0 0.0
    %417 = vmatpush.msra.mxu0 %v300
    %418 = vmatpush.msra.mxu0 %v299
    %419 = vmatpush.msra.mxu0 %v298
    %420 = vmatpush.msra.mxu0 %v297
    %421 = vmatmul.f32.gmra.mxu0 %v403
    %v422 = vpop.f32.mrf.mxu0
    %v423 = vadd.f32 0.0, %v422
    %424 = vdwg.mxu0
    %v426 = vrot.slane %v423, 4
    %v428 = vadd.f32 %v257, %v426
    %v429 = vrot.slane %v391, 4
    %430 = vrot.lane.b32.xlu0 %v429, 32
    %v431 = vpop.permute.xlu0 %430
    %v432 = vsel %vm226, %v431, 0
    %434 = vmatpush.msra.mxu0 0.0
    %435 = vmatpush.msra.mxu0 0.0
    %436 = vmatpush.msra.mxu0 0.0
    %437 = vmatpush.msra.mxu0 0.0
    %438 = vmatpush.msra.mxu0 0.0
    %439 = vmatpush.msra.mxu0 0.0
    %440 = vmatpush.msra.mxu0 0.0
    %441 = vmatpush.msra.mxu0 0.0
    %442 = vmatpush.msra.mxu0 0.0
    %443 = vmatpush.msra.mxu0 0.0
    %444 = vmatpush.msra.mxu0 0.0
    %445 = vmatpush.msra.mxu0 0.0
    %446 = vmatpush.msra.mxu0 %v304
    %447 = vmatpush.msra.mxu0 %v303
    %448 = vmatpush.msra.mxu0 %v302
    %449 = vmatpush.msra.mxu0 %v301
    %450 = vmatmul.f32.gmra.mxu0 %v432
    %v451 = vpop.f32.mrf.mxu0
    %v452 = vadd.f32 0.0, %v451
    %453 = vdwg.mxu0
    %v454 = vadd.f32 %v295, %v452
    %v456 = vrot.slane %v428, 4
    %v459 = vrot.slane %v454, 4
    %v461 = vsel %vm353, %v456, %v459
    %v462 = vxor.u32 %v461, 2147483648
    %v463 = vmul.f32 %v462, 1.442695
    %v464 = vpow.pop %v463
    %v465 = vadd.f32 %v464, 1.0
    %v466 = vrcp.pop %v465
    %v467 = vmul.f32 %v465, %v466
    %v468 = vsub.f32 1.0, %v467
    %v469 = vmul.f32 %v466, %v468
    %v470 = vadd.f32 %v466, %v469
    %vm471 = vweird.f32 %v465
    %vm472 = vweird.f32 %v466
    %vm473 = vmor %vm471, %vm472
    %v474 = vsel %vm473, %v466, %v470
    %v475 = vand.u32 2147483647, %v465
    %vm476 = vcmp.eq.f32.partialorder %v475, 8.507059e+37
    %v477 = vand.u32 %v465, 2147483648
    %v478 = vor.u32 1.1754944e-38, %v477
    %v479 = vsel %vm476, %v478, %v474
    %v480 = vmul.f32 1.0, %v479
    %v481 = vtanh.pop %v461
    %v482 = vmul.f32 %v480, %v385
    %484 = vrot.lane.b32.xlu0 %v481, 64
    %v485 = vpop.permute.xlu0 %484
    %v487 = vmul.f32 %v480, %v485
    %489 = vrot.lane.b32.xlu0 %v487, 32
    %v490 = vpop.permute.xlu0 %489
    %v492 = vadd.f32 %v482, %v490
    %v493 = vtanh.pop %v492
    %495 = vrot.lane.b32.xlu0 %v493, 64
    %v496 = vpop.permute.xlu0 %495
    %v498 = vmul.f32 %v480, %v496
    %500 = vrot.lane.b32.xlu0 %v498, 32
    %v501 = vpop.permute.xlu0 %500
    %503 = vst.msk [vmem:[#allocation2 + $0x4] sm:$0xf] %vm396, %v501
    %504 = vrot.lane.b32.xlu0 %v498, 64
    %v505 = vpop.permute.xlu0 %504
    %507 = vst.msk [vmem:[#allocation2 + $0x14] sm:$0xf0] %vm401, %v505
    %v508 = vsel %vm226, %v501, 0
    %510 = vmatpush.msra.mxu0 0.0
    %511 = vmatpush.msra.mxu0 0.0
    %512 = vmatpush.msra.mxu0 0.0
    %513 = vmatpush.msra.mxu0 0.0
    %514 = vmatpush.msra.mxu0 0.0
    %515 = vmatpush.msra.mxu0 0.0
    %516 = vmatpush.msra.mxu0 0.0
    %517 = vmatpush.msra.mxu0 0.0
    %518 = vmatpush.msra.mxu0 0.0
    %519 = vmatpush.msra.mxu0 0.0
    %520 = vmatpush.msra.mxu0 0.0
    %521 = vmatpush.msra.mxu0 0.0
    %522 = vmatpush.msra.mxu0 %v300
    %523 = vmatpush.msra.mxu0 %v299
    %524 = vmatpush.msra.mxu0 %v298
    %525 = vmatpush.msra.mxu0 %v297
    %526 = vmatmul.f32.gmra.mxu0 %v508
    %v527 = vpop.f32.mrf.mxu0
    %v528 = vadd.f32 0.0, %v527
    %529 = vdwg.mxu0
    %v530 = vadd.f32 %v260, %v528
    %v531 = vrot.slane %v498, 4
    %532 = vrot.lane.b32.xlu0 %v531, 32
    %v533 = vpop.permute.xlu0 %532
    %v534 = vsel %vm226, %v533, 0
    %536 = vmatpush.msra.mxu0 0.0
    %537 = vmatpush.msra.mxu0 0.0
    %538 = vmatpush.msra.mxu0 0.0
    %539 = vmatpush.msra.mxu0 0.0
    %540 = vmatpush.msra.mxu0 0.0
    %541 = vmatpush.msra.mxu0 0.0
    %542 = vmatpush.msra.mxu0 0.0
    %543 = vmatpush.msra.mxu0 0.0
    %544 = vmatpush.msra.mxu0 0.0
    %545 = vmatpush.msra.mxu0 0.0
    %546 = vmatpush.msra.mxu0 0.0
    %547 = vmatpush.msra.mxu0 0.0
    %548 = vmatpush.msra.mxu0 %v304
    %549 = vmatpush.msra.mxu0 %v303
    %550 = vmatpush.msra.mxu0 %v302
    %551 = vmatpush.msra.mxu0 %v301
    %552 = vmatmul.f32.gmra.mxu0 %v534
    %v553 = vpop.f32.mrf.mxu0
    %v554 = vadd.f32 0.0, %v553
    %555 = vdwg.mxu0
    %v557 = vrot.slane %v554, 4
    %v559 = vadd.f32 %v292, %v557
    %v560 = vsel %vm353, %v530, %v559
    %v561 = vxor.u32 %v560, 2147483648
    %v562 = vmul.f32 %v561, 1.442695
    %v563 = vpow.pop %v562
    %v564 = vadd.f32 %v563, 1.0
    %v565 = vrcp.pop %v564
    %v566 = vmul.f32 %v564, %v565
    %v567 = vsub.f32 1.0, %v566
    %v568 = vmul.f32 %v565, %v567
    %v569 = vadd.f32 %v565, %v568
    %vm570 = vweird.f32 %v564
    %vm571 = vweird.f32 %v565
    %vm572 = vmor %vm570, %vm571
    %v573 = vsel %vm572, %v565, %v569
    %v574 = vand.u32 2147483647, %v564
    %vm575 = vcmp.eq.f32.partialorder %v574, 8.507059e+37
    %v576 = vand.u32 %v564, 2147483648
    %v577 = vor.u32 1.1754944e-38, %v576
    %v578 = vsel %vm575, %v577, %v573
    %v579 = vmul.f32 1.0, %v578
    %v580 = vtanh.pop %v560
    %v581 = vmul.f32 %v579, %v492
    %583 = vrot.lane.b32.xlu0 %v580, 64
    %v584 = vpop.permute.xlu0 %583
    %v586 = vmul.f32 %v579, %v584
    %588 = vrot.lane.b32.xlu0 %v586, 32
    %v589 = vpop.permute.xlu0 %588
    %v591 = vadd.f32 %v581, %v589
    %v592 = vtanh.pop %v591
    %594 = vrot.lane.b32.xlu0 %v592, 64
    %v595 = vpop.permute.xlu0 %594
    %v597 = vmul.f32 %v579, %v595
    %599 = vrot.lane.b32.xlu0 %v597, 32
    %v600 = vpop.permute.xlu0 %599
    %602 = vst.msk [vmem:[#allocation2 + $0x8] sm:$0xf] %vm396, %v600
    %603 = vrot.lane.b32.xlu0 %v597, 64
    %v604 = vpop.permute.xlu0 %603
    %606 = vst.msk [vmem:[#allocation2 + $0x10] sm:$0xf0] %vm401, %v604
    %v607 = vsel %vm226, %v600, 0
    %609 = vmatpush.msra.mxu0 0.0
    %610 = vmatpush.msra.mxu0 0.0
    %611 = vmatpush.msra.mxu0 0.0
    %612 = vmatpush.msra.mxu0 0.0
    %613 = vmatpush.msra.mxu0 0.0
    %614 = vmatpush.msra.mxu0 0.0
    %615 = vmatpush.msra.mxu0 0.0
    %616 = vmatpush.msra.mxu0 0.0
    %617 = vmatpush.msra.mxu0 0.0
    %618 = vmatpush.msra.mxu0 0.0
    %619 = vmatpush.msra.mxu0 0.0
    %620 = vmatpush.msra.mxu0 0.0
    %621 = vmatpush.msra.mxu0 %v300
    %622 = vmatpush.msra.mxu0 %v299
    %623 = vmatpush.msra.mxu0 %v298
    %624 = vmatpush.msra.mxu0 %v297
    %625 = vmatmul.f32.gmra.mxu0 %v607
    %v626 = vpop.f32.mrf.mxu0
    %v627 = vadd.f32 0.0, %v626
    %628 = vdwg.mxu0
    %v630 = vrot.slane %v627, 4
    %v632 = vadd.f32 %v260, %v630
    %v633 = vrot.slane %v597, 4
    %634 = vrot.lane.b32.xlu0 %v633, 32
    %v635 = vpop.permute.xlu0 %634
    %v636 = vsel %vm226, %v635, 0
    %638 = vmatpush.msra.mxu0 0.0
    %639 = vmatpush.msra.mxu0 0.0
    %640 = vmatpush.msra.mxu0 0.0
    %641 = vmatpush.msra.mxu0 0.0
    %642 = vmatpush.msra.mxu0 0.0
    %643 = vmatpush.msra.mxu0 0.0
    %644 = vmatpush.msra.mxu0 0.0
    %645 = vmatpush.msra.mxu0 0.0
    %646 = vmatpush.msra.mxu0 0.0
    %647 = vmatpush.msra.mxu0 0.0
    %648 = vmatpush.msra.mxu0 0.0
    %649 = vmatpush.msra.mxu0 0.0
    %650 = vmatpush.msra.mxu0 %v304
    %651 = vmatpush.msra.mxu0 %v303
    %652 = vmatpush.msra.mxu0 %v302
    %653 = vmatpush.msra.mxu0 %v301
    %654 = vmatmul.f32.gmra.mxu0 %v636
    %v655 = vpop.f32.mrf.mxu0
    %v656 = vadd.f32 0.0, %v655
    %657 = vdwg.mxu0
    %v658 = vadd.f32 %v292, %v656
    %v660 = vrot.slane %v632, 4
    %v663 = vrot.slane %v658, 4
    %v665 = vsel %vm353, %v660, %v663
    %v666 = vxor.u32 %v665, 2147483648
    %v667 = vmul.f32 %v666, 1.442695
    %v668 = vpow.pop %v667
    %v669 = vadd.f32 %v668, 1.0
    %v670 = vrcp.pop %v669
    %v671 = vmul.f32 %v669, %v670
    %v672 = vsub.f32 1.0, %v671
    %v673 = vmul.f32 %v670, %v672
    %v674 = vadd.f32 %v670, %v673
    %vm675 = vweird.f32 %v669
    %vm676 = vweird.f32 %v670
    %vm677 = vmor %vm675, %vm676
    %v678 = vsel %vm677, %v670, %v674
    %v679 = vand.u32 2147483647, %v669
    %vm680 = vcmp.eq.f32.partialorder %v679, 8.507059e+37
    %v681 = vand.u32 %v669, 2147483648
    %v682 = vor.u32 1.1754944e-38, %v681
    %v683 = vsel %vm680, %v682, %v678
    %v684 = vmul.f32 1.0, %v683
    %v685 = vtanh.pop %v665
    %v686 = vmul.f32 %v684, %v591
    %688 = vrot.lane.b32.xlu0 %v685, 64
    %v689 = vpop.permute.xlu0 %688
    %v691 = vmul.f32 %v684, %v689
    %693 = vrot.lane.b32.xlu0 %v691, 32
    %v694 = vpop.permute.xlu0 %693
    %v696 = vadd.f32 %v686, %v694
    %v697 = vtanh.pop %v696
    %699 = vrot.lane.b32.xlu0 %v697, 64
    %v700 = vpop.permute.xlu0 %699
    %v702 = vmul.f32 %v684, %v700
    %704 = vrot.lane.b32.xlu0 %v702, 32
    %v705 = vpop.permute.xlu0 %704
    %707 = vst.msk [vmem:[#allocation2 + $0xc] sm:$0xf] %vm396, %v705
    %708 = vrot.lane.b32.xlu0 %v702, 64
    %v709 = vpop.permute.xlu0 %708
    %711 = vst.msk [vmem:[#allocation2 + $0xc] sm:$0xf0] %vm401, %v709
    %v712 = vsel %vm226, %v705, 0
    %714 = vmatpush.msra.mxu0 0.0
    %715 = vmatpush.msra.mxu0 0.0
    %716 = vmatpush.msra.mxu0 0.0
    %717 = vmatpush.msra.mxu0 0.0
    %718 = vmatpush.msra.mxu0 0.0
    %719 = vmatpush.msra.mxu0 0.0
    %720 = vmatpush.msra.mxu0 0.0
    %721 = vmatpush.msra.mxu0 0.0
    %722 = vmatpush.msra.mxu0 0.0
    %723 = vmatpush.msra.mxu0 0.0
    %724 = vmatpush.msra.mxu0 0.0
    %725 = vmatpush.msra.mxu0 0.0
    %726 = vmatpush.msra.mxu0 %v300
    %727 = vmatpush.msra.mxu0 %v299
    %728 = vmatpush.msra.mxu0 %v298
    %729 = vmatpush.msra.mxu0 %v297
    %730 = vmatmul.f32.gmra.mxu0 %v712
    %v731 = vpop.f32.mrf.mxu0
    %v732 = vadd.f32 0.0, %v731
    %733 = vdwg.mxu0
    %v734 = vadd.f32 %v263, %v732
    %v735 = vrot.slane %v702, 4
    %736 = vrot.lane.b32.xlu0 %v735, 32
    %v737 = vpop.permute.xlu0 %736
    %v738 = vsel %vm226, %v737, 0
    %740 = vmatpush.msra.mxu0 0.0
    %741 = vmatpush.msra.mxu0 0.0
    %742 = vmatpush.msra.mxu0 0.0
    %743 = vmatpush.msra.mxu0 0.0
    %744 = vmatpush.msra.mxu0 0.0
    %745 = vmatpush.msra.mxu0 0.0
    %746 = vmatpush.msra.mxu0 0.0
    %747 = vmatpush.msra.mxu0 0.0
    %748 = vmatpush.msra.mxu0 0.0
    %749 = vmatpush.msra.mxu0 0.0
    %750 = vmatpush.msra.mxu0 0.0
    %751 = vmatpush.msra.mxu0 0.0
    %752 = vmatpush.msra.mxu0 %v304
    %753 = vmatpush.msra.mxu0 %v303
    %754 = vmatpush.msra.mxu0 %v302
    %755 = vmatpush.msra.mxu0 %v301
    %756 = vmatmul.f32.gmra.mxu0 %v738
    %v757 = vpop.f32.mrf.mxu0
    %v758 = vadd.f32 0.0, %v757
    %759 = vdwg.mxu0
    %v761 = vrot.slane %v758, 4
    %v763 = vadd.f32 %v289, %v761
    %v764 = vsel %vm353, %v734, %v763
    %v765 = vxor.u32 %v764, 2147483648
    %v766 = vmul.f32 %v765, 1.442695
    %v767 = vpow.pop %v766
    %v768 = vadd.f32 %v767, 1.0
    %v769 = vrcp.pop %v768
    %v770 = vmul.f32 %v768, %v769
    %v771 = vsub.f32 1.0, %v770
    %v772 = vmul.f32 %v769, %v771
    %v773 = vadd.f32 %v769, %v772
    %vm774 = vweird.f32 %v768
    %vm775 = vweird.f32 %v769
    %vm776 = vmor %vm774, %vm775
    %v777 = vsel %vm776, %v769, %v773
    %v778 = vand.u32 2147483647, %v768
    %vm779 = vcmp.eq.f32.partialorder %v778, 8.507059e+37
    %v780 = vand.u32 %v768, 2147483648
    %v781 = vor.u32 1.1754944e-38, %v780
    %v782 = vsel %vm779, %v781, %v777
    %v783 = vmul.f32 1.0, %v782
    %v784 = vtanh.pop %v764
    %v785 = vmul.f32 %v783, %v696
    %787 = vrot.lane.b32.xlu0 %v784, 64
    %v788 = vpop.permute.xlu0 %787
    %v790 = vmul.f32 %v783, %v788
    %792 = vrot.lane.b32.xlu0 %v790, 32
    %v793 = vpop.permute.xlu0 %792
    %v795 = vadd.f32 %v785, %v793
    %v796 = vtanh.pop %v795
    %798 = vrot.lane.b32.xlu0 %v796, 64
    %v799 = vpop.permute.xlu0 %798
    %v801 = vmul.f32 %v783, %v799
    %803 = vrot.lane.b32.xlu0 %v801, 32
    %v804 = vpop.permute.xlu0 %803
    %806 = vst.msk [vmem:[#allocation2 + $0x10] sm:$0xf] %vm396, %v804
    %807 = vrot.lane.b32.xlu0 %v801, 64
    %v808 = vpop.permute.xlu0 %807
    %810 = vst.msk [vmem:[#allocation2 + $0x8] sm:$0xf0] %vm401, %v808
    %v811 = vsel %vm226, %v804, 0
    %813 = vmatpush.msra.mxu0 0.0
    %814 = vmatpush.msra.mxu0 0.0
    %815 = vmatpush.msra.mxu0 0.0
    %816 = vmatpush.msra.mxu0 0.0
    %817 = vmatpush.msra.mxu0 0.0
    %818 = vmatpush.msra.mxu0 0.0
    %819 = vmatpush.msra.mxu0 0.0
    %820 = vmatpush.msra.mxu0 0.0
    %821 = vmatpush.msra.mxu0 0.0
    %822 = vmatpush.msra.mxu0 0.0
    %823 = vmatpush.msra.mxu0 0.0
    %824 = vmatpush.msra.mxu0 0.0
    %825 = vmatpush.msra.mxu0 %v300
    %826 = vmatpush.msra.mxu0 %v299
    %827 = vmatpush.msra.mxu0 %v298
    %828 = vmatpush.msra.mxu0 %v297
    %829 = vmatmul.f32.gmra.mxu0 %v811
    %v830 = vpop.f32.mrf.mxu0
    %v831 = vadd.f32 0.0, %v830
    %832 = vdwg.mxu0
    %v834 = vrot.slane %v831, 4
    %v836 = vadd.f32 %v263, %v834
    %v837 = vrot.slane %v801, 4
    %838 = vrot.lane.b32.xlu0 %v837, 32
    %v839 = vpop.permute.xlu0 %838
    %v840 = vsel %vm226, %v839, 0
    %842 = vmatpush.msra.mxu0 0.0
    %843 = vmatpush.msra.mxu0 0.0
    %844 = vmatpush.msra.mxu0 0.0
    %845 = vmatpush.msra.mxu0 0.0
    %846 = vmatpush.msra.mxu0 0.0
    %847 = vmatpush.msra.mxu0 0.0
    %848 = vmatpush.msra.mxu0 0.0
    %849 = vmatpush.msra.mxu0 0.0
    %850 = vmatpush.msra.mxu0 0.0
    %851 = vmatpush.msra.mxu0 0.0
    %852 = vmatpush.msra.mxu0 0.0
    %853 = vmatpush.msra.mxu0 0.0
    %854 = vmatpush.msra.mxu0 %v304
    %855 = vmatpush.msra.mxu0 %v303
    %856 = vmatpush.msra.mxu0 %v302
    %857 = vmatpush.msra.mxu0 %v301
    %858 = vmatmul.f32.gmra.mxu0 %v840
    %v859 = vpop.f32.mrf.mxu0
    %v860 = vadd.f32 0.0, %v859
    %861 = vdwg.mxu0
    %v862 = vadd.f32 %v289, %v860
    %v864 = vrot.slane %v836, 4
    %v867 = vrot.slane %v862, 4
    %v869 = vsel %vm353, %v864, %v867
    %v870 = vxor.u32 %v869, 2147483648
    %v871 = vmul.f32 %v870, 1.442695
    %v872 = vpow.pop %v871
    %v873 = vadd.f32 %v872, 1.0
    %v874 = vrcp.pop %v873
    %v875 = vmul.f32 %v873, %v874
    %v876 = vsub.f32 1.0, %v875
    %v877 = vmul.f32 %v874, %v876
    %v878 = vadd.f32 %v874, %v877
    %vm879 = vweird.f32 %v873
    %vm880 = vweird.f32 %v874
    %vm881 = vmor %vm879, %vm880
    %v882 = vsel %vm881, %v874, %v878
    %v883 = vand.u32 2147483647, %v873
    %vm884 = vcmp.eq.f32.partialorder %v883, 8.507059e+37
    %v885 = vand.u32 %v873, 2147483648
    %v886 = vor.u32 1.1754944e-38, %v885
    %v887 = vsel %vm884, %v886, %v882
    %v888 = vmul.f32 1.0, %v887
    %v889 = vtanh.pop %v869
    %v890 = vmul.f32 %v888, %v795
    %892 = vrot.lane.b32.xlu0 %v889, 64
    %v893 = vpop.permute.xlu0 %892
    %v895 = vmul.f32 %v888, %v893
    %897 = vrot.lane.b32.xlu0 %v895, 32
    %v898 = vpop.permute.xlu0 %897
    %v900 = vadd.f32 %v890, %v898
    %v901 = vtanh.pop %v900
    %903 = vrot.lane.b32.xlu0 %v901, 64
    %v904 = vpop.permute.xlu0 %903
    %v906 = vmul.f32 %v888, %v904
    %908 = vrot.lane.b32.xlu0 %v906, 32
    %v909 = vpop.permute.xlu0 %908
    %911 = vst.msk [vmem:[#allocation2 + $0x14] sm:$0xf] %vm396, %v909
    %912 = vrot.lane.b32.xlu0 %v906, 64
    %v913 = vpop.permute.xlu0 %912
    %915 = vst.msk [vmem:[#allocation2 + $0x4] sm:$0xf0] %vm401, %v913
    %v916 = vsel %vm226, %v909, 0
    %918 = vmatpush.msra.mxu0 0.0
    %919 = vmatpush.msra.mxu0 0.0
    %920 = vmatpush.msra.mxu0 0.0
    %921 = vmatpush.msra.mxu0 0.0
    %922 = vmatpush.msra.mxu0 0.0
    %923 = vmatpush.msra.mxu0 0.0
    %924 = vmatpush.msra.mxu0 0.0
    %925 = vmatpush.msra.mxu0 0.0
    %926 = vmatpush.msra.mxu0 0.0
    %927 = vmatpush.msra.mxu0 0.0
    %928 = vmatpush.msra.mxu0 0.0
    %929 = vmatpush.msra.mxu0 0.0
    %930 = vmatpush.msra.mxu0 %v300
    %931 = vmatpush.msra.mxu0 %v299
    %932 = vmatpush.msra.mxu0 %v298
    %933 = vmatpush.msra.mxu0 %v297
    %934 = vmatmul.f32.gmra.mxu0 %v916
    %v935 = vpop.f32.mrf.mxu0
    %v936 = vadd.f32 0.0, %v935
    %937 = vdwg.mxu0
    %v938 = vadd.f32 %v266, %v936
    %v939 = vrot.slane %v906, 4
    %940 = vrot.lane.b32.xlu0 %v939, 32
    %v941 = vpop.permute.xlu0 %940
    %v942 = vsel %vm226, %v941, 0
    %944 = vmatpush.msra.mxu0 0.0
    %945 = vmatpush.msra.mxu0 0.0
    %946 = vmatpush.msra.mxu0 0.0
    %947 = vmatpush.msra.mxu0 0.0
    %948 = vmatpush.msra.mxu0 0.0
    %949 = vmatpush.msra.mxu0 0.0
    %950 = vmatpush.msra.mxu0 0.0
    %951 = vmatpush.msra.mxu0 0.0
    %952 = vmatpush.msra.mxu0 0.0
    %953 = vmatpush.msra.mxu0 0.0
    %954 = vmatpush.msra.mxu0 0.0
    %955 = vmatpush.msra.mxu0 0.0
    %956 = vmatpush.msra.mxu0 %v304
    %957 = vmatpush.msra.mxu0 %v303
    %958 = vmatpush.msra.mxu0 %v302
    %959 = vmatpush.msra.mxu0 %v301
    %960 = vmatmul.f32.gmra.mxu0 %v942
    %v961 = vpop.f32.mrf.mxu0
    %v962 = vadd.f32 0.0, %v961
    %963 = vdwg.mxu0
    %v965 = vrot.slane %v962, 4
    %v967 = vadd.f32 %v286, %v965
    %v968 = vsel %vm353, %v938, %v967
    %v969 = vxor.u32 %v968, 2147483648
    %v970 = vmul.f32 %v969, 1.442695
    %v971 = vpow.pop %v970
    %v972 = vadd.f32 %v971, 1.0
    %v973 = vrcp.pop %v972
    %v974 = vmul.f32 %v972, %v973
    %v975 = vsub.f32 1.0, %v974
    %v976 = vmul.f32 %v973, %v975
    %v977 = vadd.f32 %v973, %v976
    %vm978 = vweird.f32 %v972
    %vm979 = vweird.f32 %v973
    %vm980 = vmor %vm978, %vm979
    %v981 = vsel %vm980, %v973, %v977
    %v982 = vand.u32 2147483647, %v972
    %vm983 = vcmp.eq.f32.partialorder %v982, 8.507059e+37
    %v984 = vand.u32 %v972, 2147483648
    %v985 = vor.u32 1.1754944e-38, %v984
    %v986 = vsel %vm983, %v985, %v981
    %v987 = vmul.f32 1.0, %v986
    %v988 = vtanh.pop %v968
    %v989 = vmul.f32 %v987, %v900
    %991 = vrot.lane.b32.xlu0 %v988, 64
    %v992 = vpop.permute.xlu0 %991
    %v994 = vmul.f32 %v987, %v992
    %996 = vrot.lane.b32.xlu0 %v994, 32
    %v997 = vpop.permute.xlu0 %996
    %v999 = vadd.f32 %v989, %v997
    %v1000 = vtanh.pop %v999
    %1002 = vrot.lane.b32.xlu0 %v1000, 64
    %v1003 = vpop.permute.xlu0 %1002
    %v1005 = vmul.f32 %v987, %v1003
    %1007 = vrot.lane.b32.xlu0 %v1005, 32
    %v1008 = vpop.permute.xlu0 %1007
    %1010 = vst.msk [vmem:[#allocation2 + $0x18] sm:$0xf] %vm396, %v1008
    %1011 = vrot.lane.b32.xlu0 %v1005, 64
    %v1012 = vpop.permute.xlu0 %1011
    %1014 = vst.msk [vmem:[#allocation2] sm:$0xf0] %vm401, %v1012
    %v1015 = vsel %vm226, %v1008, 0
    %1017 = vmatpush.msra.mxu0 0.0
    %1018 = vmatpush.msra.mxu0 0.0
    %1019 = vmatpush.msra.mxu0 0.0
    %1020 = vmatpush.msra.mxu0 0.0
    %1021 = vmatpush.msra.mxu0 0.0
    %1022 = vmatpush.msra.mxu0 0.0
    %1023 = vmatpush.msra.mxu0 0.0
    %1024 = vmatpush.msra.mxu0 0.0
    %1025 = vmatpush.msra.mxu0 0.0
    %1026 = vmatpush.msra.mxu0 0.0
    %1027 = vmatpush.msra.mxu0 0.0
    %1028 = vmatpush.msra.mxu0 0.0
    %1029 = vmatpush.msra.mxu0 %v300
    %1030 = vmatpush.msra.mxu0 %v299
    %1031 = vmatpush.msra.mxu0 %v298
    %1032 = vmatpush.msra.mxu0 %v297
    %1033 = vmatmul.f32.gmra.mxu0 %v1015
    %v1034 = vpop.f32.mrf.mxu0
    %v1035 = vadd.f32 0.0, %v1034
    %1036 = vdwg.mxu0
    %v1038 = vrot.slane %v1035, 4
    %v1040 = vadd.f32 %v266, %v1038
    %v1041 = vrot.slane %v1005, 4
    %1042 = vrot.lane.b32.xlu0 %v1041, 32
    %v1043 = vpop.permute.xlu0 %1042
    %v1044 = vsel %vm226, %v1043, 0
    %1046 = vmatpush.msra.mxu0 0.0
    %1047 = vmatpush.msra.mxu0 0.0
    %1048 = vmatpush.msra.mxu0 0.0
    %1049 = vmatpush.msra.mxu0 0.0
    %1050 = vmatpush.msra.mxu0 0.0
    %1051 = vmatpush.msra.mxu0 0.0
    %1052 = vmatpush.msra.mxu0 0.0
    %1053 = vmatpush.msra.mxu0 0.0
    %1054 = vmatpush.msra.mxu0 0.0
    %1055 = vmatpush.msra.mxu0 0.0
    %1056 = vmatpush.msra.mxu0 0.0
    %1057 = vmatpush.msra.mxu0 0.0
    %1058 = vmatpush.msra.mxu0 %v304
    %1059 = vmatpush.msra.mxu0 %v303
    %1060 = vmatpush.msra.mxu0 %v302
    %1061 = vmatpush.msra.mxu0 %v301
    %1062 = vmatmul.f32.gmra.mxu0 %v1044
    %v1063 = vpop.f32.mrf.mxu0
    %v1064 = vadd.f32 0.0, %v1063
    %1065 = vdwg.mxu0
    %v1066 = vadd.f32 %v286, %v1064
    %v1068 = vrot.slane %v1040, 4
    %v1071 = vrot.slane %v1066, 4
    %v1073 = vsel %vm353, %v1068, %v1071
    %v1074 = vxor.u32 %v1073, 2147483648
    %v1075 = vmul.f32 %v1074, 1.442695
    %v1076 = vpow.pop %v1075
    %v1077 = vadd.f32 %v1076, 1.0
    %v1078 = vrcp.pop %v1077
    %v1079 = vmul.f32 %v1077, %v1078
    %v1080 = vsub.f32 1.0, %v1079
    %v1081 = vmul.f32 %v1078, %v1080
    %v1082 = vadd.f32 %v1078, %v1081
    %vm1083 = vweird.f32 %v1077
    %vm1084 = vweird.f32 %v1078
    %vm1085 = vmor %vm1083, %vm1084
    %v1086 = vsel %vm1085, %v1078, %v1082
    %v1087 = vand.u32 2147483647, %v1077
    %vm1088 = vcmp.eq.f32.partialorder %v1087, 8.507059e+37
    %v1089 = vand.u32 %v1077, 2147483648
    %v1090 = vor.u32 1.1754944e-38, %v1089
    %v1091 = vsel %vm1088, %v1090, %v1086
    %v1092 = vmul.f32 1.0, %v1091
    %v1093 = vtanh.pop %v1073
    %v1094 = vmul.f32 %v1092, %v999
    %1096 = vrot.lane.b32.xlu0 %v1093, 64
    %v1097 = vpop.permute.xlu0 %1096
    %v1099 = vmul.f32 %v1092, %v1097
    %1101 = vrot.lane.b32.xlu0 %v1099, 32
    %v1102 = vpop.permute.xlu0 %1101
    %v1104 = vadd.f32 %v1094, %v1102
    %v1105 = vtanh.pop %v1104
    %1107 = vrot.lane.b32.xlu0 %v1105, 64
    %v1108 = vpop.permute.xlu0 %1107
    %v1110 = vmul.f32 %v1092, %v1108
    %1112 = vrot.lane.b32.xlu0 %v1110, 32
    %v1113 = vpop.permute.xlu0 %1112
    %1115 = vst.msk [vmem:[#allocation2 + $0x1c] sm:$0xf] %vm396, %v1113
    %1116 = vrot.lane.b32.xlu0 %v1110, 64
    %v1117 = vpop.permute.xlu0 %1116
    %1119 = vst.msk [vmem:[#allocation2 - $0x4] sm:$0xf0] %vm401, %v1117
    %v1120 = vld [vmem:[#allocation2] sm:$0xff]
    %v1121 = vld [vmem:[#allocation2 + $0x8] sm:$0xff]
    %v1122 = vld [vmem:[#allocation2 + $0x10] sm:$0xff]
    %v1123 = vld [vmem:[#allocation2 + $0x18] sm:$0xff]
    %v1124 = vld [vmem:[%s7] sm:$0xff]
    %v1125 = vld [vmem:[%s7 + $0x8] sm:$0xff]
    %v1126 = vld [vmem:[%s7 + $0x10] sm:$0xff]
    %v1127 = vld [vmem:[%s7 + $0x18] sm:$0xff]
    %v1128 = vld [vmem:[%s7 + $0x20] sm:$0xff]
    %v1129 = vld [vmem:[%s7 + $0x28] sm:$0xff]
    %v1130 = vld [vmem:[%s7 + $0x30] sm:$0xff]
    %v1131 = vld [vmem:[%s7 + $0x38] sm:$0xff]
    %v1132 = vld [vmem:[%s7 + $0x40] sm:$0xff]
    %v1133 = vld [vmem:[%s7 + $0x48] sm:$0xff]
    %v1134 = vld [vmem:[%s7 + $0x50] sm:$0xff]
    %v1135 = vld [vmem:[%s7 + $0x58] sm:$0xff]
    %v1136 = vld [vmem:[%s7 + $0x60] sm:$0xff]
    %v1137 = vld [vmem:[%s7 + $0x68] sm:$0xff]
    %v1138 = vld [vmem:[%s7 + $0x70] sm:$0xff]
    %v1139 = vld [vmem:[%s7 + $0x78] sm:$0xff]
    %v1140 = vld [vmem:[%s10] sm:$0x3]
    %v1142 = vperm.slane %v1140, 0
    %v1143 = vperm.slane %v1140, 1
    %vm1146 = vcmask 523264
    %v1148 = vsel %vm1146, %v1120, 0
    %v1151 = vsel %vm1146, %v1121, 0
    %v1154 = vsel %vm1146, %v1122, 0
    %v1157 = vsel %vm1146, %v1123, 0
    %1159 = vmatpush.msra.mxu0 0.0
    %1160 = vmatpush.msra.mxu0 0.0
    %1161 = vmatpush.msra.mxu0 0.0
    %1162 = vmatpush.msra.mxu0 0.0
    %1163 = vmatpush.msra.mxu0 0.0
    %1164 = vmatpush.msra.mxu0 0.0
    %1165 = vmatpush.msra.mxu0 0.0
    %1166 = vmatpush.msra.mxu0 0.0
    %1167 = vmatpush.msra.mxu0 %v1138
    %1168 = vmatpush.msra.mxu0 %v1136
    %1169 = vmatpush.msra.mxu0 %v1134
    %1170 = vmatpush.msra.mxu0 %v1132
    %1171 = vmatpush.msra.mxu0 %v1130
    %1172 = vmatpush.msra.mxu0 %v1128
    %1173 = vmatpush.msra.mxu0 %v1126
    %1174 = vmatpush.msra.mxu0 %v1124
    %1175 = vmatmul.f32.gmra.mxu0 %v1148
    %v1176 = vpop.f32.mrf.mxu0
    %v1177 = vadd.f32 %v1142, %v1176
    %1178 = vmatmul.f32.gmra.mxu0 %v1151
    %v1179 = vpop.f32.mrf.mxu0
    %v1180 = vadd.f32 %v1142, %v1179
    %1181 = vmatmul.f32.gmra.mxu0 %v1154
    %v1182 = vpop.f32.mrf.mxu0
    %v1183 = vadd.f32 %v1142, %v1182
    %1184 = vmatmul.f32.gmra.mxu0 %v1157
    %v1185 = vpop.f32.mrf.mxu0
    %v1186 = vadd.f32 %v1142, %v1185
    %1187 = vdwg.mxu0
    %1188 = vmatpush.msra.mxu0 0.0
    %1189 = vmatpush.msra.mxu0 0.0
    %1190 = vmatpush.msra.mxu0 0.0
    %1191 = vmatpush.msra.mxu0 0.0
    %1192 = vmatpush.msra.mxu0 0.0
    %1193 = vmatpush.msra.mxu0 0.0
    %1194 = vmatpush.msra.mxu0 0.0
    %1195 = vmatpush.msra.mxu0 0.0
    %1196 = vmatpush.msra.mxu0 %v1139
    %1197 = vmatpush.msra.mxu0 %v1137
    %1198 = vmatpush.msra.mxu0 %v1135
    %1199 = vmatpush.msra.mxu0 %v1133
    %1200 = vmatpush.msra.mxu0 %v1131
    %1201 = vmatpush.msra.mxu0 %v1129
    %1202 = vmatpush.msra.mxu0 %v1127
    %1203 = vmatpush.msra.mxu0 %v1125
    %1204 = vmatmul.f32.gmra.mxu0 %v1148
    %v1205 = vpop.f32.mrf.mxu0
    %v1206 = vadd.f32 %v1143, %v1205
    %1207 = vmatmul.f32.gmra.mxu0 %v1151
    %v1208 = vpop.f32.mrf.mxu0
    %v1209 = vadd.f32 %v1143, %v1208
    %1210 = vmatmul.f32.gmra.mxu0 %v1154
    %v1211 = vpop.f32.mrf.mxu0
    %v1212 = vadd.f32 %v1143, %v1211
    %1213 = vmatmul.f32.gmra.mxu0 %v1157
    %v1214 = vpop.f32.mrf.mxu0
    %v1215 = vadd.f32 %v1143, %v1214
    %1216 = vdwg.mxu0
    %v1217 = vld [vmem:[%s8] sm:$0xff]
    %v1218 = vld [vmem:[%s8 + $0x8] sm:$0xff]
    %v1219 = vld [vmem:[%s8 + $0x10] sm:$0xff]
    %v1220 = vld [vmem:[%s8 + $0x18] sm:$0xff]
    %v1221 = vld [vmem:[%s9] sm:$0xff]
    %v1222 = vld [vmem:[%s9 + $0x8] sm:$0xff]
    %v1223 = vld [vmem:[%s9 + $0x10] sm:$0xff]
    %v1224 = vld [vmem:[%s9 + $0x18] sm:$0xff]
    %1225 = vmatpush.msra.mxu0 0.0
    %1226 = vmatpush.msra.mxu0 0.0
    %1227 = vmatpush.msra.mxu0 0.0
    %1228 = vmatpush.msra.mxu0 0.0
    %1229 = vmatpush.msra.mxu0 0.0
    %1230 = vmatpush.msra.mxu0 0.0
    %1231 = vmatpush.msra.mxu0 0.0
    %1232 = vmatpush.msra.mxu0 0.0
    %1233 = vmatpush.msra.mxu0 0.0
    %1234 = vmatpush.msra.mxu0 0.0
    %1235 = vmatpush.msra.mxu0 0.0
    %1236 = vmatpush.msra.mxu0 0.0
    %1237 = vmatpush.msra.mxu0 %v1220
    %1238 = vmatpush.msra.mxu0 %v1219
    %1239 = vmatpush.msra.mxu0 %v1218
    %1240 = vmatpush.msra.mxu0 %v1217
    %1241 = vmatmul.f32.gmra.mxu0 %v306
    %v1242 = vpop.f32.mrf.mxu0
    %v1243 = vadd.f32 0.0, %v1242
    %1244 = vdwg.mxu0
    %v1245 = vadd.f32 %v1177, %v1243
    %1246 = vmatpush.msra.mxu0 0.0
    %1247 = vmatpush.msra.mxu0 0.0
    %1248 = vmatpush.msra.mxu0 0.0
    %1249 = vmatpush.msra.mxu0 0.0
    %1250 = vmatpush.msra.mxu0 0.0
    %1251 = vmatpush.msra.mxu0 0.0
    %1252 = vmatpush.msra.mxu0 0.0
    %1253 = vmatpush.msra.mxu0 0.0
    %1254 = vmatpush.msra.mxu0 0.0
    %1255 = vmatpush.msra.mxu0 0.0
    %1256 = vmatpush.msra.mxu0 0.0
    %1257 = vmatpush.msra.mxu0 0.0
    %1258 = vmatpush.msra.mxu0 %v1224
    %1259 = vmatpush.msra.mxu0 %v1223
    %1260 = vmatpush.msra.mxu0 %v1222
    %1261 = vmatpush.msra.mxu0 %v1221
    %1262 = vmatmul.f32.gmra.mxu0 %v306
    %v1263 = vpop.f32.mrf.mxu0
    %v1264 = vadd.f32 0.0, %v1263
    %1265 = vdwg.mxu0
    %v1267 = vrot.slane %v1264, 4
    %v1269 = vadd.f32 %v1215, %v1267
    %v1270 = vsel %vm353, %v1245, %v1269
    %v1271 = vxor.u32 %v1270, 2147483648
    %v1272 = vmul.f32 %v1271, 1.442695
    %v1273 = vpow.pop %v1272
    %v1274 = vadd.f32 %v1273, 1.0
    %v1275 = vrcp.pop %v1274
    %v1276 = vmul.f32 %v1274, %v1275
    %v1277 = vsub.f32 1.0, %v1276
    %v1278 = vmul.f32 %v1275, %v1277
    %v1279 = vadd.f32 %v1275, %v1278
    %vm1280 = vweird.f32 %v1274
    %vm1281 = vweird.f32 %v1275
    %vm1282 = vmor %vm1280, %vm1281
    %v1283 = vsel %vm1282, %v1275, %v1279
    %v1284 = vand.u32 2147483647, %v1274
    %vm1285 = vcmp.eq.f32.partialorder %v1284, 8.507059e+37
    %v1286 = vand.u32 %v1274, 2147483648
    %v1287 = vor.u32 1.1754944e-38, %v1286
    %v1288 = vsel %vm1285, %v1287, %v1283
    %v1289 = vmul.f32 1.0, %v1288
    %v1290 = vtanh.pop %v1270
    %v1291 = vmul.f32 %v1289, 0.0
    %1293 = vrot.lane.b32.xlu0 %v1290, 64
    %v1294 = vpop.permute.xlu0 %1293
    %v1296 = vmul.f32 %v1289, %v1294
    %1298 = vrot.lane.b32.xlu0 %v1296, 32
    %v1299 = vpop.permute.xlu0 %1298
    %v1301 = vadd.f32 %v1291, %v1299
    %v1302 = vtanh.pop %v1301
    %1304 = vrot.lane.b32.xlu0 %v1302, 64
    %v1305 = vpop.permute.xlu0 %1304
    %v1307 = vmul.f32 %v1289, %v1305
    %1309 = vrot.lane.b32.xlu0 %v1307, 32
    %v1310 = vpop.permute.xlu0 %1309
    %v1311 = vsel %vm226, %v1310, 0
    %1313 = vmatpush.msra.mxu0 0.0
    %1314 = vmatpush.msra.mxu0 0.0
    %1315 = vmatpush.msra.mxu0 0.0
    %1316 = vmatpush.msra.mxu0 0.0
    %1317 = vmatpush.msra.mxu0 0.0
    %1318 = vmatpush.msra.mxu0 0.0
    %1319 = vmatpush.msra.mxu0 0.0
    %1320 = vmatpush.msra.mxu0 0.0
    %1321 = vmatpush.msra.mxu0 0.0
    %1322 = vmatpush.msra.mxu0 0.0
    %1323 = vmatpush.msra.mxu0 0.0
    %1324 = vmatpush.msra.mxu0 0.0
    %1325 = vmatpush.msra.mxu0 %v1220
    %1326 = vmatpush.msra.mxu0 %v1219
    %1327 = vmatpush.msra.mxu0 %v1218
    %1328 = vmatpush.msra.mxu0 %v1217
    %1329 = vmatmul.f32.gmra.mxu0 %v1311
    %v1330 = vpop.f32.mrf.mxu0
    %v1331 = vadd.f32 0.0, %v1330
    %1332 = vdwg.mxu0
    %v1334 = vrot.slane %v1331, 4
    %v1336 = vadd.f32 %v1177, %v1334
    %v1337 = vrot.slane %v1307, 4
    %1338 = vrot.lane.b32.xlu0 %v1337, 32
    %v1339 = vpop.permute.xlu0 %1338
    %v1340 = vsel %vm226, %v1339, 0
    %1342 = vmatpush.msra.mxu0 0.0
    %1343 = vmatpush.msra.mxu0 0.0
    %1344 = vmatpush.msra.mxu0 0.0
    %1345 = vmatpush.msra.mxu0 0.0
    %1346 = vmatpush.msra.mxu0 0.0
    %1347 = vmatpush.msra.mxu0 0.0
    %1348 = vmatpush.msra.mxu0 0.0
    %1349 = vmatpush.msra.mxu0 0.0
    %1350 = vmatpush.msra.mxu0 0.0
    %1351 = vmatpush.msra.mxu0 0.0
    %1352 = vmatpush.msra.mxu0 0.0
    %1353 = vmatpush.msra.mxu0 0.0
    %1354 = vmatpush.msra.mxu0 %v1224
    %1355 = vmatpush.msra.mxu0 %v1223
    %1356 = vmatpush.msra.mxu0 %v1222
    %1357 = vmatpush.msra.mxu0 %v1221
    %1358 = vmatmul.f32.gmra.mxu0 %v1340
    %v1359 = vpop.f32.mrf.mxu0
    %v1360 = vadd.f32 0.0, %v1359
    %1361 = vdwg.mxu0
    %v1362 = vadd.f32 %v1215, %v1360
    %v1364 = vrot.slane %v1336, 4
    %v1367 = vrot.slane %v1362, 4
    %v1369 = vsel %vm353, %v1364, %v1367
    %v1370 = vxor.u32 %v1369, 2147483648
    %v1371 = vmul.f32 %v1370, 1.442695
    %v1372 = vpow.pop %v1371
    %v1373 = vadd.f32 %v1372, 1.0
    %v1374 = vrcp.pop %v1373
    %v1375 = vmul.f32 %v1373, %v1374
    %v1376 = vsub.f32 1.0, %v1375
    %v1377 = vmul.f32 %v1374, %v1376
    %v1378 = vadd.f32 %v1374, %v1377
    %vm1379 = vweird.f32 %v1373
    %vm1380 = vweird.f32 %v1374
    %vm1381 = vmor %vm1379, %vm1380
    %v1382 = vsel %vm1381, %v1374, %v1378
    %v1383 = vand.u32 2147483647, %v1373
    %vm1384 = vcmp.eq.f32.partialorder %v1383, 8.507059e+37
    %v1385 = vand.u32 %v1373, 2147483648
    %v1386 = vor.u32 1.1754944e-38, %v1385
    %v1387 = vsel %vm1384, %v1386, %v1382
    %v1388 = vmul.f32 1.0, %v1387
    %v1389 = vtanh.pop %v1369
    %v1390 = vmul.f32 %v1388, %v1301
    %1392 = vrot.lane.b32.xlu0 %v1389, 64
    %v1393 = vpop.permute.xlu0 %1392
    %v1395 = vmul.f32 %v1388, %v1393
    %1397 = vrot.lane.b32.xlu0 %v1395, 32
    %v1398 = vpop.permute.xlu0 %1397
    %v1400 = vadd.f32 %v1390, %v1398
    %v1401 = vtanh.pop %v1400
    %1403 = vrot.lane.b32.xlu0 %v1401, 64
    %v1404 = vpop.permute.xlu0 %1403
    %v1406 = vmul.f32 %v1388, %v1404
    %1408 = vrot.lane.b32.xlu0 %v1406, 32
    %v1409 = vpop.permute.xlu0 %1408
    %v1410 = vsel %vm226, %v1409, 0
    %1412 = vmatpush.msra.mxu0 0.0
    %1413 = vmatpush.msra.mxu0 0.0
    %1414 = vmatpush.msra.mxu0 0.0
    %1415 = vmatpush.msra.mxu0 0.0
    %1416 = vmatpush.msra.mxu0 0.0
    %1417 = vmatpush.msra.mxu0 0.0
    %1418 = vmatpush.msra.mxu0 0.0
    %1419 = vmatpush.msra.mxu0 0.0
    %1420 = vmatpush.msra.mxu0 0.0
    %1421 = vmatpush.msra.mxu0 0.0
    %1422 = vmatpush.msra.mxu0 0.0
    %1423 = vmatpush.msra.mxu0 0.0
    %1424 = vmatpush.msra.mxu0 %v1220
    %1425 = vmatpush.msra.mxu0 %v1219
    %1426 = vmatpush.msra.mxu0 %v1218
    %1427 = vmatpush.msra.mxu0 %v1217
    %1428 = vmatmul.f32.gmra.mxu0 %v1410
    %v1429 = vpop.f32.mrf.mxu0
    %v1430 = vadd.f32 0.0, %v1429
    %1431 = vdwg.mxu0
    %v1432 = vadd.f32 %v1180, %v1430
    %v1433 = vrot.slane %v1406, 4
    %1434 = vrot.lane.b32.xlu0 %v1433, 32
    %v1435 = vpop.permute.xlu0 %1434
    %v1436 = vsel %vm226, %v1435, 0
    %1438 = vmatpush.msra.mxu0 0.0
    %1439 = vmatpush.msra.mxu0 0.0
    %1440 = vmatpush.msra.mxu0 0.0
    %1441 = vmatpush.msra.mxu0 0.0
    %1442 = vmatpush.msra.mxu0 0.0
    %1443 = vmatpush.msra.mxu0 0.0
    %1444 = vmatpush.msra.mxu0 0.0
    %1445 = vmatpush.msra.mxu0 0.0
    %1446 = vmatpush.msra.mxu0 0.0
    %1447 = vmatpush.msra.mxu0 0.0
    %1448 = vmatpush.msra.mxu0 0.0
    %1449 = vmatpush.msra.mxu0 0.0
    %1450 = vmatpush.msra.mxu0 %v1224
    %1451 = vmatpush.msra.mxu0 %v1223
    %1452 = vmatpush.msra.mxu0 %v1222
    %1453 = vmatpush.msra.mxu0 %v1221
    %1454 = vmatmul.f32.gmra.mxu0 %v1436
    %v1455 = vpop.f32.mrf.mxu0
    %v1456 = vadd.f32 0.0, %v1455
    %1457 = vdwg.mxu0
    %v1459 = vrot.slane %v1456, 4
    %v1461 = vadd.f32 %v1212, %v1459
    %v1462 = vsel %vm353, %v1432, %v1461
    %v1463 = vxor.u32 %v1462, 2147483648
    %v1464 = vmul.f32 %v1463, 1.442695
    %v1465 = vpow.pop %v1464
    %v1466 = vadd.f32 %v1465, 1.0
    %v1467 = vrcp.pop %v1466
    %v1468 = vmul.f32 %v1466, %v1467
    %v1469 = vsub.f32 1.0, %v1468
    %v1470 = vmul.f32 %v1467, %v1469
    %v1471 = vadd.f32 %v1467, %v1470
    %vm1472 = vweird.f32 %v1466
    %vm1473 = vweird.f32 %v1467
    %vm1474 = vmor %vm1472, %vm1473
    %v1475 = vsel %vm1474, %v1467, %v1471
    %v1476 = vand.u32 2147483647, %v1466
    %vm1477 = vcmp.eq.f32.partialorder %v1476, 8.507059e+37
    %v1478 = vand.u32 %v1466, 2147483648
    %v1479 = vor.u32 1.1754944e-38, %v1478
    %v1480 = vsel %vm1477, %v1479, %v1475
    %v1481 = vmul.f32 1.0, %v1480
    %v1482 = vtanh.pop %v1462
    %v1483 = vmul.f32 %v1481, %v1400
    %1485 = vrot.lane.b32.xlu0 %v1482, 64
    %v1486 = vpop.permute.xlu0 %1485
    %v1488 = vmul.f32 %v1481, %v1486
    %1490 = vrot.lane.b32.xlu0 %v1488, 32
    %v1491 = vpop.permute.xlu0 %1490
    %v1493 = vadd.f32 %v1483, %v1491
    %v1494 = vtanh.pop %v1493
    %1496 = vrot.lane.b32.xlu0 %v1494, 64
    %v1497 = vpop.permute.xlu0 %1496
    %v1499 = vmul.f32 %v1481, %v1497
    %1501 = vrot.lane.b32.xlu0 %v1499, 32
    %v1502 = vpop.permute.xlu0 %1501
    %v1503 = vsel %vm226, %v1502, 0
    %1505 = vmatpush.msra.mxu0 0.0
    %1506 = vmatpush.msra.mxu0 0.0
    %1507 = vmatpush.msra.mxu0 0.0
    %1508 = vmatpush.msra.mxu0 0.0
    %1509 = vmatpush.msra.mxu0 0.0
    %1510 = vmatpush.msra.mxu0 0.0
    %1511 = vmatpush.msra.mxu0 0.0
    %1512 = vmatpush.msra.mxu0 0.0
    %1513 = vmatpush.msra.mxu0 0.0
    %1514 = vmatpush.msra.mxu0 0.0
    %1515 = vmatpush.msra.mxu0 0.0
    %1516 = vmatpush.msra.mxu0 0.0
    %1517 = vmatpush.msra.mxu0 %v1220
    %1518 = vmatpush.msra.mxu0 %v1219
    %1519 = vmatpush.msra.mxu0 %v1218
    %1520 = vmatpush.msra.mxu0 %v1217
    %1521 = vmatmul.f32.gmra.mxu0 %v1503
    %v1522 = vpop.f32.mrf.mxu0
    %v1523 = vadd.f32 0.0, %v1522
    %1524 = vdwg.mxu0
    %v1526 = vrot.slane %v1523, 4
    %v1528 = vadd.f32 %v1180, %v1526
    %v1529 = vrot.slane %v1499, 4
    %1530 = vrot.lane.b32.xlu0 %v1529, 32
    %v1531 = vpop.permute.xlu0 %1530
    %v1532 = vsel %vm226, %v1531, 0
    %1534 = vmatpush.msra.mxu0 0.0
    %1535 = vmatpush.msra.mxu0 0.0
    %1536 = vmatpush.msra.mxu0 0.0
    %1537 = vmatpush.msra.mxu0 0.0
    %1538 = vmatpush.msra.mxu0 0.0
    %1539 = vmatpush.msra.mxu0 0.0
    %1540 = vmatpush.msra.mxu0 0.0
    %1541 = vmatpush.msra.mxu0 0.0
    %1542 = vmatpush.msra.mxu0 0.0
    %1543 = vmatpush.msra.mxu0 0.0
    %1544 = vmatpush.msra.mxu0 0.0
    %1545 = vmatpush.msra.mxu0 0.0
    %1546 = vmatpush.msra.mxu0 %v1224
    %1547 = vmatpush.msra.mxu0 %v1223
    %1548 = vmatpush.msra.mxu0 %v1222
    %1549 = vmatpush.msra.mxu0 %v1221
    %1550 = vmatmul.f32.gmra.mxu0 %v1532
    %v1551 = vpop.f32.mrf.mxu0
    %v1552 = vadd.f32 0.0, %v1551
    %1553 = vdwg.mxu0
    %v1554 = vadd.f32 %v1212, %v1552
    %v1556 = vrot.slane %v1528, 4
    %v1559 = vrot.slane %v1554, 4
    %v1561 = vsel %vm353, %v1556, %v1559
    %v1562 = vxor.u32 %v1561, 2147483648
    %v1563 = vmul.f32 %v1562, 1.442695
    %v1564 = vpow.pop %v1563
    %v1565 = vadd.f32 %v1564, 1.0
    %v1566 = vrcp.pop %v1565
    %v1567 = vmul.f32 %v1565, %v1566
    %v1568 = vsub.f32 1.0, %v1567
    %v1569 = vmul.f32 %v1566, %v1568
    %v1570 = vadd.f32 %v1566, %v1569
    %vm1571 = vweird.f32 %v1565
    %vm1572 = vweird.f32 %v1566
    %vm1573 = vmor %vm1571, %vm1572
    %v1574 = vsel %vm1573, %v1566, %v1570
    %v1575 = vand.u32 2147483647, %v1565
    %vm1576 = vcmp.eq.f32.partialorder %v1575, 8.507059e+37
    %v1577 = vand.u32 %v1565, 2147483648
    %v1578 = vor.u32 1.1754944e-38, %v1577
    %v1579 = vsel %vm1576, %v1578, %v1574
    %v1580 = vmul.f32 1.0, %v1579
    %v1581 = vtanh.pop %v1561
    %v1582 = vmul.f32 %v1580, %v1493
    %1584 = vrot.lane.b32.xlu0 %v1581, 64
    %v1585 = vpop.permute.xlu0 %1584
    %v1587 = vmul.f32 %v1580, %v1585
    %1589 = vrot.lane.b32.xlu0 %v1587, 32
    %v1590 = vpop.permute.xlu0 %1589
    %v1592 = vadd.f32 %v1582, %v1590
    %v1593 = vtanh.pop %v1592
    %1595 = vrot.lane.b32.xlu0 %v1593, 64
    %v1596 = vpop.permute.xlu0 %1595
    %v1598 = vmul.f32 %v1580, %v1596
    %1600 = vrot.lane.b32.xlu0 %v1598, 32
    %v1601 = vpop.permute.xlu0 %1600
    %v1602 = vsel %vm226, %v1601, 0
    %1604 = vmatpush.msra.mxu0 0.0
    %1605 = vmatpush.msra.mxu0 0.0
    %1606 = vmatpush.msra.mxu0 0.0
    %1607 = vmatpush.msra.mxu0 0.0
    %1608 = vmatpush.msra.mxu0 0.0
    %1609 = vmatpush.msra.mxu0 0.0
    %1610 = vmatpush.msra.mxu0 0.0
    %1611 = vmatpush.msra.mxu0 0.0
    %1612 = vmatpush.msra.mxu0 0.0
    %1613 = vmatpush.msra.mxu0 0.0
    %1614 = vmatpush.msra.mxu0 0.0
    %1615 = vmatpush.msra.mxu0 0.0
    %1616 = vmatpush.msra.mxu0 %v1220
    %1617 = vmatpush.msra.mxu0 %v1219
    %1618 = vmatpush.msra.mxu0 %v1218
    %1619 = vmatpush.msra.mxu0 %v1217
    %1620 = vmatmul.f32.gmra.mxu0 %v1602
    %v1621 = vpop.f32.mrf.mxu0
    %v1622 = vadd.f32 0.0, %v1621
    %1623 = vdwg.mxu0
    %v1624 = vadd.f32 %v1183, %v1622
    %v1625 = vrot.slane %v1598, 4
    %1626 = vrot.lane.b32.xlu0 %v1625, 32
    %v1627 = vpop.permute.xlu0 %1626
    %v1628 = vsel %vm226, %v1627, 0
    %1630 = vmatpush.msra.mxu0 0.0
    %1631 = vmatpush.msra.mxu0 0.0
    %1632 = vmatpush.msra.mxu0 0.0
    %1633 = vmatpush.msra.mxu0 0.0
    %1634 = vmatpush.msra.mxu0 0.0
    %1635 = vmatpush.msra.mxu0 0.0
    %1636 = vmatpush.msra.mxu0 0.0
    %1637 = vmatpush.msra.mxu0 0.0
    %1638 = vmatpush.msra.mxu0 0.0
    %1639 = vmatpush.msra.mxu0 0.0
    %1640 = vmatpush.msra.mxu0 0.0
    %1641 = vmatpush.msra.mxu0 0.0
    %1642 = vmatpush.msra.mxu0 %v1224
    %1643 = vmatpush.msra.mxu0 %v1223
    %1644 = vmatpush.msra.mxu0 %v1222
    %1645 = vmatpush.msra.mxu0 %v1221
    %1646 = vmatmul.f32.gmra.mxu0 %v1628
    %v1647 = vpop.f32.mrf.mxu0
    %v1648 = vadd.f32 0.0, %v1647
    %1649 = vdwg.mxu0
    %v1651 = vrot.slane %v1648, 4
    %v1653 = vadd.f32 %v1209, %v1651
    %v1654 = vsel %vm353, %v1624, %v1653
    %v1655 = vxor.u32 %v1654, 2147483648
    %v1656 = vmul.f32 %v1655, 1.442695
    %v1657 = vpow.pop %v1656
    %v1658 = vadd.f32 %v1657, 1.0
    %v1659 = vrcp.pop %v1658
    %v1660 = vmul.f32 %v1658, %v1659
    %v1661 = vsub.f32 1.0, %v1660
    %v1662 = vmul.f32 %v1659, %v1661
    %v1663 = vadd.f32 %v1659, %v1662
    %vm1664 = vweird.f32 %v1658
    %vm1665 = vweird.f32 %v1659
    %vm1666 = vmor %vm1664, %vm1665
    %v1667 = vsel %vm1666, %v1659, %v1663
    %v1668 = vand.u32 2147483647, %v1658
    %vm1669 = vcmp.eq.f32.partialorder %v1668, 8.507059e+37
    %v1670 = vand.u32 %v1658, 2147483648
    %v1671 = vor.u32 1.1754944e-38, %v1670
    %v1672 = vsel %vm1669, %v1671, %v1667
    %v1673 = vmul.f32 1.0, %v1672
    %v1674 = vtanh.pop %v1654
    %v1675 = vmul.f32 %v1673, %v1592
    %1677 = vrot.lane.b32.xlu0 %v1674, 64
    %v1678 = vpop.permute.xlu0 %1677
    %v1680 = vmul.f32 %v1673, %v1678
    %1682 = vrot.lane.b32.xlu0 %v1680, 32
    %v1683 = vpop.permute.xlu0 %1682
    %v1685 = vadd.f32 %v1675, %v1683
    %v1686 = vtanh.pop %v1685
    %1688 = vrot.lane.b32.xlu0 %v1686, 64
    %v1689 = vpop.permute.xlu0 %1688
    %v1691 = vmul.f32 %v1673, %v1689
    %1693 = vrot.lane.b32.xlu0 %v1691, 32
    %v1694 = vpop.permute.xlu0 %1693
    %v1695 = vsel %vm226, %v1694, 0
    %1697 = vmatpush.msra.mxu0 0.0
    %1698 = vmatpush.msra.mxu0 0.0
    %1699 = vmatpush.msra.mxu0 0.0
    %1700 = vmatpush.msra.mxu0 0.0
    %1701 = vmatpush.msra.mxu0 0.0
    %1702 = vmatpush.msra.mxu0 0.0
    %1703 = vmatpush.msra.mxu0 0.0
    %1704 = vmatpush.msra.mxu0 0.0
    %1705 = vmatpush.msra.mxu0 0.0
    %1706 = vmatpush.msra.mxu0 0.0
    %1707 = vmatpush.msra.mxu0 0.0
    %1708 = vmatpush.msra.mxu0 0.0
    %1709 = vmatpush.msra.mxu0 %v1220
    %1710 = vmatpush.msra.mxu0 %v1219
    %1711 = vmatpush.msra.mxu0 %v1218
    %1712 = vmatpush.msra.mxu0 %v1217
    %1713 = vmatmul.f32.gmra.mxu0 %v1695
    %v1714 = vpop.f32.mrf.mxu0
    %v1715 = vadd.f32 0.0, %v1714
    %1716 = vdwg.mxu0
    %v1718 = vrot.slane %v1715, 4
    %v1720 = vadd.f32 %v1183, %v1718
    %v1721 = vrot.slane %v1691, 4
    %1722 = vrot.lane.b32.xlu0 %v1721, 32
    %v1723 = vpop.permute.xlu0 %1722
    %v1724 = vsel %vm226, %v1723, 0
    %1726 = vmatpush.msra.mxu0 0.0
    %1727 = vmatpush.msra.mxu0 0.0
    %1728 = vmatpush.msra.mxu0 0.0
    %1729 = vmatpush.msra.mxu0 0.0
    %1730 = vmatpush.msra.mxu0 0.0
    %1731 = vmatpush.msra.mxu0 0.0
    %1732 = vmatpush.msra.mxu0 0.0
    %1733 = vmatpush.msra.mxu0 0.0
    %1734 = vmatpush.msra.mxu0 0.0
    %1735 = vmatpush.msra.mxu0 0.0
    %1736 = vmatpush.msra.mxu0 0.0
    %1737 = vmatpush.msra.mxu0 0.0
    %1738 = vmatpush.msra.mxu0 %v1224
    %1739 = vmatpush.msra.mxu0 %v1223
    %1740 = vmatpush.msra.mxu0 %v1222
    %1741 = vmatpush.msra.mxu0 %v1221
    %1742 = vmatmul.f32.gmra.mxu0 %v1724
    %v1743 = vpop.f32.mrf.mxu0
    %v1744 = vadd.f32 0.0, %v1743
    %1745 = vdwg.mxu0
    %v1746 = vadd.f32 %v1209, %v1744
    %v1748 = vrot.slane %v1720, 4
    %v1751 = vrot.slane %v1746, 4
    %v1753 = vsel %vm353, %v1748, %v1751
    %v1754 = vxor.u32 %v1753, 2147483648
    %v1755 = vmul.f32 %v1754, 1.442695
    %v1756 = vpow.pop %v1755
    %v1757 = vadd.f32 %v1756, 1.0
    %v1758 = vrcp.pop %v1757
    %v1759 = vmul.f32 %v1757, %v1758
    %v1760 = vsub.f32 1.0, %v1759
    %v1761 = vmul.f32 %v1758, %v1760
    %v1762 = vadd.f32 %v1758, %v1761
    %vm1763 = vweird.f32 %v1757
    %vm1764 = vweird.f32 %v1758
    %vm1765 = vmor %vm1763, %vm1764
    %v1766 = vsel %vm1765, %v1758, %v1762
    %v1767 = vand.u32 2147483647, %v1757
    %vm1768 = vcmp.eq.f32.partialorder %v1767, 8.507059e+37
    %v1769 = vand.u32 %v1757, 2147483648
    %v1770 = vor.u32 1.1754944e-38, %v1769
    %v1771 = vsel %vm1768, %v1770, %v1766
    %v1772 = vmul.f32 1.0, %v1771
    %v1773 = vtanh.pop %v1753
    %v1774 = vmul.f32 %v1772, %v1685
    %1776 = vrot.lane.b32.xlu0 %v1773, 64
    %v1777 = vpop.permute.xlu0 %1776
    %v1779 = vmul.f32 %v1772, %v1777
    %1781 = vrot.lane.b32.xlu0 %v1779, 32
    %v1782 = vpop.permute.xlu0 %1781
    %v1784 = vadd.f32 %v1774, %v1782
    %v1785 = vtanh.pop %v1784
    %1787 = vrot.lane.b32.xlu0 %v1785, 64
    %v1788 = vpop.permute.xlu0 %1787
    %v1790 = vmul.f32 %v1772, %v1788
    %1792 = vrot.lane.b32.xlu0 %v1790, 32
    %v1793 = vpop.permute.xlu0 %1792
    %v1794 = vsel %vm226, %v1793, 0
    %1796 = vmatpush.msra.mxu0 0.0
    %1797 = vmatpush.msra.mxu0 0.0
    %1798 = vmatpush.msra.mxu0 0.0
    %1799 = vmatpush.msra.mxu0 0.0
    %1800 = vmatpush.msra.mxu0 0.0
    %1801 = vmatpush.msra.mxu0 0.0
    %1802 = vmatpush.msra.mxu0 0.0
    %1803 = vmatpush.msra.mxu0 0.0
    %1804 = vmatpush.msra.mxu0 0.0
    %1805 = vmatpush.msra.mxu0 0.0
    %1806 = vmatpush.msra.mxu0 0.0
    %1807 = vmatpush.msra.mxu0 0.0
    %1808 = vmatpush.msra.mxu0 %v1220
    %1809 = vmatpush.msra.mxu0 %v1219
    %1810 = vmatpush.msra.mxu0 %v1218
    %1811 = vmatpush.msra.mxu0 %v1217
    %1812 = vmatmul.f32.gmra.mxu0 %v1794
    %v1813 = vpop.f32.mrf.mxu0
    %v1814 = vadd.f32 0.0, %v1813
    %1815 = vdwg.mxu0
    %v1816 = vadd.f32 %v1186, %v1814
    %v1817 = vrot.slane %v1790, 4
    %1818 = vrot.lane.b32.xlu0 %v1817, 32
    %v1819 = vpop.permute.xlu0 %1818
    %v1820 = vsel %vm226, %v1819, 0
    %1822 = vmatpush.msra.mxu0 0.0
    %1823 = vmatpush.msra.mxu0 0.0
    %1824 = vmatpush.msra.mxu0 0.0
    %1825 = vmatpush.msra.mxu0 0.0
    %1826 = vmatpush.msra.mxu0 0.0
    %1827 = vmatpush.msra.mxu0 0.0
    %1828 = vmatpush.msra.mxu0 0.0
    %1829 = vmatpush.msra.mxu0 0.0
    %1830 = vmatpush.msra.mxu0 0.0
    %1831 = vmatpush.msra.mxu0 0.0
    %1832 = vmatpush.msra.mxu0 0.0
    %1833 = vmatpush.msra.mxu0 0.0
    %1834 = vmatpush.msra.mxu0 %v1224
    %1835 = vmatpush.msra.mxu0 %v1223
    %1836 = vmatpush.msra.mxu0 %v1222
    %1837 = vmatpush.msra.mxu0 %v1221
    %1838 = vmatmul.f32.gmra.mxu0 %v1820
    %v1839 = vpop.f32.mrf.mxu0
    %v1840 = vadd.f32 0.0, %v1839
    %1841 = vdwg.mxu0
    %v1843 = vrot.slane %v1840, 4
    %v1845 = vadd.f32 %v1206, %v1843
    %v1846 = vsel %vm353, %v1816, %v1845
    %v1847 = vxor.u32 %v1846, 2147483648
    %v1848 = vmul.f32 %v1847, 1.442695
    %v1849 = vpow.pop %v1848
    %v1850 = vadd.f32 %v1849, 1.0
    %v1851 = vrcp.pop %v1850
    %v1852 = vmul.f32 %v1850, %v1851
    %v1853 = vsub.f32 1.0, %v1852
    %v1854 = vmul.f32 %v1851, %v1853
    %v1855 = vadd.f32 %v1851, %v1854
    %vm1856 = vweird.f32 %v1850
    %vm1857 = vweird.f32 %v1851
    %vm1858 = vmor %vm1856, %vm1857
    %v1859 = vsel %vm1858, %v1851, %v1855
    %v1860 = vand.u32 2147483647, %v1850
    %vm1861 = vcmp.eq.f32.partialorder %v1860, 8.507059e+37
    %v1862 = vand.u32 %v1850, 2147483648
    %v1863 = vor.u32 1.1754944e-38, %v1862
    %v1864 = vsel %vm1861, %v1863, %v1859
    %v1865 = vmul.f32 1.0, %v1864
    %v1866 = vtanh.pop %v1846
    %v1867 = vmul.f32 %v1865, %v1784
    %1869 = vrot.lane.b32.xlu0 %v1866, 64
    %v1870 = vpop.permute.xlu0 %1869
    %v1872 = vmul.f32 %v1865, %v1870
    %1874 = vrot.lane.b32.xlu0 %v1872, 32
    %v1875 = vpop.permute.xlu0 %1874
    %v1877 = vadd.f32 %v1867, %v1875
    %v1878 = vtanh.pop %v1877
    %1880 = vrot.lane.b32.xlu0 %v1878, 64
    %v1881 = vpop.permute.xlu0 %1880
    %v1883 = vmul.f32 %v1865, %v1881
    %1885 = vrot.lane.b32.xlu0 %v1883, 32
    %v1886 = vpop.permute.xlu0 %1885
    %v1887 = vsel %vm226, %v1886, 0
    %1889 = vmatpush.msra.mxu0 0.0
    %1890 = vmatpush.msra.mxu0 0.0
    %1891 = vmatpush.msra.mxu0 0.0
    %1892 = vmatpush.msra.mxu0 0.0
    %1893 = vmatpush.msra.mxu0 0.0
    %1894 = vmatpush.msra.mxu0 0.0
    %1895 = vmatpush.msra.mxu0 0.0
    %1896 = vmatpush.msra.mxu0 0.0
    %1897 = vmatpush.msra.mxu0 0.0
    %1898 = vmatpush.msra.mxu0 0.0
    %1899 = vmatpush.msra.mxu0 0.0
    %1900 = vmatpush.msra.mxu0 0.0
    %1901 = vmatpush.msra.mxu0 %v1220
    %1902 = vmatpush.msra.mxu0 %v1219
    %1903 = vmatpush.msra.mxu0 %v1218
    %1904 = vmatpush.msra.mxu0 %v1217
    %1905 = vmatmul.f32.gmra.mxu0 %v1887
    %v1906 = vpop.f32.mrf.mxu0
    %v1907 = vadd.f32 0.0, %v1906
    %1908 = vdwg.mxu0
    %v1910 = vrot.slane %v1907, 4
    %v1912 = vadd.f32 %v1186, %v1910
    %v1913 = vrot.slane %v1883, 4
    %1914 = vrot.lane.b32.xlu0 %v1913, 32
    %v1915 = vpop.permute.xlu0 %1914
    %v1916 = vsel %vm226, %v1915, 0
    %1918 = vmatpush.msra.mxu0 0.0
    %1919 = vmatpush.msra.mxu0 0.0
    %1920 = vmatpush.msra.mxu0 0.0
    %1921 = vmatpush.msra.mxu0 0.0
    %1922 = vmatpush.msra.mxu0 0.0
    %1923 = vmatpush.msra.mxu0 0.0
    %1924 = vmatpush.msra.mxu0 0.0
    %1925 = vmatpush.msra.mxu0 0.0
    %1926 = vmatpush.msra.mxu0 0.0
    %1927 = vmatpush.msra.mxu0 0.0
    %1928 = vmatpush.msra.mxu0 0.0
    %1929 = vmatpush.msra.mxu0 0.0
    %1930 = vmatpush.msra.mxu0 %v1224
    %1931 = vmatpush.msra.mxu0 %v1223
    %1932 = vmatpush.msra.mxu0 %v1222
    %1933 = vmatpush.msra.mxu0 %v1221
    %1934 = vmatmul.f32.gmra.mxu0 %v1916
    %v1935 = vpop.f32.mrf.mxu0
    %v1936 = vadd.f32 0.0, %v1935
    %1937 = vdwg.mxu0
    %v1938 = vadd.f32 %v1206, %v1936
    %v1940 = vrot.slane %v1912, 4
    %v1943 = vrot.slane %v1938, 4
    %v1945 = vsel %vm353, %v1940, %v1943
    %v1946 = vxor.u32 %v1945, 2147483648
    %v1947 = vmul.f32 %v1946, 1.442695
    %v1948 = vpow.pop %v1947
    %v1949 = vadd.f32 %v1948, 1.0
    %v1950 = vrcp.pop %v1949
    %v1951 = vmul.f32 %v1949, %v1950
    %v1952 = vsub.f32 1.0, %v1951
    %v1953 = vmul.f32 %v1950, %v1952
    %v1954 = vadd.f32 %v1950, %v1953
    %vm1955 = vweird.f32 %v1949
    %vm1956 = vweird.f32 %v1950
    %vm1957 = vmor %vm1955, %vm1956
    %v1958 = vsel %vm1957, %v1950, %v1954
    %v1959 = vand.u32 2147483647, %v1949
    %vm1960 = vcmp.eq.f32.partialorder %v1959, 8.507059e+37
    %v1961 = vand.u32 %v1949, 2147483648
    %v1962 = vor.u32 1.1754944e-38, %v1961
    %v1963 = vsel %vm1960, %v1962, %v1958
    %v1964 = vmul.f32 1.0, %v1963
    %v1965 = vtanh.pop %v1945
    %v1966 = vmul.f32 %v1964, %v1877
    %1968 = vrot.lane.b32.xlu0 %v1965, 64
    %v1969 = vpop.permute.xlu0 %1968
    %v1971 = vmul.f32 %v1964, %v1969
    %1973 = vrot.lane.b32.xlu0 %v1971, 32
    %v1974 = vpop.permute.xlu0 %1973
    %v1976 = vadd.f32 %v1966, %v1974
    %v1977 = vtanh.pop %v1976
    %1979 = vrot.lane.b32.xlu0 %v1977, 64
    %v1980 = vpop.permute.xlu0 %1979
    %v1982 = vmul.f32 %v1964, %v1980
    %1984 = vrot.lane.b32.xlu0 %v1982, 32
    %v1985 = vpop.permute.xlu0 %1984
    %v1987 = vrot.slane %v1982, 4
    %1988 = vrot.lane.b32.xlu0 %v1987, 64
    %v1989 = vpop.permute.xlu0 %1988
    %v1991 = vsel %vm226, %v1985, %v1989
    %v1993 = vrot.slane %v1991, 2
    %v1995 = vsub.f32 %v1991, %v1993
    %v1996 = vand.u32 2147483647, %v1995
    %v1997 = vmul.f32 %v1991, %v1993
    %1998 = vrot.lane.b32.xlu0 %v1993, 64
    %v1999 = vpop.permute.xlu0 %1998
    %2002 = vrot.lane.b32.xlu0 %v1997, 64
    %v2003 = vpop.permute.xlu0 %2002
    %v2005 = vsel %vm1146, %v1991, %v1999
    %v2006 = vsel %vm1146, %v1996, %v2003
    %v2007 = vld [vmem:[%s11] sm:$0xff]
    %v2008 = vld [vmem:[%s11 + $0x8] sm:$0xff]
    %v2009 = vld [vmem:[%s11 + $0x10] sm:$0xff]
    %v2010 = vld [vmem:[%s11 + $0x18] sm:$0xff]
    %v2011 = vld [vmem:[%s11 + $0x20] sm:$0xff]
    %v2012 = vld [vmem:[%s11 + $0x28] sm:$0xff]
    %v2013 = vld [vmem:[%s11 + $0x30] sm:$0xff]
    %v2014 = vld [vmem:[%s11 + $0x38] sm:$0xff]
    %v2015 = vld [vmem:[%s11 + $0x40] sm:$0xff]
    %v2016 = vld [vmem:[%s11 + $0x48] sm:$0xff]
    %v2017 = vld [vmem:[%s11 + $0x50] sm:$0xff]
    %v2018 = vld [vmem:[%s11 + $0x58] sm:$0xff]
    %v2019 = vld [vmem:[%s11 + $0x60] sm:$0xff]
    %v2020 = vld [vmem:[%s11 + $0x68] sm:$0xff]
    %v2021 = vld [vmem:[%s11 + $0x70] sm:$0xff]
    %v2022 = vld [vmem:[%s11 + $0x78] sm:$0xff]
    %v2023 = vld [vmem:[%s11 + $0x80] sm:$0xff]
    %v2024 = vld [vmem:[%s11 + $0x88] sm:$0xff]
    %v2025 = vld [vmem:[%s11 + $0x90] sm:$0xff]
    %v2026 = vld [vmem:[%s11 + $0x98] sm:$0xff]
    %v2027 = vld [vmem:[%s11 + $0xa0] sm:$0xff]
    %v2028 = vld [vmem:[%s11 + $0xa8] sm:$0xff]
    %v2029 = vld [vmem:[%s11 + $0xb0] sm:$0xff]
    %v2030 = vld [vmem:[%s11 + $0xb8] sm:$0xff]
    %v2031 = vld [vmem:[%s11 + $0xc0] sm:$0xff]
    %v2032 = vld [vmem:[%s11 + $0xc8] sm:$0xff]
    %v2033 = vld [vmem:[%s11 + $0xd0] sm:$0xff]
    %v2034 = vld [vmem:[%s11 + $0xd8] sm:$0xff]
    %v2035 = vld [vmem:[%s11 + $0xe0] sm:$0xff]
    %v2036 = vld [vmem:[%s11 + $0xe8] sm:$0xff]
    %v2037 = vld [vmem:[%s11 + $0xf0] sm:$0xff]
    %v2038 = vld [vmem:[%s11 + $0xf8] sm:$0xff]
    %v2039 = vld [vmem:[%s12] sm:$0x1]
    %v2041 = vperm.slane %v2039, 0
    %2043 = vmatpush.msra.mxu0 %v2022
    %2044 = vmatpush.msra.mxu0 %v2021
    %2045 = vmatpush.msra.mxu0 %v2020
    %2046 = vmatpush.msra.mxu0 %v2019
    %2047 = vmatpush.msra.mxu0 %v2018
    %2048 = vmatpush.msra.mxu0 %v2017
    %2049 = vmatpush.msra.mxu0 %v2016
    %2050 = vmatpush.msra.mxu0 %v2015
    %2051 = vmatpush.msra.mxu0 %v2014
    %2052 = vmatpush.msra.mxu0 %v2013
    %2053 = vmatpush.msra.mxu0 %v2012
    %2054 = vmatpush.msra.mxu0 %v2011
    %2055 = vmatpush.msra.mxu0 %v2010
    %2056 = vmatpush.msra.mxu0 %v2009
    %2057 = vmatpush.msra.mxu0 %v2008
    %2058 = vmatpush.msra.mxu0 %v2007
    %2059 = vmatmul.f32.gmra.mxu0 %v2005
    %v2060 = vpop.f32.mrf.mxu0
    %v2061 = vadd.f32 %v2041, %v2060
    %2062 = vdwg.mxu0
    %2063 = vmatpush.msra.mxu0 %v2038
    %2064 = vmatpush.msra.mxu0 %v2037
    %2065 = vmatpush.msra.mxu0 %v2036
    %2066 = vmatpush.msra.mxu0 %v2035
    %2067 = vmatpush.msra.mxu0 %v2034
    %2068 = vmatpush.msra.mxu0 %v2033
    %2069 = vmatpush.msra.mxu0 %v2032
    %2070 = vmatpush.msra.mxu0 %v2031
    %2071 = vmatpush.msra.mxu0 %v2030
    %2072 = vmatpush.msra.mxu0 %v2029
    %2073 = vmatpush.msra.mxu0 %v2028
    %2074 = vmatpush.msra.mxu0 %v2027
    %2075 = vmatpush.msra.mxu0 %v2026
    %2076 = vmatpush.msra.mxu0 %v2025
    %2077 = vmatpush.msra.mxu0 %v2024
    %2078 = vmatpush.msra.mxu0 %v2023
    %2079 = vmatmul.f32.gmra.mxu0 %v2006
    %v2080 = vpop.f32.mrf.mxu0
    %v2081 = vadd.f32 %v2061, %v2080
    %2082 = vdwg.mxu0
    %v2083 = vmax.f32 %v2081, 0.0
    %v2084 = vld [vmem:[%s13] sm:$0xff]
    %v2085 = vld [vmem:[%s13 + $0x8] sm:$0xff]
    %v2086 = vld [vmem:[%s13 + $0x10] sm:$0xff]
    %v2087 = vld [vmem:[%s13 + $0x18] sm:$0xff]
    %v2088 = vld [vmem:[%s14] sm:$0x1]
    %v2090 = vperm.slane %v2088, 0
    %v2093 = vsel %vm226, %v2083, 0
    %2095 = vmatpush.msra.mxu0 0.0
    %2096 = vmatpush.msra.mxu0 0.0
    %2097 = vmatpush.msra.mxu0 0.0
    %2098 = vmatpush.msra.mxu0 0.0
    %2099 = vmatpush.msra.mxu0 0.0
    %2100 = vmatpush.msra.mxu0 0.0
    %2101 = vmatpush.msra.mxu0 0.0
    %2102 = vmatpush.msra.mxu0 0.0
    %2103 = vmatpush.msra.mxu0 0.0
    %2104 = vmatpush.msra.mxu0 0.0
    %2105 = vmatpush.msra.mxu0 0.0
    %2106 = vmatpush.msra.mxu0 0.0
    %2107 = vmatpush.msra.mxu0 %v2087
    %2108 = vmatpush.msra.mxu0 %v2086
    %2109 = vmatpush.msra.mxu0 %v2085
    %2110 = vmatpush.msra.mxu0 %v2084
    %2111 = vmatmul.f32.gmra.mxu0 %v2093
    %v2112 = vpop.f32.mrf.mxu0
    %v2113 = vadd.f32 %v2090, %v2112
    %2114 = vdwg.mxu0
    %v2115 = vmax.f32 %v2113, 0.0
    %v2116 = vld [vmem:[%s15] sm:$0xff]
    %v2117 = vld [vmem:[%s15 + $0x8] sm:$0xff]
    %v2118 = vld [vmem:[%s15 + $0x10] sm:$0xff]
    %v2119 = vld [vmem:[%s15 + $0x18] sm:$0xff]
    %v2120 = vld [vmem:[%s16] sm:$0x1]
    %v2122 = vperm.slane %v2120, 0
    %v2125 = vsel %vm226, %v2115, 0
    %2127 = vmatpush.msra.mxu0 0.0
    %2128 = vmatpush.msra.mxu0 0.0
    %2129 = vmatpush.msra.mxu0 0.0
    %2130 = vmatpush.msra.mxu0 0.0
    %2131 = vmatpush.msra.mxu0 0.0
    %2132 = vmatpush.msra.mxu0 0.0
    %2133 = vmatpush.msra.mxu0 0.0
    %2134 = vmatpush.msra.mxu0 0.0
    %2135 = vmatpush.msra.mxu0 0.0
    %2136 = vmatpush.msra.mxu0 0.0
    %2137 = vmatpush.msra.mxu0 0.0
    %2138 = vmatpush.msra.mxu0 0.0
    %2139 = vmatpush.msra.mxu0 %v2119
    %2140 = vmatpush.msra.mxu0 %v2118
    %2141 = vmatpush.msra.mxu0 %v2117
    %2142 = vmatpush.msra.mxu0 %v2116
    %2143 = vmatmul.f32.gmra.mxu0 %v2125
    %v2144 = vpop.f32.mrf.mxu0
    %v2145 = vadd.f32 %v2122, %v2144
    %2146 = vdwg.mxu0
    %vm2147 = vcmask 17408
    %2148 = vst.msk [vmem:[#allocation3] sm:$0x3] %vm2147, %v2145
    // Predicated region
    $region70: #{bilstm_forward.1} parent=1 // pred_check
      _
    $region71: #{bilstm_forward.1} parent=1 // pred_check_branch
      %2150 = sbr.rel (0) target = $region73
    $region72: #{bilstm_forward.1} parent=1 // pred_region
      %2152 = vsyncadd [#allocation4], 0
      %s2154 = sshll.u32 [#allocation3], 4
      %s2155 = int_to_ptr.vmem [resolvable:$true] %s2154
      %s2156 = sshll.u32 %s17, 4
      %s2157 = int_to_ptr.hbm [resolvable:$true] %s2156
      %2159 = dma.vmem_to_hbm [thread:$0]  %s2155, 32, %s2157, [#allocation4]
    $region73: #{bilstm_forward.1} parent=1 // pred_fallthru
      _
    // Predicated region
    $region74: #{bilstm_forward.1} parent=1 // pred_check
      _
    $region75: #{bilstm_forward.1} parent=1 // pred_check_branch
      %2161 = sbr.rel (0) target = $region77
    $region76: #{bilstm_forward.1} parent=1 // pred_region
      %2163 = dma.done [#allocation4], 32
    $region77: #{bilstm_forward.1} parent=1 // pred_fallthru
      _
    %2164 = vsyncpa [#allocation4], 1

</llo_original>
